<compile_context>
chip_gen: v7x
topology: tpu7x:2x2x1
jax: 0.10.0
libtpu: 0.0.40
codegen_flags: <defaults>
</compile_context>

<pallas_src>
import jax
import jax.numpy as jnp
from jax.experimental import pallas as pl
from jax.experimental.pallas import tpu as pltpu

# ----------------- config (small shapes, same structure as deit_base_patch16_384) ---
BATCH = 2
IN_CH = 3
IMG = 32            # 384 in the real model
PATCH = 16          # same patch size as deit_base_patch16_384
EMBED = 32          # 768 in the real model
DEPTH = 2           # 12 in the real model
HEADS = 4           # 12 in the real model
HEAD_DIM = EMBED // HEADS
MLP_HIDDEN = 4 * EMBED
NUM_CLASSES = 10
HEAD_PAD = 128      # lane-dense padded logit width (sliced back to NUM_CLASSES outside)
GRID_HW = IMG // PATCH
NUM_PATCHES = GRID_HW * GRID_HW
SEQ = NUM_PATCHES + 1           # + cls token
TOKENS = BATCH * SEQ            # flattened matmul M dimension
PATCH_DIM = IN_CH * PATCH * PATCH
LN_EPS = 1e-6
ATTN_SCALE = HEAD_DIM ** -0.5


# --------------------------------- kernel helpers -----------------------------------
def _layernorm(x, g, b):
    # f32 statistics on the VPU (v5e has no bf16 VPU); rsqrt goes to the EUP.
    mu = jnp.mean(x, axis=-1, keepdims=True)
    var = jnp.mean(jnp.square(x - mu), axis=-1, keepdims=True)
    return (x - mu) * jax.lax.rsqrt(var + LN_EPS) * g + b


def _split_heads(m2d):
    """(B*SEQ, E) -> (HEADS*BATCH, SEQ, HEAD_DIM) via static 2-D slices + axis-0 stack."""
    blocks = [m2d[b * SEQ:(b + 1) * SEQ, h * HEAD_DIM:(h + 1) * HEAD_DIM]
              for h in range(HEADS) for b in range(BATCH)]
    return jnp.stack(blocks, axis=0)


def _merge_heads(o_hb):
    """(HEADS*BATCH, SEQ, HEAD_DIM) -> (B*SEQ, E) via register-level concats."""
    rows = [jnp.concatenate([o_hb[h * BATCH + b] for h in range(HEADS)], axis=-1)
            for b in range(BATCH)]
    return jnp.concatenate(rows, axis=0)


# ------------------------------ per-layer fused kernel ------------------------------
def _deit_block_kernel(
    patches_ref, patchw_ref, addend_ref,
    ln1w_ref, ln1b_ref, qkvw_ref, qkvb_ref, projw_ref, projb_ref,
    ln2w_ref, ln2b_ref, fc1w_ref, fc1b_ref, fc2w_ref, fc2b_ref,
    normw_ref, normb_ref, headw_ref, headb_ref,
    o_ref,
    x_scr,
):
    bf16 = jnp.bfloat16
    f32 = jnp.float32
    layer = pl.program_id(0)

    # ---- first grid step: patch embedding + cls/pos (one full-width store) ----
    @pl.when(layer == 0)
    def _():
        tok = jnp.dot(patches_ref[...], patchw_ref[...], preferred_element_type=f32)
        # addend holds (cls + pos0) at cls rows (their patch rows are zero) and
        # (pos_s + patch_bias) at patch rows.
        x_scr[...] = tok + addend_ref[...]

    x = x_scr[...]                                            # (TOKENS, E) f32

    # ---- attention (pre-norm); 1/sqrt(head_dim) folded into the q weights ----
    h1 = _layernorm(x, ln1w_ref[...], ln1b_ref[...])
    h1b = h1.astype(bf16)
    q2 = jnp.dot(h1b, qkvw_ref[0], preferred_element_type=f32) + qkvb_ref[0]
    k2 = jnp.dot(h1b, qkvw_ref[1], preferred_element_type=f32) + qkvb_ref[1]
    v2 = jnp.dot(h1b, qkvw_ref[2], preferred_element_type=f32) + qkvb_ref[2]

    qh = _split_heads(q2).astype(bf16)                        # (H*B, SEQ, HD)
    kh = _split_heads(k2).astype(bf16)
    vh = _split_heads(v2).astype(bf16)

    s = jnp.einsum('bqd,bkd->bqk', qh, kh, preferred_element_type=f32)
    s = s - jnp.max(s, axis=-1, keepdims=True)
    p = jnp.exp(s)
    p = p * pl.reciprocal(jnp.sum(p, axis=-1, keepdims=True), approx=True)
    o_hb = jnp.einsum('bqk,bkd->bqd', p.astype(bf16), vh,
                      preferred_element_type=f32)             # (H*B, SEQ, HD)

    attn2 = _merge_heads(o_hb).astype(bf16)                   # (TOKENS, E)
    x = x + jnp.dot(attn2, projw_ref[...], preferred_element_type=f32) + projb_ref[...]

    # ---- MLP (pre-norm) ----
    h2 = _layernorm(x, ln2w_ref[...], ln2b_ref[...])
    h2 = jnp.dot(h2.astype(bf16), fc1w_ref[...], preferred_element_type=f32) + fc1b_ref[...]
    # TODO(synk): timm DeiT uses exact (erf) GELU; tanh approximation kept for
    # Mosaic lowering safety.
    h2 = jax.nn.gelu(h2, approximate=True)
    x = x + jnp.dot(h2.astype(bf16), fc2w_ref[...], preferred_element_type=f32) + fc2b_ref[...]

    x_scr[...] = x                                            # carry to next layer

    # ---- last grid step: final LN + head on the cls tokens (lane-dense output) ----
    @pl.when(layer == DEPTH - 1)
    def _():
        cls2 = jnp.concatenate([x[b * SEQ:b * SEQ + 1, :] for b in range(BATCH)], axis=0)
        hf = _layernorm(cls2, normw_ref[...], normb_ref[...])
        o_ref[...] = (jnp.dot(hf.astype(bf16), headw_ref[...],
                              preferred_element_type=f32) + headb_ref[...])


# ------------------------------- forward (glue + one kernel) ------------------------
def _const_spec(a):
    nd = a.ndim
    return pl.BlockSpec(a.shape, lambda l, _nd=nd: (0,) * _nd)


def _layer_spec(a):
    nd = a.ndim
    return pl.BlockSpec((None,) + tuple(a.shape[1:]),
                        lambda l, _nd=nd: (l,) + (0,) * (_nd - 1))


def deit_forward(x, params):
    f32, bf16 = jnp.float32, jnp.bfloat16
    B = x.shape[0]

    # Patch-embed conv (stride == kernel) == patch extraction + matmul; the layout
    # shuffle is plain-JAX glue, everything heavy runs in the Pallas kernel.
    patches = x.reshape(B, IN_CH, GRID_HW, PATCH, GRID_HW, PATCH)
    patches = patches.transpose(0, 2, 4, 1, 3, 5).reshape(B, NUM_PATCHES, PATCH_DIM)
    # Insert a zero row at each batch's cls slot so the fused matmul contributes
    # nothing there; the cls token value comes from the addend.
    patches = jnp.concatenate(
        [jnp.zeros((B, 1, PATCH_DIM), f32), patches], axis=1)
    patches = patches.reshape(B * SEQ, PATCH_DIM).astype(bf16)

    # Per-row additive table: cls rows get (cls + pos0); patch rows get (pos_s + bias).
    pos = params["pos_embed"][0]                                   # (SEQ, E)
    cls_row = params["cls_token"][0, 0] + pos[0]                   # (E,)
    addend_one = jnp.concatenate(
        [cls_row[None, :], pos[1:] + params["patch_b"][None, :]], axis=0)
    addend = jnp.tile(addend_one, (B, 1)).astype(f32)              # (B*SEQ, E)

    per_layer_keys = ["ln1_w", "ln1_b", "qkv_w", "qkv_b", "proj_w", "proj_b",
                      "ln2_w", "ln2_b", "fc1_w", "fc1_b", "fc2_w", "fc2_b"]

    args = [patches, params["patch_w"], addend]
    args += [params[k] for k in per_layer_keys]
    args += [params["norm_w"], params["norm_b"], params["head_w"], params["head_b"]]

    in_specs = [_const_spec(patches), _const_spec(params["patch_w"]), _const_spec(addend)]
    in_specs += [_layer_spec(params[k]) for k in per_layer_keys]
    in_specs += [_const_spec(params["norm_w"]), _const_spec(params["norm_b"]),
                 _const_spec(params["head_w"]), _const_spec(params["head_b"])]

    # Advisory cost estimate (scheduling hint; exact value not critical).
    flops = 2 * TOKENS * PATCH_DIM * EMBED
    flops += DEPTH * 2 * TOKENS * (4 * EMBED * EMBED + 2 * EMBED * MLP_HIDDEN)
    flops += DEPTH * 4 * BATCH * HEADS * SEQ * SEQ * HEAD_DIM
    flops += 2 * BATCH * EMBED * HEAD_PAD
    transcendentals = DEPTH * (BATCH * HEADS * SEQ * SEQ + TOKENS * MLP_HIDDEN)
    bytes_accessed = sum(int(a.size) * a.dtype.itemsize for a in args) + BATCH * HEAD_PAD * 4
    cost = pl.CostEstimate(flops=int(flops), transcendentals=int(transcendentals),
                           bytes_accessed=int(bytes_accessed))

    logits_padded = pl.pallas_call(
        _deit_block_kernel,
        out_shape=jax.ShapeDtypeStruct((BATCH, HEAD_PAD), jnp.float32),
        grid=(DEPTH,),
        in_specs=in_specs,
        out_specs=pl.BlockSpec((BATCH, HEAD_PAD), lambda l: (0, 0)),
        scratch_shapes=[pltpu.VMEM((TOKENS, EMBED), jnp.float32)],   # layer-to-layer carry
        compiler_params=pltpu.CompilerParams(
            dimension_semantics=("arbitrary",),
            vmem_limit_bytes=32 * 1024 * 1024),
        cost_estimate=cost,
    )(*args)

    return logits_padded[:, :NUM_CLASSES]


# ------------------------------- deterministic params -------------------------------
def init_params(key):
    keys = jax.random.split(key, 8)
    s = 0.02
    E, MH = EMBED, MLP_HIDDEN
    f32, bf16 = jnp.float32, jnp.bfloat16

    qkv_w = s * jax.random.normal(keys[3], (DEPTH, 3, E, E), f32)
    qkv_b = jnp.zeros((DEPTH, 3, 1, E), f32)
    # Fold the 1/sqrt(head_dim) attention scale into the q projection (identical to
    # scaling q at runtime).  NOTE: apply the same fold to any loaded checkpoint.
    qkv_w = qkv_w.at[:, 0].multiply(ATTN_SCALE)
    qkv_b = qkv_b.at[:, 0].multiply(ATTN_SCALE)

    # Lane-dense head: pad (E, NUM_CLASSES) -> (E, HEAD_PAD) with zeros.
    head_w = jnp.zeros((E, HEAD_PAD), f32).at[:, :NUM_CLASSES].set(
        s * jax.random.normal(keys[6], (E, NUM_CLASSES), f32))

    return dict(
        # matmul weights stored in bf16 once (MXU operands); LN/bias stay f32.
        patch_w=(s * jax.random.normal(keys[0], (PATCH_DIM, E), f32)).astype(bf16),
        patch_b=jnp.zeros((E,), f32),
        cls_token=s * jax.random.normal(keys[1], (1, 1, E), f32),
        pos_embed=s * jax.random.normal(keys[2], (1, SEQ, E), f32),
        ln1_w=jnp.ones((DEPTH, 1, E), f32),
        ln1_b=jnp.zeros((DEPTH, 1, E), f32),
        qkv_w=qkv_w.astype(bf16),
        qkv_b=qkv_b,
        proj_w=(s * jax.random.normal(keys[4], (DEPTH, E, E), f32)).astype(bf16),
        proj_b=jnp.zeros((DEPTH, 1, E), f32),
        ln2_w=jnp.ones((DEPTH, 1, E), f32),
        ln2_b=jnp.zeros((DEPTH, 1, E), f32),
        fc1_w=(s * jax.random.normal(keys[5], (DEPTH, E, MH), f32)).astype(bf16),
        fc1_b=jnp.zeros((DEPTH, 1, MH), f32),
        fc2_w=(s * jax.random.normal(keys[7], (DEPTH, MH, E), f32)).astype(bf16),
        fc2_b=jnp.zeros((DEPTH, 1, E), f32),
        norm_w=jnp.ones((1, E), f32),
        norm_b=jnp.zeros((1, E), f32),
        head_w=head_w.astype(bf16),
        head_b=jnp.zeros((1, HEAD_PAD), f32),
    )


# --------------------------------------- main ---------------------------------------
if __name__ == "__main__":
    root = jax.random.PRNGKey(0)
    x_key, p_key = jax.random.split(root)
    x = jax.random.normal(x_key, (BATCH, IN_CH, IMG, IMG), jnp.float32)
    params = init_params(p_key)

    fwd = jax.jit(deit_forward)
    out = fwd(x, params)
    out = jax.block_until_ready(out)

    assert out.shape == (BATCH, NUM_CLASSES), out.shape
    assert bool(jnp.all(jnp.isfinite(out)))
    print("KERNEL_OK")
</pallas_src>

<mosaic_0001>
module attributes {stable_mosaic.version = 11 : i64} {
  func.func @_deit_block_kernel(%arg0: i32, %arg1: memref<10x768xbf16, #tpu.memory_space<vmem>>, %arg2: memref<768x32xbf16, #tpu.memory_space<vmem>>, %arg3: memref<10x32xf32, #tpu.memory_space<vmem>>, %arg4: memref<1x1x32xf32, #tpu.memory_space<vmem>>, %arg5: memref<1x1x32xf32, #tpu.memory_space<vmem>>, %arg6: memref<1x3x32x32xbf16, #tpu.memory_space<vmem>>, %arg7: memref<1x3x1x32xf32, #tpu.memory_space<vmem>>, %arg8: memref<1x32x32xbf16, #tpu.memory_space<vmem>>, %arg9: memref<1x1x32xf32, #tpu.memory_space<vmem>>, %arg10: memref<1x1x32xf32, #tpu.memory_space<vmem>>, %arg11: memref<1x1x32xf32, #tpu.memory_space<vmem>>, %arg12: memref<1x32x128xbf16, #tpu.memory_space<vmem>>, %arg13: memref<1x1x128xf32, #tpu.memory_space<vmem>>, %arg14: memref<1x128x32xbf16, #tpu.memory_space<vmem>>, %arg15: memref<1x1x32xf32, #tpu.memory_space<vmem>>, %arg16: memref<1x32xf32, #tpu.memory_space<vmem>>, %arg17: memref<1x32xf32, #tpu.memory_space<vmem>>, %arg18: memref<32x128xbf16, #tpu.memory_space<vmem>>, %arg19: memref<1x128xf32, #tpu.memory_space<vmem>>, %arg20: memref<2x128xf32, #tpu.memory_space<vmem>>, %arg21: memref<10x32xf32, #tpu.memory_space<vmem>>) attributes {dimension_semantics = [#tpu.dimension_semantics<arbitrary>], iteration_bounds = array<i64: 2>, scalar_prefetch = 0 : i64, scratch_operands = 1 : i64, tpu.core_type = #tpu.core_type<tc>, window_params = [{pipeline_mode = #tpu.pipeline_mode<synchronous>, transform_indices = @transform_0, window_bounds = array<i64: 10, 768>}, {pipeline_mode = #tpu.pipeline_mode<synchronous>, transform_indices = @transform_1, window_bounds = array<i64: 768, 32>}, {pipeline_mode = #tpu.pipeline_mode<synchronous>, transform_indices = @transform_2, window_bounds = array<i64: 10, 32>}, {transform_indices = @transform_3, window_bounds = array<i64: 1, 1, 32>}, {transform_indices = @transform_4, window_bounds = array<i64: 1, 1, 32>}, {transform_indices = @transform_5, window_bounds = array<i64: 1, 3, 32, 32>}, {transform_indices = @transform_6, window_bounds = array<i64: 1, 3, 1, 32>}, {transform_indices = @transform_7, window_bounds = array<i64: 1, 32, 32>}, {transform_indices = @transform_8, window_bounds = array<i64: 1, 1, 32>}, {transform_indices = @transform_9, window_bounds = array<i64: 1, 1, 32>}, {transform_indices = @transform_10, window_bounds = array<i64: 1, 1, 32>}, {transform_indices = @transform_11, window_bounds = array<i64: 1, 32, 128>}, {transform_indices = @transform_12, window_bounds = array<i64: 1, 1, 128>}, {transform_indices = @transform_13, window_bounds = array<i64: 1, 128, 32>}, {transform_indices = @transform_14, window_bounds = array<i64: 1, 1, 32>}, {pipeline_mode = #tpu.pipeline_mode<synchronous>, transform_indices = @transform_15, window_bounds = array<i64: 1, 32>}, {pipeline_mode = #tpu.pipeline_mode<synchronous>, transform_indices = @transform_16, window_bounds = array<i64: 1, 32>}, {pipeline_mode = #tpu.pipeline_mode<synchronous>, transform_indices = @transform_17, window_bounds = array<i64: 32, 128>}, {pipeline_mode = #tpu.pipeline_mode<synchronous>, transform_indices = @transform_18, window_bounds = array<i64: 1, 128>}, {pipeline_mode = #tpu.pipeline_mode<synchronous>, transform_indices = @transform_19, window_bounds = array<i64: 2, 128>}]} {
    %c0_i32 = arith.constant 0 : i32
    %0 = arith.cmpi eq, %arg0, %c0_i32 : i32
    %1 = arith.extui %0 : i1 to i32
    %c0_i32_0 = arith.constant 0 : i32
    %2 = arith.cmpi ne, %1, %c0_i32_0 : i32
    scf.if %2 {
      %c0_80 = arith.constant 0 : index
      %c0_81 = arith.constant 0 : index
      %207 = vector.load %arg1[%c0_80, %c0_81] : memref<10x768xbf16, #tpu.memory_space<vmem>>, vector<10x768xbf16>
      %c0_82 = arith.constant 0 : index
      %c0_83 = arith.constant 0 : index
      %208 = vector.load %arg2[%c0_82, %c0_83] : memref<768x32xbf16, #tpu.memory_space<vmem>>, vector<768x32xbf16>
      %cst_84 = arith.constant dense<0.000000e+00> : vector<10x32xf32>
      %209 = tpu.matmul %207, %208, %cst_84 {dimension_numbers = #tpu.dot_dimension_numbers<[1], [0], [0], [1], [0, 0, 1, 1], [], []>} : vector<10x768xbf16>, vector<768x32xbf16>, vector<10x32xf32> -> vector<10x32xf32>
      %c0_85 = arith.constant 0 : index
      %c0_86 = arith.constant 0 : index
      %210 = vector.load %arg3[%c0_85, %c0_86] : memref<10x32xf32, #tpu.memory_space<vmem>>, vector<10x32xf32>
      %211 = arith.addf %209, %210 : vector<10x32xf32>
      %c0_87 = arith.constant 0 : index
      %c0_88 = arith.constant 0 : index
      %212 = vector.load %arg21[%c0_87, %c0_88] : memref<10x32xf32, #tpu.memory_space<vmem>>, vector<10x32xf32>
      tpu.vector_store %arg21[%c0_87, %c0_88], %211 {strides = array<i32>} : memref<10x32xf32, #tpu.memory_space<vmem>>, vector<10x32xf32>,
    } else {
    }
    %c0 = arith.constant 0 : index
    %c0_1 = arith.constant 0 : index
    %3 = vector.load %arg21[%c0, %c0_1] : memref<10x32xf32, #tpu.memory_space<vmem>>, vector<10x32xf32>
    %c0_2 = arith.constant 0 : index
    %c0_3 = arith.constant 0 : index
    %c0_4 = arith.constant 0 : index
    %4 = vector.load %arg4[%c0_2, %c0_3, %c0_4] : memref<1x1x32xf32, #tpu.memory_space<vmem>>, vector<1x1x32xf32>
    %5 = vector.shape_cast %4 : vector<1x1x32xf32> to vector<1x32xf32>
    %c0_5 = arith.constant 0 : index
    %c0_6 = arith.constant 0 : index
    %c0_7 = arith.constant 0 : index
    %6 = vector.load %arg5[%c0_5, %c0_6, %c0_7] : memref<1x1x32xf32, #tpu.memory_space<vmem>>, vector<1x1x32xf32>
    %7 = vector.shape_cast %6 : vector<1x1x32xf32> to vector<1x32xf32>
    %cst = arith.constant dense<0.000000e+00> : vector<10xf32>
    %8 = vector.multi_reduction <add>, %3, %cst [1] : vector<10x32xf32> to vector<10xf32>
    %9 = vector.shape_cast %8 : vector<10xf32> to vector<10x1xf32>
    %cst_8 = arith.constant 3.200000e+01 : f32
    %10 = vector.broadcast %cst_8 : f32 to vector<10x1xf32>
    %11 = arith.divf %9, %10 : vector<10x1xf32>
    %12 = vector.broadcast %11 : vector<10x1xf32> to vector<10x32xf32>
    %13 = arith.subf %3, %12 : vector<10x32xf32>
    %14 = arith.mulf %13, %13 : vector<10x32xf32>
    %cst_9 = arith.constant dense<0.000000e+00> : vector<10xf32>
    %15 = vector.multi_reduction <add>, %14, %cst_9 [1] : vector<10x32xf32> to vector<10xf32>
    %16 = vector.shape_cast %15 : vector<10xf32> to vector<10x1xf32>
    %cst_10 = arith.constant 3.200000e+01 : f32
    %17 = vector.broadcast %cst_10 : f32 to vector<10x1xf32>
    %18 = arith.divf %16, %17 : vector<10x1xf32>
    %19 = vector.broadcast %11 : vector<10x1xf32> to vector<10x32xf32>
    %20 = arith.subf %3, %19 : vector<10x32xf32>
    %cst_11 = arith.constant 9.99999997E-7 : f32
    %21 = vector.broadcast %cst_11 : f32 to vector<10x1xf32>
    %22 = arith.addf %18, %21 : vector<10x1xf32>
    %23 = math.rsqrt %22 : vector<10x1xf32>
    %24 = vector.broadcast %23 : vector<10x1xf32> to vector<10x32xf32>
    %25 = arith.mulf %20, %24 : vector<10x32xf32>
    %26 = vector.broadcast %5 : vector<1x32xf32> to vector<10x32xf32>
    %27 = arith.mulf %25, %26 : vector<10x32xf32>
    %28 = vector.broadcast %7 : vector<1x32xf32> to vector<10x32xf32>
    %29 = arith.addf %27, %28 : vector<10x32xf32>
    %30 = arith.truncf %29 : vector<10x32xf32> to vector<10x32xbf16>
    %c0_12 = arith.constant 0 : index
    %c0_13 = arith.constant 0 : index
    %c0_14 = arith.constant 0 : index
    %c0_15 = arith.constant 0 : index
    %31 = vector.load %arg6[%c0_12, %c0_13, %c0_14, %c0_15] : memref<1x3x32x32xbf16, #tpu.memory_space<vmem>>, vector<1x1x32x32xbf16>
    %32 = vector.shape_cast %31 : vector<1x1x32x32xbf16> to vector<32x32xbf16>
    %cst_16 = arith.constant dense<0.000000e+00> : vector<10x32xf32>
    %33 = tpu.matmul %30, %32, %cst_16 {dimension_numbers = #tpu.dot_dimension_numbers<[1], [0], [0], [1], [0, 0, 1, 1], [], []>} : vector<10x32xbf16>, vector<32x32xbf16>, vector<10x32xf32> -> vector<10x32xf32>
    %c0_17 = arith.constant 0 : index
    %c0_18 = arith.constant 0 : index
    %c0_19 = arith.constant 0 : index
    %c0_20 = arith.constant 0 : index
    %34 = vector.load %arg7[%c0_17, %c0_18, %c0_19, %c0_20] : memref<1x3x1x32xf32, #tpu.memory_space<vmem>>, vector<1x1x1x32xf32>
    %35 = vector.shape_cast %34 : vector<1x1x1x32xf32> to vector<1x32xf32>
    %36 = vector.broadcast %35 : vector<1x32xf32> to vector<10x32xf32>
    %37 = arith.addf %33, %36 : vector<10x32xf32>
    %c0_21 = arith.constant 0 : index
    %c1 = arith.constant 1 : index
    %c0_22 = arith.constant 0 : index
    %c0_23 = arith.constant 0 : index
    %38 = vector.load %arg6[%c0_21, %c1, %c0_22, %c0_23] : memref<1x3x32x32xbf16, #tpu.memory_space<vmem>>, vector<1x1x32x32xbf16>
    %39 = vector.shape_cast %38 : vector<1x1x32x32xbf16> to vector<32x32xbf16>
    %cst_24 = arith.constant dense<0.000000e+00> : vector<10x32xf32>
    %40 = tpu.matmul %30, %39, %cst_24 {dimension_numbers = #tpu.dot_dimension_numbers<[1], [0], [0], [1], [0, 0, 1, 1], [], []>} : vector<10x32xbf16>, vector<32x32xbf16>, vector<10x32xf32> -> vector<10x32xf32>
    %c0_25 = arith.constant 0 : index
    %c1_26 = arith.constant 1 : index
    %c0_27 = arith.constant 0 : index
    %c0_28 = arith.constant 0 : index
    %41 = vector.load %arg7[%c0_25, %c1_26, %c0_27, %c0_28] : memref<1x3x1x32xf32, #tpu.memory_space<vmem>>, vector<1x1x1x32xf32>
    %42 = vector.shape_cast %41 : vector<1x1x1x32xf32> to vector<1x32xf32>
    %43 = vector.broadcast %42 : vector<1x32xf32> to vector<10x32xf32>
    %44 = arith.addf %40, %43 : vector<10x32xf32>
    %c0_29 = arith.constant 0 : index
    %c2 = arith.constant 2 : index
    %c0_30 = arith.constant 0 : index
    %c0_31 = arith.constant 0 : index
    %45 = vector.load %arg6[%c0_29, %c2, %c0_30, %c0_31] : memref<1x3x32x32xbf16, #tpu.memory_space<vmem>>, vector<1x1x32x32xbf16>
    %46 = vector.shape_cast %45 : vector<1x1x32x32xbf16> to vector<32x32xbf16>
    %cst_32 = arith.constant dense<0.000000e+00> : vector<10x32xf32>
    %47 = tpu.matmul %30, %46, %cst_32 {dimension_numbers = #tpu.dot_dimension_numbers<[1], [0], [0], [1], [0, 0, 1, 1], [], []>} : vector<10x32xbf16>, vector<32x32xbf16>, vector<10x32xf32> -> vector<10x32xf32>
    %c0_33 = arith.constant 0 : index
    %c2_34 = arith.constant 2 : index
    %c0_35 = arith.constant 0 : index
    %c0_36 = arith.constant 0 : index
    %48 = vector.load %arg7[%c0_33, %c2_34, %c0_35, %c0_36] : memref<1x3x1x32xf32, #tpu.memory_space<vmem>>, vector<1x1x1x32xf32>
    %49 = vector.shape_cast %48 : vector<1x1x1x32xf32> to vector<1x32xf32>
    %50 = vector.broadcast %49 : vector<1x32xf32> to vector<10x32xf32>
    %51 = arith.addf %47, %50 : vector<10x32xf32>
    %52 = vector.extract_strided_slice %37 {offsets = [0, 0], sizes = [5, 8], strides = [1, 1]} : vector<10x32xf32> to vector<5x8xf32>
    %53 = vector.extract_strided_slice %37 {offsets = [5, 0], sizes = [5, 8], strides = [1, 1]} : vector<10x32xf32> to vector<5x8xf32>
    %54 = vector.extract_strided_slice %37 {offsets = [0, 8], sizes = [5, 8], strides = [1, 1]} : vector<10x32xf32> to vector<5x8xf32>
    %55 = vector.extract_strided_slice %37 {offsets = [5, 8], sizes = [5, 8], strides = [1, 1]} : vector<10x32xf32> to vector<5x8xf32>
    %56 = vector.extract_strided_slice %37 {offsets = [0, 16], sizes = [5, 8], strides = [1, 1]} : vector<10x32xf32> to vector<5x8xf32>
    %57 = vector.extract_strided_slice %37 {offsets = [5, 16], sizes = [5, 8], strides = [1, 1]} : vector<10x32xf32> to vector<5x8xf32>
    %58 = vector.extract_strided_slice %37 {offsets = [0, 24], sizes = [5, 8], strides = [1, 1]} : vector<10x32xf32> to vector<5x8xf32>
    %59 = vector.extract_strided_slice %37 {offsets = [5, 24], sizes = [5, 8], strides = [1, 1]} : vector<10x32xf32> to vector<5x8xf32>
    %60 = vector.shape_cast %52 : vector<5x8xf32> to vector<1x5x8xf32>
    %61 = vector.shape_cast %53 : vector<5x8xf32> to vector<1x5x8xf32>
    %62 = vector.shape_cast %54 : vector<5x8xf32> to vector<1x5x8xf32>
    %63 = vector.shape_cast %55 : vector<5x8xf32> to vector<1x5x8xf32>
    %64 = vector.shape_cast %56 : vector<5x8xf32> to vector<1x5x8xf32>
    %65 = vector.shape_cast %57 : vector<5x8xf32> to vector<1x5x8xf32>
    %66 = vector.shape_cast %58 : vector<5x8xf32> to vector<1x5x8xf32>
    %67 = vector.shape_cast %59 : vector<5x8xf32> to vector<1x5x8xf32>
    %68 = tpu.concatenate %60, %61, %62, %63, %64, %65, %66, %67 in 0 : vector<1x5x8xf32>, vector<1x5x8xf32>, vector<1x5x8xf32>, vector<1x5x8xf32>, vector<1x5x8xf32>, vector<1x5x8xf32>, vector<1x5x8xf32>, vector<1x5x8xf32> -> vector<8x5x8xf32>
    %69 = arith.truncf %68 : vector<8x5x8xf32> to vector<8x5x8xbf16>
    %70 = vector.extract_strided_slice %44 {offsets = [0, 0], sizes = [5, 8], strides = [1, 1]} : vector<10x32xf32> to vector<5x8xf32>
    %71 = vector.extract_strided_slice %44 {offsets = [5, 0], sizes = [5, 8], strides = [1, 1]} : vector<10x32xf32> to vector<5x8xf32>
    %72 = vector.extract_strided_slice %44 {offsets = [0, 8], sizes = [5, 8], strides = [1, 1]} : vector<10x32xf32> to vector<5x8xf32>
    %73 = vector.extract_strided_slice %44 {offsets = [5, 8], sizes = [5, 8], strides = [1, 1]} : vector<10x32xf32> to vector<5x8xf32>
    %74 = vector.extract_strided_slice %44 {offsets = [0, 16], sizes = [5, 8], strides = [1, 1]} : vector<10x32xf32> to vector<5x8xf32>
    %75 = vector.extract_strided_slice %44 {offsets = [5, 16], sizes = [5, 8], strides = [1, 1]} : vector<10x32xf32> to vector<5x8xf32>
    %76 = vector.extract_strided_slice %44 {offsets = [0, 24], sizes = [5, 8], strides = [1, 1]} : vector<10x32xf32> to vector<5x8xf32>
    %77 = vector.extract_strided_slice %44 {offsets = [5, 24], sizes = [5, 8], strides = [1, 1]} : vector<10x32xf32> to vector<5x8xf32>
    %78 = vector.shape_cast %70 : vector<5x8xf32> to vector<1x5x8xf32>
    %79 = vector.shape_cast %71 : vector<5x8xf32> to vector<1x5x8xf32>
    %80 = vector.shape_cast %72 : vector<5x8xf32> to vector<1x5x8xf32>
    %81 = vector.shape_cast %73 : vector<5x8xf32> to vector<1x5x8xf32>
    %82 = vector.shape_cast %74 : vector<5x8xf32> to vector<1x5x8xf32>
    %83 = vector.shape_cast %75 : vector<5x8xf32> to vector<1x5x8xf32>
    %84 = vector.shape_cast %76 : vector<5x8xf32> to vector<1x5x8xf32>
    %85 = vector.shape_cast %77 : vector<5x8xf32> to vector<1x5x8xf32>
    %86 = tpu.concatenate %78, %79, %80, %81, %82, %83, %84, %85 in 0 : vector<1x5x8xf32>, vector<1x5x8xf32>, vector<1x5x8xf32>, vector<1x5x8xf32>, vector<1x5x8xf32>, vector<1x5x8xf32>, vector<1x5x8xf32>, vector<1x5x8xf32> -> vector<8x5x8xf32>
    %87 = arith.truncf %86 : vector<8x5x8xf32> to vector<8x5x8xbf16>
    %88 = vector.extract_strided_slice %51 {offsets = [0, 0], sizes = [5, 8], strides = [1, 1]} : vector<10x32xf32> to vector<5x8xf32>
    %89 = vector.extract_strided_slice %51 {offsets = [5, 0], sizes = [5, 8], strides = [1, 1]} : vector<10x32xf32> to vector<5x8xf32>
    %90 = vector.extract_strided_slice %51 {offsets = [0, 8], sizes = [5, 8], strides = [1, 1]} : vector<10x32xf32> to vector<5x8xf32>
    %91 = vector.extract_strided_slice %51 {offsets = [5, 8], sizes = [5, 8], strides = [1, 1]} : vector<10x32xf32> to vector<5x8xf32>
    %92 = vector.extract_strided_slice %51 {offsets = [0, 16], sizes = [5, 8], strides = [1, 1]} : vector<10x32xf32> to vector<5x8xf32>
    %93 = vector.extract_strided_slice %51 {offsets = [5, 16], sizes = [5, 8], strides = [1, 1]} : vector<10x32xf32> to vector<5x8xf32>
    %94 = vector.extract_strided_slice %51 {offsets = [0, 24], sizes = [5, 8], strides = [1, 1]} : vector<10x32xf32> to vector<5x8xf32>
    %95 = vector.extract_strided_slice %51 {offsets = [5, 24], sizes = [5, 8], strides = [1, 1]} : vector<10x32xf32> to vector<5x8xf32>
    %96 = vector.shape_cast %88 : vector<5x8xf32> to vector<1x5x8xf32>
    %97 = vector.shape_cast %89 : vector<5x8xf32> to vector<1x5x8xf32>
    %98 = vector.shape_cast %90 : vector<5x8xf32> to vector<1x5x8xf32>
    %99 = vector.shape_cast %91 : vector<5x8xf32> to vector<1x5x8xf32>
    %100 = vector.shape_cast %92 : vector<5x8xf32> to vector<1x5x8xf32>
    %101 = vector.shape_cast %93 : vector<5x8xf32> to vector<1x5x8xf32>
    %102 = vector.shape_cast %94 : vector<5x8xf32> to vector<1x5x8xf32>
    %103 = vector.shape_cast %95 : vector<5x8xf32> to vector<1x5x8xf32>
    %104 = tpu.concatenate %96, %97, %98, %99, %100, %101, %102, %103 in 0 : vector<1x5x8xf32>, vector<1x5x8xf32>, vector<1x5x8xf32>, vector<1x5x8xf32>, vector<1x5x8xf32>, vector<1x5x8xf32>, vector<1x5x8xf32>, vector<1x5x8xf32> -> vector<8x5x8xf32>
    %105 = arith.truncf %104 : vector<8x5x8xf32> to vector<8x5x8xbf16>
    "tpu.trace_start"() <{level = 10 : i32, message = "bqd,bkd->bqk"}> : () -> ()
    %cst_37 = arith.constant dense<0.000000e+00> : vector<8x5x5xf32>
    %106 = tpu.matmul %69, %87, %cst_37 {dimension_numbers = #tpu.dot_dimension_numbers<[2], [2], [1], [1], [0, 0, 0, 1, 1, 1], [0], [0]>} : vector<8x5x8xbf16>, vector<8x5x8xbf16>, vector<8x5x5xf32> -> vector<8x5x5xf32>
    "tpu.trace_stop"() : () -> ()
    %cst_38 = arith.constant dense<0xFF800000> : vector<8x5xf32>
    %107 = vector.multi_reduction <maximumf>, %106, %cst_38 [2] : vector<8x5x5xf32> to vector<8x5xf32>
    %108 = vector.shape_cast %107 : vector<8x5xf32> to vector<8x5x1xf32>
    %109 = vector.broadcast %108 : vector<8x5x1xf32> to vector<8x5x5xf32>
    %110 = arith.subf %106, %109 : vector<8x5x5xf32>
    %111 = math.exp %110 : vector<8x5x5xf32>
    %cst_39 = arith.constant dense<0.000000e+00> : vector<8x5xf32>
    %112 = vector.multi_reduction <add>, %111, %cst_39 [2] : vector<8x5x5xf32> to vector<8x5xf32>
    %113 = vector.shape_cast %112 : vector<8x5xf32> to vector<8x5x1xf32>
    %114 = tpu.reciprocal %113 {approx = true} : vector<8x5x1xf32> -> vector<8x5x1xf32>
    %115 = vector.broadcast %114 : vector<8x5x1xf32> to vector<8x5x5xf32>
    %116 = arith.mulf %111, %115 : vector<8x5x5xf32>
    %117 = arith.truncf %116 : vector<8x5x5xf32> to vector<8x5x5xbf16>
    "tpu.trace_start"() <{level = 10 : i32, message = "bqk,bkd->bqd"}> : () -> ()
    %cst_40 = arith.constant dense<0.000000e+00> : vector<8x5x8xf32>
    %118 = tpu.matmul %117, %105, %cst_40 {dimension_numbers = #tpu.dot_dimension_numbers<[2], [1], [1], [2], [0, 0, 0, 1, 1, 2], [0], [0]>} : vector<8x5x5xbf16>, vector<8x5x8xbf16>, vector<8x5x8xf32> -> vector<8x5x8xf32>
    "tpu.trace_stop"() : () -> ()
    %119 = vector.extract_strided_slice %118 {offsets = [0, 0, 0], sizes = [1, 5, 8], strides = [1, 1, 1]} : vector<8x5x8xf32> to vector<1x5x8xf32>
    %120 = vector.shape_cast %119 : vector<1x5x8xf32> to vector<5x8xf32>
    %121 = vector.extract_strided_slice %118 {offsets = [2, 0, 0], sizes = [1, 5, 8], strides = [1, 1, 1]} : vector<8x5x8xf32> to vector<1x5x8xf32>
    %122 = vector.shape_cast %121 : vector<1x5x8xf32> to vector<5x8xf32>
    %123 = vector.extract_strided_slice %118 {offsets = [4, 0, 0], sizes = [1, 5, 8], strides = [1, 1, 1]} : vector<8x5x8xf32> to vector<1x5x8xf32>
    %124 = vector.shape_cast %123 : vector<1x5x8xf32> to vector<5x8xf32>
    %125 = vector.extract_strided_slice %118 {offsets = [6, 0, 0], sizes = [1, 5, 8], strides = [1, 1, 1]} : vector<8x5x8xf32> to vector<1x5x8xf32>
    %126 = vector.shape_cast %125 : vector<1x5x8xf32> to vector<5x8xf32>
    %127 = tpu.concatenate %120, %122, %124, %126 in 1 : vector<5x8xf32>, vector<5x8xf32>, vector<5x8xf32>, vector<5x8xf32> -> vector<5x32xf32>
    %128 = vector.extract_strided_slice %118 {offsets = [1, 0, 0], sizes = [1, 5, 8], strides = [1, 1, 1]} : vector<8x5x8xf32> to vector<1x5x8xf32>
    %129 = vector.shape_cast %128 : vector<1x5x8xf32> to vector<5x8xf32>
    %130 = vector.extract_strided_slice %118 {offsets = [3, 0, 0], sizes = [1, 5, 8], strides = [1, 1, 1]} : vector<8x5x8xf32> to vector<1x5x8xf32>
    %131 = vector.shape_cast %130 : vector<1x5x8xf32> to vector<5x8xf32>
    %132 = vector.extract_strided_slice %118 {offsets = [5, 0, 0], sizes = [1, 5, 8], strides = [1, 1, 1]} : vector<8x5x8xf32> to vector<1x5x8xf32>
    %133 = vector.shape_cast %132 : vector<1x5x8xf32> to vector<5x8xf32>
    %134 = vector.extract_strided_slice %118 {offsets = [7, 0, 0], sizes = [1, 5, 8], strides = [1, 1, 1]} : vector<8x5x8xf32> to vector<1x5x8xf32>
    %135 = vector.shape_cast %134 : vector<1x5x8xf32> to vector<5x8xf32>
    %136 = tpu.concatenate %129, %131, %133, %135 in 1 : vector<5x8xf32>, vector<5x8xf32>, vector<5x8xf32>, vector<5x8xf32> -> vector<5x32xf32>
    %137 = tpu.concatenate %127, %136 in 0 : vector<5x32xf32>, vector<5x32xf32> -> vector<10x32xf32>
    %138 = arith.truncf %137 : vector<10x32xf32> to vector<10x32xbf16>
    %c0_41 = arith.constant 0 : index
    %c0_42 = arith.constant 0 : index
    %c0_43 = arith.constant 0 : index
    %139 = vector.load %arg8[%c0_41, %c0_42, %c0_43] : memref<1x32x32xbf16, #tpu.memory_space<vmem>>, vector<1x32x32xbf16>
    %140 = vector.shape_cast %139 : vector<1x32x32xbf16> to vector<32x32xbf16>
    %cst_44 = arith.constant dense<0.000000e+00> : vector<10x32xf32>
    %141 = tpu.matmul %138, %140, %cst_44 {dimension_numbers = #tpu.dot_dimension_numbers<[1], [0], [0], [1], [0, 0, 1, 1], [], []>} : vector<10x32xbf16>, vector<32x32xbf16>, vector<10x32xf32> -> vector<10x32xf32>
    %142 = arith.addf %3, %141 : vector<10x32xf32>
    %c0_45 = arith.constant 0 : index
    %c0_46 = arith.constant 0 : index
    %c0_47 = arith.constant 0 : index
    %143 = vector.load %arg9[%c0_45, %c0_46, %c0_47] : memref<1x1x32xf32, #tpu.memory_space<vmem>>, vector<1x1x32xf32>
    %144 = vector.shape_cast %143 : vector<1x1x32xf32> to vector<1x32xf32>
    %145 = vector.broadcast %144 : vector<1x32xf32> to vector<10x32xf32>
    %146 = arith.addf %142, %145 : vector<10x32xf32>
    %c0_48 = arith.constant 0 : index
    %c0_49 = arith.constant 0 : index
    %c0_50 = arith.constant 0 : index
    %147 = vector.load %arg10[%c0_48, %c0_49, %c0_50] : memref<1x1x32xf32, #tpu.memory_space<vmem>>, vector<1x1x32xf32>
    %148 = vector.shape_cast %147 : vector<1x1x32xf32> to vector<1x32xf32>
    %c0_51 = arith.constant 0 : index
    %c0_52 = arith.constant 0 : index
    %c0_53 = arith.constant 0 : index
    %149 = vector.load %arg11[%c0_51, %c0_52, %c0_53] : memref<1x1x32xf32, #tpu.memory_space<vmem>>, vector<1x1x32xf32>
    %150 = vector.shape_cast %149 : vector<1x1x32xf32> to vector<1x32xf32>
    %cst_54 = arith.constant dense<0.000000e+00> : vector<10xf32>
    %151 = vector.multi_reduction <add>, %146, %cst_54 [1] : vector<10x32xf32> to vector<10xf32>
    %152 = vector.shape_cast %151 : vector<10xf32> to vector<10x1xf32>
    %cst_55 = arith.constant 3.200000e+01 : f32
    %153 = vector.broadcast %cst_55 : f32 to vector<10x1xf32>
    %154 = arith.divf %152, %153 : vector<10x1xf32>
    %155 = vector.broadcast %154 : vector<10x1xf32> to vector<10x32xf32>
    %156 = arith.subf %146, %155 : vector<10x32xf32>
    %157 = arith.mulf %156, %156 : vector<10x32xf32>
    %cst_56 = arith.constant dense<0.000000e+00> : vector<10xf32>
    %158 = vector.multi_reduction <add>, %157, %cst_56 [1] : vector<10x32xf32> to vector<10xf32>
    %159 = vector.shape_cast %158 : vector<10xf32> to vector<10x1xf32>
    %cst_57 = arith.constant 3.200000e+01 : f32
    %160 = vector.broadcast %cst_57 : f32 to vector<10x1xf32>
    %161 = arith.divf %159, %160 : vector<10x1xf32>
    %162 = vector.broadcast %154 : vector<10x1xf32> to vector<10x32xf32>
    %163 = arith.subf %146, %162 : vector<10x32xf32>
    %cst_58 = arith.constant 9.99999997E-7 : f32
    %164 = vector.broadcast %cst_58 : f32 to vector<10x1xf32>
    %165 = arith.addf %161, %164 : vector<10x1xf32>
    %166 = math.rsqrt %165 : vector<10x1xf32>
    %167 = vector.broadcast %166 : vector<10x1xf32> to vector<10x32xf32>
    %168 = arith.mulf %163, %167 : vector<10x32xf32>
    %169 = vector.broadcast %148 : vector<1x32xf32> to vector<10x32xf32>
    %170 = arith.mulf %168, %169 : vector<10x32xf32>
    %171 = vector.broadcast %150 : vector<1x32xf32> to vector<10x32xf32>
    %172 = arith.addf %170, %171 : vector<10x32xf32>
    %173 = arith.truncf %172 : vector<10x32xf32> to vector<10x32xbf16>
    %c0_59 = arith.constant 0 : index
    %c0_60 = arith.constant 0 : index
    %c0_61 = arith.constant 0 : index
    %174 = vector.load %arg12[%c0_59, %c0_60, %c0_61] : memref<1x32x128xbf16, #tpu.memory_space<vmem>>, vector<1x32x128xbf16>
    %175 = vector.shape_cast %174 : vector<1x32x128xbf16> to vector<32x128xbf16>
    %cst_62 = arith.constant dense<0.000000e+00> : vector<10x128xf32>
    %176 = tpu.matmul %173, %175, %cst_62 {dimension_numbers = #tpu.dot_dimension_numbers<[1], [0], [0], [1], [0, 0, 1, 1], [], []>} : vector<10x32xbf16>, vector<32x128xbf16>, vector<10x128xf32> -> vector<10x128xf32>
    %c0_63 = arith.constant 0 : index
    %c0_64 = arith.constant 0 : index
    %c0_65 = arith.constant 0 : index
    %177 = vector.load %arg13[%c0_63, %c0_64, %c0_65] : memref<1x1x128xf32, #tpu.memory_space<vmem>>, vector<1x1x128xf32>
    %178 = vector.shape_cast %177 : vector<1x1x128xf32> to vector<1x128xf32>
    %179 = vector.broadcast %178 : vector<1x128xf32> to vector<10x128xf32>
    %180 = arith.addf %176, %179 : vector<10x128xf32>
    %181 = arith.mulf %180, %180 : vector<10x128xf32>
    %182 = arith.mulf %180, %181 : vector<10x128xf32>
    %cst_66 = arith.constant 4.471500e-02 : f32
    %183 = vector.broadcast %cst_66 : f32 to vector<10x128xf32>
    %184 = arith.mulf %183, %182 : vector<10x128xf32>
    %185 = arith.addf %180, %184 : vector<10x128xf32>
    %cst_67 = arith.constant 0.797884583 : f32
    %186 = vector.broadcast %cst_67 : f32 to vector<10x128xf32>
    %187 = arith.mulf %186, %185 : vector<10x128xf32>
    %188 = math.tanh %187 : vector<10x128xf32>
    %cst_68 = arith.constant 1.000000e+00 : f32
    %189 = vector.broadcast %cst_68 : f32 to vector<10x128xf32>
    %190 = arith.addf %189, %188 : vector<10x128xf32>
    %cst_69 = arith.constant 5.000000e-01 : f32
    %191 = vector.broadcast %cst_69 : f32 to vector<10x128xf32>
    %192 = arith.mulf %191, %190 : vector<10x128xf32>
    %193 = arith.mulf %180, %192 : vector<10x128xf32>
    %194 = arith.truncf %193 : vector<10x128xf32> to vector<10x128xbf16>
    %c0_70 = arith.constant 0 : index
    %c0_71 = arith.constant 0 : index
    %c0_72 = arith.constant 0 : index
    %195 = vector.load %arg14[%c0_70, %c0_71, %c0_72] : memref<1x128x32xbf16, #tpu.memory_space<vmem>>, vector<1x128x32xbf16>
    %196 = vector.shape_cast %195 : vector<1x128x32xbf16> to vector<128x32xbf16>
    %cst_73 = arith.constant dense<0.000000e+00> : vector<10x32xf32>
    %197 = tpu.matmul %194, %196, %cst_73 {dimension_numbers = #tpu.dot_dimension_numbers<[1], [0], [0], [1], [0, 0, 1, 1], [], []>} : vector<10x128xbf16>, vector<128x32xbf16>, vector<10x32xf32> -> vector<10x32xf32>
    %198 = arith.addf %146, %197 : vector<10x32xf32>
    %c0_74 = arith.constant 0 : index
    %c0_75 = arith.constant 0 : index
    %c0_76 = arith.constant 0 : index
    %199 = vector.load %arg15[%c0_74, %c0_75, %c0_76] : memref<1x1x32xf32, #tpu.memory_space<vmem>>, vector<1x1x32xf32>
    %200 = vector.shape_cast %199 : vector<1x1x32xf32> to vector<1x32xf32>
    %201 = vector.broadcast %200 : vector<1x32xf32> to vector<10x32xf32>
    %202 = arith.addf %198, %201 : vector<10x32xf32>
    %c0_77 = arith.constant 0 : index
    %c0_78 = arith.constant 0 : index
    %203 = vector.load %arg21[%c0_77, %c0_78] : memref<10x32xf32, #tpu.memory_space<vmem>>, vector<10x32xf32>
    tpu.vector_store %arg21[%c0_77, %c0_78], %202 {strides = array<i32>} : memref<10x32xf32, #tpu.memory_space<vmem>>, vector<10x32xf32>,
    %c1_i32 = arith.constant 1 : i32
    %204 = arith.cmpi eq, %arg0, %c1_i32 : i32
    %205 = arith.extui %204 : i1 to i32
    %c0_i32_79 = arith.constant 0 : i32
    %206 = arith.cmpi ne, %205, %c0_i32_79 : i32
    scf.if %206 {
      %207 = vector.extract_strided_slice %202 {offsets = [0, 0], sizes = [1, 32], strides = [1, 1]} : vector<10x32xf32> to vector<1x32xf32>
      %208 = vector.extract_strided_slice %202 {offsets = [5, 0], sizes = [1, 32], strides = [1, 1]} : vector<10x32xf32> to vector<1x32xf32>
      %209 = tpu.concatenate %207, %208 in 0 : vector<1x32xf32>, vector<1x32xf32> -> vector<2x32xf32>
      %c0_80 = arith.constant 0 : index
      %c0_81 = arith.constant 0 : index
      %210 = vector.load %arg16[%c0_80, %c0_81] : memref<1x32xf32, #tpu.memory_space<vmem>>, vector<1x32xf32>
      %c0_82 = arith.constant 0 : index
      %c0_83 = arith.constant 0 : index
      %211 = vector.load %arg17[%c0_82, %c0_83] : memref<1x32xf32, #tpu.memory_space<vmem>>, vector<1x32xf32>
      %cst_84 = arith.constant dense<0.000000e+00> : vector<2xf32>
      %212 = vector.multi_reduction <add>, %209, %cst_84 [1] : vector<2x32xf32> to vector<2xf32>
      %213 = vector.shape_cast %212 : vector<2xf32> to vector<2x1xf32>
      %cst_85 = arith.constant 3.200000e+01 : f32
      %214 = vector.broadcast %cst_85 : f32 to vector<2x1xf32>
      %215 = arith.divf %213, %214 : vector<2x1xf32>
      %216 = vector.broadcast %215 : vector<2x1xf32> to vector<2x32xf32>
      %217 = arith.subf %209, %216 : vector<2x32xf32>
      %218 = arith.mulf %217, %217 : vector<2x32xf32>
      %cst_86 = arith.constant dense<0.000000e+00> : vector<2xf32>
      %219 = vector.multi_reduction <add>, %218, %cst_86 [1] : vector<2x32xf32> to vector<2xf32>
      %220 = vector.shape_cast %219 : vector<2xf32> to vector<2x1xf32>
      %cst_87 = arith.constant 3.200000e+01 : f32
      %221 = vector.broadcast %cst_87 : f32 to vector<2x1xf32>
      %222 = arith.divf %220, %221 : vector<2x1xf32>
      %223 = vector.broadcast %215 : vector<2x1xf32> to vector<2x32xf32>
      %224 = arith.subf %209, %223 : vector<2x32xf32>
      %cst_88 = arith.constant 9.99999997E-7 : f32
      %225 = vector.broadcast %cst_88 : f32 to vector<2x1xf32>
      %226 = arith.addf %222, %225 : vector<2x1xf32>
      %227 = math.rsqrt %226 : vector<2x1xf32>
      %228 = vector.broadcast %227 : vector<2x1xf32> to vector<2x32xf32>
      %229 = arith.mulf %224, %228 : vector<2x32xf32>
      %230 = vector.broadcast %210 : vector<1x32xf32> to vector<2x32xf32>
      %231 = arith.mulf %229, %230 : vector<2x32xf32>
      %232 = vector.broadcast %211 : vector<1x32xf32> to vector<2x32xf32>
      %233 = arith.addf %231, %232 : vector<2x32xf32>
      %234 = arith.truncf %233 : vector<2x32xf32> to vector<2x32xbf16>
      %c0_89 = arith.constant 0 : index
      %c0_90 = arith.constant 0 : index
      %235 = vector.load %arg18[%c0_89, %c0_90] : memref<32x128xbf16, #tpu.memory_space<vmem>>, vector<32x128xbf16>
      %cst_91 = arith.constant dense<0.000000e+00> : vector<2x128xf32>
      %236 = tpu.matmul %234, %235, %cst_91 {dimension_numbers = #tpu.dot_dimension_numbers<[1], [0], [0], [1], [0, 0, 1, 1], [], []>} : vector<2x32xbf16>, vector<32x128xbf16>, vector<2x128xf32> -> vector<2x128xf32>
      %c0_92 = arith.constant 0 : index
      %c0_93 = arith.constant 0 : index
      %237 = vector.load %arg19[%c0_92, %c0_93] : memref<1x128xf32, #tpu.memory_space<vmem>>, vector<1x128xf32>
      %238 = vector.broadcast %237 : vector<1x128xf32> to vector<2x128xf32>
      %239 = arith.addf %236, %238 : vector<2x128xf32>
      %c0_94 = arith.constant 0 : index
      %c0_95 = arith.constant 0 : index
      %240 = vector.load %arg20[%c0_94, %c0_95] : memref<2x128xf32, #tpu.memory_space<vmem>>, vector<2x128xf32>
      tpu.vector_store %arg20[%c0_94, %c0_95], %239 {strides = array<i32>} : memref<2x128xf32, #tpu.memory_space<vmem>>, vector<2x128xf32>,
    } else {
    }
    return
  }
  func.func @transform_0(%arg0: i32) -> (i32, i32) {
    %c0_i32 = arith.constant 0 : i32
    %c0_i32_0 = arith.constant 0 : i32
    %c0_i32_1 = arith.constant 0 : i32
    return %c0_i32, %c0_i32_0 : i32, i32
  }
  func.func @transform_1(%arg0: i32) -> (i32, i32) {
    %c0_i32 = arith.constant 0 : i32
    %c0_i32_0 = arith.constant 0 : i32
    %c0_i32_1 = arith.constant 0 : i32
    return %c0_i32, %c0_i32_0 : i32, i32
  }
  func.func @transform_2(%arg0: i32) -> (i32, i32) {
    %c0_i32 = arith.constant 0 : i32
    %c0_i32_0 = arith.constant 0 : i32
    %c0_i32_1 = arith.constant 0 : i32
    return %c0_i32, %c0_i32_0 : i32, i32
  }
  func.func @transform_3(%arg0: i32) -> (i32, i32, i32) {
    %c0_i32 = arith.constant 0 : i32
    %c0_i32_0 = arith.constant 0 : i32
    %c0_i32_1 = arith.constant 0 : i32
    return %arg0, %c0_i32, %c0_i32_0 : i32, i32, i32
  }
  func.func @transform_4(%arg0: i32) -> (i32, i32, i32) {
    %c0_i32 = arith.constant 0 : i32
    %c0_i32_0 = arith.constant 0 : i32
    %c0_i32_1 = arith.constant 0 : i32
    return %arg0, %c0_i32, %c0_i32_0 : i32, i32, i32
  }
  func.func @transform_5(%arg0: i32) -> (i32, i32, i32, i32) {
    %c0_i32 = arith.constant 0 : i32
    %c0_i32_0 = arith.constant 0 : i32
    %c0_i32_1 = arith.constant 0 : i32
    %c0_i32_2 = arith.constant 0 : i32
    return %arg0, %c0_i32, %c0_i32_0, %c0_i32_1 : i32, i32, i32, i32
  }
  func.func @transform_6(%arg0: i32) -> (i32, i32, i32, i32) {
    %c0_i32 = arith.constant 0 : i32
    %c0_i32_0 = arith.constant 0 : i32
    %c0_i32_1 = arith.constant 0 : i32
    %c0_i32_2 = arith.constant 0 : i32
    return %arg0, %c0_i32, %c0_i32_0, %c0_i32_1 : i32, i32, i32, i32
  }
  func.func @transform_7(%arg0: i32) -> (i32, i32, i32) {
    %c0_i32 = arith.constant 0 : i32
    %c0_i32_0 = arith.constant 0 : i32
    %c0_i32_1 = arith.constant 0 : i32
    return %arg0, %c0_i32, %c0_i32_0 : i32, i32, i32
  }
  func.func @transform_8(%arg0: i32) -> (i32, i32, i32) {
    %c0_i32 = arith.constant 0 : i32
    %c0_i32_0 = arith.constant 0 : i32
    %c0_i32_1 = arith.constant 0 : i32
    return %arg0, %c0_i32, %c0_i32_0 : i32, i32, i32
  }
  func.func @transform_9(%arg0: i32) -> (i32, i32, i32) {
    %c0_i32 = arith.constant 0 : i32
    %c0_i32_0 = arith.constant 0 : i32
    %c0_i32_1 = arith.constant 0 : i32
    return %arg0, %c0_i32, %c0_i32_0 : i32, i32, i32
  }
  func.func @transform_10(%arg0: i32) -> (i32, i32, i32) {
    %c0_i32 = arith.constant 0 : i32
    %c0_i32_0 = arith.constant 0 : i32
    %c0_i32_1 = arith.constant 0 : i32
    return %arg0, %c0_i32, %c0_i32_0 : i32, i32, i32
  }
  func.func @transform_11(%arg0: i32) -> (i32, i32, i32) {
    %c0_i32 = arith.constant 0 : i32
    %c0_i32_0 = arith.constant 0 : i32
    %c0_i32_1 = arith.constant 0 : i32
    return %arg0, %c0_i32, %c0_i32_0 : i32, i32, i32
  }
  func.func @transform_12(%arg0: i32) -> (i32, i32, i32) {
    %c0_i32 = arith.constant 0 : i32
    %c0_i32_0 = arith.constant 0 : i32
    %c0_i32_1 = arith.constant 0 : i32
    return %arg0, %c0_i32, %c0_i32_0 : i32, i32, i32
  }
  func.func @transform_13(%arg0: i32) -> (i32, i32, i32) {
    %c0_i32 = arith.constant 0 : i32
    %c0_i32_0 = arith.constant 0 : i32
    %c0_i32_1 = arith.constant 0 : i32
    return %arg0, %c0_i32, %c0_i32_0 : i32, i32, i32
  }
  func.func @transform_14(%arg0: i32) -> (i32, i32, i32) {
    %c0_i32 = arith.constant 0 : i32
    %c0_i32_0 = arith.constant 0 : i32
    %c0_i32_1 = arith.constant 0 : i32
    return %arg0, %c0_i32, %c0_i32_0 : i32, i32, i32
  }
  func.func @transform_15(%arg0: i32) -> (i32, i32) {
    %c0_i32 = arith.constant 0 : i32
    %c0_i32_0 = arith.constant 0 : i32
    %c0_i32_1 = arith.constant 0 : i32
    return %c0_i32, %c0_i32_0 : i32, i32
  }
  func.func @transform_16(%arg0: i32) -> (i32, i32) {
    %c0_i32 = arith.constant 0 : i32
    %c0_i32_0 = arith.constant 0 : i32
    %c0_i32_1 = arith.constant 0 : i32
    return %c0_i32, %c0_i32_0 : i32, i32
  }
  func.func @transform_17(%arg0: i32) -> (i32, i32) {
    %c0_i32 = arith.constant 0 : i32
    %c0_i32_0 = arith.constant 0 : i32
    %c0_i32_1 = arith.constant 0 : i32
    return %c0_i32, %c0_i32_0 : i32, i32
  }
  func.func @transform_18(%arg0: i32) -> (i32, i32) {
    %c0_i32 = arith.constant 0 : i32
    %c0_i32_0 = arith.constant 0 : i32
    %c0_i32_1 = arith.constant 0 : i32
    return %c0_i32, %c0_i32_0 : i32, i32
  }
  func.func @transform_19(%arg0: i32) -> (i32, i32) {
    %c0_i32 = arith.constant 0 : i32
    %c0_i32_0 = arith.constant 0 : i32
    %c0_i32_1 = arith.constant 0 : i32
    return %c0_i32, %c0_i32_0 : i32, i32
  }
}

</mosaic_0001>

<llo_original>
// kernel: tile.9
$region0: #{tile.9}
  %s0 = inlined_call_operand.vmem [shape: f32[2,5,32], index: 0, kind: input, shape index: {}]
  %s1 = inlined_call_operand.vmem [shape: f32[10,32], index: 1, kind: output, shape index: {}]
  %v2 = vld [vmem:[%s0] sm:$0x1f]
  %vm3 = vcmask 261120
  %4 = vst.msk [vmem:[%s1] sm:$0x1f] %vm3, %v2
  %s5 = scalar_lea.vmem %s0, 8
  %v6 = vld [vmem:[%s5] sm:$0x1f]
  %vm7 = vcmask 261120
  %s8 = scalar_lea.vmem %s1, 5
  %9 = vst.msk [vmem:[%s8] sm:$0x1f] %vm7, %v6

// kernel: deit_forward.1
$region0: #{deit_forward.1}
  #allocation0 [shape = 'u32[]', space=smem, size = 0x4, offset = 0x4, fixed_abs, tag = 'smem constant byte address 0x4 - core index']
  #allocation1 [shape = 'u32[144,128]{1,0:T(1,128)}', space=vmem, size = 0x12000, scoped, tag = 'internal scratch']
  #allocation2 [shape = 'f32[10,32]{1,0:T(8,128)}', space=vmem, size = 0x2000, scoped, tag = 'scratch operand']
  %s0 = inlined_call_operand.vmem [shape: bf16[10,768], index: 0, kind: input, shape index: {}]
  %s1 = inlined_call_operand.vmem [shape: bf16[768,32], index: 1, kind: input, shape index: {}]
  %s2 = inlined_call_operand.vmem [shape: f32[10,32], index: 2, kind: input, shape index: {}]
  %s3 = inlined_call_operand.vmem [shape: f32[2,1,32], index: 3, kind: input, shape index: {}]
  %s4 = inlined_call_operand.vmem [shape: f32[2,1,32], index: 4, kind: input, shape index: {}]
  %s5 = inlined_call_operand.vmem [shape: bf16[2,3,32,32], index: 5, kind: input, shape index: {}]
  %s6 = inlined_call_operand.vmem [shape: f32[2,3,1,32], index: 6, kind: input, shape index: {}]
  %s7 = inlined_call_operand.vmem [shape: bf16[2,32,32], index: 7, kind: input, shape index: {}]
  %s8 = inlined_call_operand.vmem [shape: f32[2,1,32], index: 8, kind: input, shape index: {}]
  %s9 = inlined_call_operand.vmem [shape: f32[2,1,32], index: 9, kind: input, shape index: {}]
  %s10 = inlined_call_operand.vmem [shape: f32[2,1,32], index: 10, kind: input, shape index: {}]
  %s11 = inlined_call_operand.vmem [shape: bf16[2,32,128], index: 11, kind: input, shape index: {}]
  %s12 = inlined_call_operand.vmem [shape: f32[2,1,128], index: 12, kind: input, shape index: {}]
  %s13 = inlined_call_operand.vmem [shape: bf16[2,128,32], index: 13, kind: input, shape index: {}]
  %s14 = inlined_call_operand.vmem [shape: f32[2,1,32], index: 14, kind: input, shape index: {}]
  %s15 = inlined_call_operand.vmem [shape: f32[1,32], index: 15, kind: input, shape index: {}]
  %s16 = inlined_call_operand.vmem [shape: f32[1,32], index: 16, kind: input, shape index: {}]
  %s17 = inlined_call_operand.vmem [shape: bf16[32,128], index: 17, kind: input, shape index: {}]
  %s18 = inlined_call_operand.vmem [shape: f32[1,128], index: 18, kind: input, shape index: {}]
  %s19 = inlined_call_operand.hbm [shape: f32[2,128], index: 19, kind: output, shape index: {}]
  %s20 = sld [smem:[#allocation0]]
  $region117: #{deit_forward.1} parent=0
    _
  %s22 = ssub.s32 1, %s20
  %s23 = scalar_select 0, %s22, %s20
  $region1: #{deit_forward.1} parent=0
    #allocation3 [shape = 'u8[1024]{0}', space=vmem, size = 0x400, scoped, tag = 'output window, operand 0, single buffered']
    #allocation4 [shape = 's32[2]{0}', space=sflag, size = 0x8, scoped, tag = 'scoped memory for deit_forward.1']
    %24 = vsyncpa [#allocation4], 0
    loop: start=0, step=1, limit=4
    $region2: #{deit_forward.1} parent=1 // loop_pre_header
      _
    $region3: #{deit_forward.1} parent=1 // loop_header
      %s26 = sphi 0, %s30
      %p27 = scmp.ge.s32.totalorder %s26, 4
      %s34 = sphi 0, %s34
      %s36 = sphi 0, %s34
      %s37 = sphi 0, %s36
      %s51 = sphi 0, %s37
      %s55 = sphi 0, %s55
      %s57 = sphi 0, %s55
      %s58 = sphi 0, %s57
      %s72 = sphi 0, %s58
      %s76 = sphi 0, %s76
      %s78 = sphi 0, %s76
      %s79 = sphi 0, %s78
      %s93 = sphi 0, %s79
      %s99 = sphi 0, %s101
      %s102 = sphi 0, %s99
      %s103 = sphi 0, %s102
      %s119 = sphi 0, %s103
      %s125 = sphi 0, %s127
      %s128 = sphi 0, %s125
      %s129 = sphi 0, %s128
      %s145 = sphi 0, %s129
      %s151 = sphi 0, %s153
      %s154 = sphi 0, %s151
      %s155 = sphi 0, %s154
      %s171 = sphi 0, %s155
      %s177 = sphi 0, %s179
      %s180 = sphi 0, %s177
      %s181 = sphi 0, %s180
      %s197 = sphi 0, %s181
      %s203 = sphi 0, %s205
      %s206 = sphi 0, %s203
      %s207 = sphi 0, %s206
      %s223 = sphi 0, %s207
      %s229 = sphi 0, %s231
      %s232 = sphi 0, %s229
      %s233 = sphi 0, %s232
      %s249 = sphi 0, %s233
      %s255 = sphi 0, %s257
      %s258 = sphi 0, %s255
      %s259 = sphi 0, %s258
      %s275 = sphi 0, %s259
      %s281 = sphi 0, %s283
      %s284 = sphi 0, %s281
      %s285 = sphi 0, %s284
      %s301 = sphi 0, %s285
      %s307 = sphi 0, %s309
      %s310 = sphi 0, %s307
      %s311 = sphi 0, %s310
      %s327 = sphi 0, %s311
      %s333 = sphi 0, %s335
      %s336 = sphi 0, %s333
      %s337 = sphi 0, %s336
      %s353 = sphi 0, %s337
      %s359 = sphi 0, %s361
      %s362 = sphi 0, %s359
      %s363 = sphi 0, %s362
      %s379 = sphi 0, %s363
      %s385 = sphi 0, %s387
      %s388 = sphi 0, %s385
      %s389 = sphi 0, %s388
      %s405 = sphi 0, %s389
      %s409 = sphi 0, %s409
      %s411 = sphi 0, %s409
      %s412 = sphi 0, %s411
      %s426 = sphi 0, %s412
      %s430 = sphi 0, %s430
      %s432 = sphi 0, %s430
      %s433 = sphi 0, %s432
      %s447 = sphi 0, %s433
      %s451 = sphi 0, %s451
      %s453 = sphi 0, %s451
      %s454 = sphi 0, %s453
      %s468 = sphi 0, %s454
      %s472 = sphi 0, %s472
      %s474 = sphi 0, %s472
      %s475 = sphi 0, %s474
      %s489 = sphi 0, %s475
      %s493 = sphi 0, %s493
      %s495 = sphi 0, %s493
      %s496 = sphi 0, %s495
      %s510 = sphi 0, %s496
    $region4: #{deit_forward.1} parent=1 // loop_header_branch
      %29 = sbr.rel (%p27) target = $region8
    $region5: #{deit_forward.1} parent=1 // loop_body
      %s31 = ssub.s32 %s26, 1
      %s32 = ssub.s32 %s26, 2
      %s33 = sadd.s32 %s26, 1
      %s35 = sadd.s32 %s34, 1
      %p38 = scmp.eq.s32.totalorder %s26, 1
      %p39 = scmp.ne.s32.totalorder %s34, %s36
      %p40 = scmp.eq.s32.totalorder %s26, 0
      %p41 = por %p39, %p40
      %p42 = scmp.ne.s32.totalorder %s34, %s36
      %p43 = scmp.eq.s32.totalorder %s31, 1
      %p44 = por %p42, %p43
      %p45 = scmp.ne.s32.totalorder %s36, %s37
      %p46 = scmp.eq.s32.totalorder %s31, 0
      %p47 = por %p45, %p46
      %p48 = scmp.ne.s32.totalorder %s36, %s37
      %p49 = scmp.eq.s32.totalorder %s32, 1
      %p50 = por %p48, %p49
      %p52 = scmp.ne.s32.totalorder %s37, %s51
      %p53 = scmp.eq.s32.totalorder %s32, 0
      %p54 = por %p52, %p53
      %s56 = sadd.s32 %s55, 1
      %p59 = scmp.eq.s32.totalorder %s26, 1
      %p60 = scmp.ne.s32.totalorder %s55, %s57
      %p61 = scmp.eq.s32.totalorder %s26, 0
      %p62 = por %p60, %p61
      %p63 = scmp.ne.s32.totalorder %s55, %s57
      %p64 = scmp.eq.s32.totalorder %s31, 1
      %p65 = por %p63, %p64
      %p66 = scmp.ne.s32.totalorder %s57, %s58
      %p67 = scmp.eq.s32.totalorder %s31, 0
      %p68 = por %p66, %p67
      %p69 = scmp.ne.s32.totalorder %s57, %s58
      %p70 = scmp.eq.s32.totalorder %s32, 1
      %p71 = por %p69, %p70
      %p73 = scmp.ne.s32.totalorder %s58, %s72
      %p74 = scmp.eq.s32.totalorder %s32, 0
      %p75 = por %p73, %p74
      %s77 = sadd.s32 %s76, 1
      %p80 = scmp.eq.s32.totalorder %s26, 1
      %p81 = scmp.ne.s32.totalorder %s76, %s78
      %p82 = scmp.eq.s32.totalorder %s26, 0
      %p83 = por %p81, %p82
      %p84 = scmp.ne.s32.totalorder %s76, %s78
      %p85 = scmp.eq.s32.totalorder %s31, 1
      %p86 = por %p84, %p85
      %p87 = scmp.ne.s32.totalorder %s78, %s79
      %p88 = scmp.eq.s32.totalorder %s31, 0
      %p89 = por %p87, %p88
      %p90 = scmp.ne.s32.totalorder %s78, %s79
      %p91 = scmp.eq.s32.totalorder %s32, 1
      %p92 = por %p90, %p91
      %p94 = scmp.ne.s32.totalorder %s79, %s93
      %p95 = scmp.eq.s32.totalorder %s32, 0
      %p96 = por %p94, %p95
      %s97 = ssub.s32 %s26, %s33
      %p98 = scmp.eq.s32.totalorder %s97, 0
      %s100 = sadd.s32 %s99, 1
      %s101 = scalar_select %p98, %s99, %s100
      %p104 = pneg %p98
      %p105 = scmp.eq.s32.totalorder %s26, 1
      %p106 = por %p104, %p105
      %p107 = scmp.ne.s32.totalorder %s99, %s102
      %p108 = scmp.eq.s32.totalorder %s26, 0
      %p109 = por %p107, %p108
      %p110 = scmp.ne.s32.totalorder %s99, %s102
      %p111 = scmp.eq.s32.totalorder %s31, 1
      %p112 = por %p110, %p111
      %p113 = scmp.ne.s32.totalorder %s102, %s103
      %p114 = scmp.eq.s32.totalorder %s31, 0
      %p115 = por %p113, %p114
      %p116 = scmp.ne.s32.totalorder %s102, %s103
      %p117 = scmp.eq.s32.totalorder %s32, 1
      %p118 = por %p116, %p117
      %p120 = scmp.ne.s32.totalorder %s103, %s119
      %p121 = scmp.eq.s32.totalorder %s32, 0
      %p122 = por %p120, %p121
      %s123 = ssub.s32 %s26, %s33
      %p124 = scmp.eq.s32.totalorder %s123, 0
      %s126 = sadd.s32 %s125, 1
      %s127 = scalar_select %p124, %s125, %s126
      %p130 = pneg %p124
      %p131 = scmp.eq.s32.totalorder %s26, 1
      %p132 = por %p130, %p131
      %p133 = scmp.ne.s32.totalorder %s125, %s128
      %p134 = scmp.eq.s32.totalorder %s26, 0
      %p135 = por %p133, %p134
      %p136 = scmp.ne.s32.totalorder %s125, %s128
      %p137 = scmp.eq.s32.totalorder %s31, 1
      %p138 = por %p136, %p137
      %p139 = scmp.ne.s32.totalorder %s128, %s129
      %p140 = scmp.eq.s32.totalorder %s31, 0
      %p141 = por %p139, %p140
      %p142 = scmp.ne.s32.totalorder %s128, %s129
      %p143 = scmp.eq.s32.totalorder %s32, 1
      %p144 = por %p142, %p143
      %p146 = scmp.ne.s32.totalorder %s129, %s145
      %p147 = scmp.eq.s32.totalorder %s32, 0
      %p148 = por %p146, %p147
      %s149 = ssub.s32 %s26, %s33
      %p150 = scmp.eq.s32.totalorder %s149, 0
      %s152 = sadd.s32 %s151, 1
      %s153 = scalar_select %p150, %s151, %s152
      %p156 = pneg %p150
      %p157 = scmp.eq.s32.totalorder %s26, 1
      %p158 = por %p156, %p157
      %p159 = scmp.ne.s32.totalorder %s151, %s154
      %p160 = scmp.eq.s32.totalorder %s26, 0
      %p161 = por %p159, %p160
      %p162 = scmp.ne.s32.totalorder %s151, %s154
      %p163 = scmp.eq.s32.totalorder %s31, 1
      %p164 = por %p162, %p163
      %p165 = scmp.ne.s32.totalorder %s154, %s155
      %p166 = scmp.eq.s32.totalorder %s31, 0
      %p167 = por %p165, %p166
      %p168 = scmp.ne.s32.totalorder %s154, %s155
      %p169 = scmp.eq.s32.totalorder %s32, 1
      %p170 = por %p168, %p169
      %p172 = scmp.ne.s32.totalorder %s155, %s171
      %p173 = scmp.eq.s32.totalorder %s32, 0
      %p174 = por %p172, %p173
      %s175 = ssub.s32 %s26, %s33
      %p176 = scmp.eq.s32.totalorder %s175, 0
      %s178 = sadd.s32 %s177, 1
      %s179 = scalar_select %p176, %s177, %s178
      %p182 = pneg %p176
      %p183 = scmp.eq.s32.totalorder %s26, 1
      %p184 = por %p182, %p183
      %p185 = scmp.ne.s32.totalorder %s177, %s180
      %p186 = scmp.eq.s32.totalorder %s26, 0
      %p187 = por %p185, %p186
      %p188 = scmp.ne.s32.totalorder %s177, %s180
      %p189 = scmp.eq.s32.totalorder %s31, 1
      %p190 = por %p188, %p189
      %p191 = scmp.ne.s32.totalorder %s180, %s181
      %p192 = scmp.eq.s32.totalorder %s31, 0
      %p193 = por %p191, %p192
      %p194 = scmp.ne.s32.totalorder %s180, %s181
      %p195 = scmp.eq.s32.totalorder %s32, 1
      %p196 = por %p194, %p195
      %p198 = scmp.ne.s32.totalorder %s181, %s197
      %p199 = scmp.eq.s32.totalorder %s32, 0
      %p200 = por %p198, %p199
      %s201 = ssub.s32 %s26, %s33
      %p202 = scmp.eq.s32.totalorder %s201, 0
      %s204 = sadd.s32 %s203, 1
      %s205 = scalar_select %p202, %s203, %s204
      %p208 = pneg %p202
      %p209 = scmp.eq.s32.totalorder %s26, 1
      %p210 = por %p208, %p209
      %p211 = scmp.ne.s32.totalorder %s203, %s206
      %p212 = scmp.eq.s32.totalorder %s26, 0
      %p213 = por %p211, %p212
      %p214 = scmp.ne.s32.totalorder %s203, %s206
      %p215 = scmp.eq.s32.totalorder %s31, 1
      %p216 = por %p214, %p215
      %p217 = scmp.ne.s32.totalorder %s206, %s207
      %p218 = scmp.eq.s32.totalorder %s31, 0
      %p219 = por %p217, %p218
      %p220 = scmp.ne.s32.totalorder %s206, %s207
      %p221 = scmp.eq.s32.totalorder %s32, 1
      %p222 = por %p220, %p221
      %p224 = scmp.ne.s32.totalorder %s207, %s223
      %p225 = scmp.eq.s32.totalorder %s32, 0
      %p226 = por %p224, %p225
      %s227 = ssub.s32 %s26, %s33
      %p228 = scmp.eq.s32.totalorder %s227, 0
      %s230 = sadd.s32 %s229, 1
      %s231 = scalar_select %p228, %s229, %s230
      %p234 = pneg %p228
      %p235 = scmp.eq.s32.totalorder %s26, 1
      %p236 = por %p234, %p235
      %p237 = scmp.ne.s32.totalorder %s229, %s232
      %p238 = scmp.eq.s32.totalorder %s26, 0
      %p239 = por %p237, %p238
      %p240 = scmp.ne.s32.totalorder %s229, %s232
      %p241 = scmp.eq.s32.totalorder %s31, 1
      %p242 = por %p240, %p241
      %p243 = scmp.ne.s32.totalorder %s232, %s233
      %p244 = scmp.eq.s32.totalorder %s31, 0
      %p245 = por %p243, %p244
      %p246 = scmp.ne.s32.totalorder %s232, %s233
      %p247 = scmp.eq.s32.totalorder %s32, 1
      %p248 = por %p246, %p247
      %p250 = scmp.ne.s32.totalorder %s233, %s249
      %p251 = scmp.eq.s32.totalorder %s32, 0
      %p252 = por %p250, %p251
      %s253 = ssub.s32 %s26, %s33
      %p254 = scmp.eq.s32.totalorder %s253, 0
      %s256 = sadd.s32 %s255, 1
      %s257 = scalar_select %p254, %s255, %s256
      %p260 = pneg %p254
      %p261 = scmp.eq.s32.totalorder %s26, 1
      %p262 = por %p260, %p261
      %p263 = scmp.ne.s32.totalorder %s255, %s258
      %p264 = scmp.eq.s32.totalorder %s26, 0
      %p265 = por %p263, %p264
      %p266 = scmp.ne.s32.totalorder %s255, %s258
      %p267 = scmp.eq.s32.totalorder %s31, 1
      %p268 = por %p266, %p267
      %p269 = scmp.ne.s32.totalorder %s258, %s259
      %p270 = scmp.eq.s32.totalorder %s31, 0
      %p271 = por %p269, %p270
      %p272 = scmp.ne.s32.totalorder %s258, %s259
      %p273 = scmp.eq.s32.totalorder %s32, 1
      %p274 = por %p272, %p273
      %p276 = scmp.ne.s32.totalorder %s259, %s275
      %p277 = scmp.eq.s32.totalorder %s32, 0
      %p278 = por %p276, %p277
      %s279 = ssub.s32 %s26, %s33
      %p280 = scmp.eq.s32.totalorder %s279, 0
      %s282 = sadd.s32 %s281, 1
      %s283 = scalar_select %p280, %s281, %s282
      %p286 = pneg %p280
      %p287 = scmp.eq.s32.totalorder %s26, 1
      %p288 = por %p286, %p287
      %p289 = scmp.ne.s32.totalorder %s281, %s284
      %p290 = scmp.eq.s32.totalorder %s26, 0
      %p291 = por %p289, %p290
      %p292 = scmp.ne.s32.totalorder %s281, %s284
      %p293 = scmp.eq.s32.totalorder %s31, 1
      %p294 = por %p292, %p293
      %p295 = scmp.ne.s32.totalorder %s284, %s285
      %p296 = scmp.eq.s32.totalorder %s31, 0
      %p297 = por %p295, %p296
      %p298 = scmp.ne.s32.totalorder %s284, %s285
      %p299 = scmp.eq.s32.totalorder %s32, 1
      %p300 = por %p298, %p299
      %p302 = scmp.ne.s32.totalorder %s285, %s301
      %p303 = scmp.eq.s32.totalorder %s32, 0
      %p304 = por %p302, %p303
      %s305 = ssub.s32 %s26, %s33
      %p306 = scmp.eq.s32.totalorder %s305, 0
      %s308 = sadd.s32 %s307, 1
      %s309 = scalar_select %p306, %s307, %s308
      %p312 = pneg %p306
      %p313 = scmp.eq.s32.totalorder %s26, 1
      %p314 = por %p312, %p313
      %p315 = scmp.ne.s32.totalorder %s307, %s310
      %p316 = scmp.eq.s32.totalorder %s26, 0
      %p317 = por %p315, %p316
      %p318 = scmp.ne.s32.totalorder %s307, %s310
      %p319 = scmp.eq.s32.totalorder %s31, 1
      %p320 = por %p318, %p319
      %p321 = scmp.ne.s32.totalorder %s310, %s311
      %p322 = scmp.eq.s32.totalorder %s31, 0
      %p323 = por %p321, %p322
      %p324 = scmp.ne.s32.totalorder %s310, %s311
      %p325 = scmp.eq.s32.totalorder %s32, 1
      %p326 = por %p324, %p325
      %p328 = scmp.ne.s32.totalorder %s311, %s327
      %p329 = scmp.eq.s32.totalorder %s32, 0
      %p330 = por %p328, %p329
      %s331 = ssub.s32 %s26, %s33
      %p332 = scmp.eq.s32.totalorder %s331, 0
      %s334 = sadd.s32 %s333, 1
      %s335 = scalar_select %p332, %s333, %s334
      %p338 = pneg %p332
      %p339 = scmp.eq.s32.totalorder %s26, 1
      %p340 = por %p338, %p339
      %p341 = scmp.ne.s32.totalorder %s333, %s336
      %p342 = scmp.eq.s32.totalorder %s26, 0
      %p343 = por %p341, %p342
      %p344 = scmp.ne.s32.totalorder %s333, %s336
      %p345 = scmp.eq.s32.totalorder %s31, 1
      %p346 = por %p344, %p345
      %p347 = scmp.ne.s32.totalorder %s336, %s337
      %p348 = scmp.eq.s32.totalorder %s31, 0
      %p349 = por %p347, %p348
      %p350 = scmp.ne.s32.totalorder %s336, %s337
      %p351 = scmp.eq.s32.totalorder %s32, 1
      %p352 = por %p350, %p351
      %p354 = scmp.ne.s32.totalorder %s337, %s353
      %p355 = scmp.eq.s32.totalorder %s32, 0
      %p356 = por %p354, %p355
      %s357 = ssub.s32 %s26, %s33
      %p358 = scmp.eq.s32.totalorder %s357, 0
      %s360 = sadd.s32 %s359, 1
      %s361 = scalar_select %p358, %s359, %s360
      %p364 = pneg %p358
      %p365 = scmp.eq.s32.totalorder %s26, 1
      %p366 = por %p364, %p365
      %p367 = scmp.ne.s32.totalorder %s359, %s362
      %p368 = scmp.eq.s32.totalorder %s26, 0
      %p369 = por %p367, %p368
      %p370 = scmp.ne.s32.totalorder %s359, %s362
      %p371 = scmp.eq.s32.totalorder %s31, 1
      %p372 = por %p370, %p371
      %p373 = scmp.ne.s32.totalorder %s362, %s363
      %p374 = scmp.eq.s32.totalorder %s31, 0
      %p375 = por %p373, %p374
      %p376 = scmp.ne.s32.totalorder %s362, %s363
      %p377 = scmp.eq.s32.totalorder %s32, 1
      %p378 = por %p376, %p377
      %p380 = scmp.ne.s32.totalorder %s363, %s379
      %p381 = scmp.eq.s32.totalorder %s32, 0
      %p382 = por %p380, %p381
      %s383 = ssub.s32 %s26, %s33
      %p384 = scmp.eq.s32.totalorder %s383, 0
      %s386 = sadd.s32 %s385, 1
      %s387 = scalar_select %p384, %s385, %s386
      %p390 = pneg %p384
      %p391 = scmp.eq.s32.totalorder %s26, 1
      %p392 = por %p390, %p391
      %p393 = scmp.ne.s32.totalorder %s385, %s388
      %p394 = scmp.eq.s32.totalorder %s26, 0
      %p395 = por %p393, %p394
      %p396 = scmp.ne.s32.totalorder %s385, %s388
      %p397 = scmp.eq.s32.totalorder %s31, 1
      %p398 = por %p396, %p397
      %p399 = scmp.ne.s32.totalorder %s388, %s389
      %p400 = scmp.eq.s32.totalorder %s31, 0
      %p401 = por %p399, %p400
      %p402 = scmp.ne.s32.totalorder %s388, %s389
      %p403 = scmp.eq.s32.totalorder %s32, 1
      %p404 = por %p402, %p403
      %p406 = scmp.ne.s32.totalorder %s389, %s405
      %p407 = scmp.eq.s32.totalorder %s32, 0
      %p408 = por %p406, %p407
      %s410 = sadd.s32 %s409, 1
      %p413 = scmp.eq.s32.totalorder %s26, 1
      %p414 = scmp.ne.s32.totalorder %s409, %s411
      %p415 = scmp.eq.s32.totalorder %s26, 0
      %p416 = por %p414, %p415
      %p417 = scmp.ne.s32.totalorder %s409, %s411
      %p418 = scmp.eq.s32.totalorder %s31, 1
      %p419 = por %p417, %p418
      %p420 = scmp.ne.s32.totalorder %s411, %s412
      %p421 = scmp.eq.s32.totalorder %s31, 0
      %p422 = por %p420, %p421
      %p423 = scmp.ne.s32.totalorder %s411, %s412
      %p424 = scmp.eq.s32.totalorder %s32, 1
      %p425 = por %p423, %p424
      %p427 = scmp.ne.s32.totalorder %s412, %s426
      %p428 = scmp.eq.s32.totalorder %s32, 0
      %p429 = por %p427, %p428
      %s431 = sadd.s32 %s430, 1
      %p434 = scmp.eq.s32.totalorder %s26, 1
      %p435 = scmp.ne.s32.totalorder %s430, %s432
      %p436 = scmp.eq.s32.totalorder %s26, 0
      %p437 = por %p435, %p436
      %p438 = scmp.ne.s32.totalorder %s430, %s432
      %p439 = scmp.eq.s32.totalorder %s31, 1
      %p440 = por %p438, %p439
      %p441 = scmp.ne.s32.totalorder %s432, %s433
      %p442 = scmp.eq.s32.totalorder %s31, 0
      %p443 = por %p441, %p442
      %p444 = scmp.ne.s32.totalorder %s432, %s433
      %p445 = scmp.eq.s32.totalorder %s32, 1
      %p446 = por %p444, %p445
      %p448 = scmp.ne.s32.totalorder %s433, %s447
      %p449 = scmp.eq.s32.totalorder %s32, 0
      %p450 = por %p448, %p449
      %s452 = sadd.s32 %s451, 1
      %p455 = scmp.eq.s32.totalorder %s26, 1
      %p456 = scmp.ne.s32.totalorder %s451, %s453
      %p457 = scmp.eq.s32.totalorder %s26, 0
      %p458 = por %p456, %p457
      %p459 = scmp.ne.s32.totalorder %s451, %s453
      %p460 = scmp.eq.s32.totalorder %s31, 1
      %p461 = por %p459, %p460
      %p462 = scmp.ne.s32.totalorder %s453, %s454
      %p463 = scmp.eq.s32.totalorder %s31, 0
      %p464 = por %p462, %p463
      %p465 = scmp.ne.s32.totalorder %s453, %s454
      %p466 = scmp.eq.s32.totalorder %s32, 1
      %p467 = por %p465, %p466
      %p469 = scmp.ne.s32.totalorder %s454, %s468
      %p470 = scmp.eq.s32.totalorder %s32, 0
      %p471 = por %p469, %p470
      %s473 = sadd.s32 %s472, 1
      %p476 = scmp.eq.s32.totalorder %s26, 1
      %p477 = scmp.ne.s32.totalorder %s472, %s474
      %p478 = scmp.eq.s32.totalorder %s26, 0
      %p479 = por %p477, %p478
      %p480 = scmp.ne.s32.totalorder %s472, %s474
      %p481 = scmp.eq.s32.totalorder %s31, 1
      %p482 = por %p480, %p481
      %p483 = scmp.ne.s32.totalorder %s474, %s475
      %p484 = scmp.eq.s32.totalorder %s31, 0
      %p485 = por %p483, %p484
      %p486 = scmp.ne.s32.totalorder %s474, %s475
      %p487 = scmp.eq.s32.totalorder %s32, 1
      %p488 = por %p486, %p487
      %p490 = scmp.ne.s32.totalorder %s475, %s489
      %p491 = scmp.eq.s32.totalorder %s32, 0
      %p492 = por %p490, %p491
      %s494 = sadd.s32 %s493, 1
      %p497 = scmp.eq.s32.totalorder %s26, 1
      %p498 = scmp.ne.s32.totalorder %s493, %s495
      %p499 = scmp.eq.s32.totalorder %s26, 0
      %p500 = por %p498, %p499
      %p501 = scmp.ne.s32.totalorder %s493, %s495
      %p502 = scmp.eq.s32.totalorder %s31, 1
      %p503 = por %p501, %p502
      %p504 = scmp.ne.s32.totalorder %s495, %s496
      %p505 = scmp.eq.s32.totalorder %s31, 0
      %p506 = por %p504, %p505
      %p507 = scmp.ne.s32.totalorder %s495, %s496
      %p508 = scmp.eq.s32.totalorder %s32, 1
      %p509 = por %p507, %p508
      %p511 = scmp.ne.s32.totalorder %s496, %s510
      %p512 = scmp.eq.s32.totalorder %s32, 0
      %p513 = por %p511, %p512
      %p514 = scmp.le.s32.totalorder 1, %s26
      %p515 = scmp.lt.s32.totalorder %s26, 3
      %p516 = pnand %p514, %p515
      %p517 = pneg %p516
      // Predicated region
      $region9: #{deit_forward.1} parent=5 // pred_check
        _
      $region10: #{deit_forward.1} parent=5 // pred_check_branch
        %519 = sbr.rel (%p516) target = $region12
      $region11: #{deit_forward.1} parent=5 // pred_region
        %s520 = ssub.s32 %s26, 1
        // Predicated region
        $region13: #{deit_forward.1} parent=11 // pred_check
          %p521 = pneg %p47
        $region14: #{deit_forward.1} parent=11 // pred_check_branch
          %523 = sbr.rel (%p521) target = $region16
        $region15: #{deit_forward.1} parent=11 // pred_region
          _
        $region16: #{deit_forward.1} parent=11 // pred_fallthru
          _
        // Predicated region
        $region17: #{deit_forward.1} parent=11 // pred_check
          %p524 = pneg %p68
        $region18: #{deit_forward.1} parent=11 // pred_check_branch
          %526 = sbr.rel (%p524) target = $region20
        $region19: #{deit_forward.1} parent=11 // pred_region
          _
        $region20: #{deit_forward.1} parent=11 // pred_fallthru
          _
        // Predicated region
        $region21: #{deit_forward.1} parent=11 // pred_check
          %p527 = pneg %p89
        $region22: #{deit_forward.1} parent=11 // pred_check_branch
          %529 = sbr.rel (%p527) target = $region24
        $region23: #{deit_forward.1} parent=11 // pred_region
          _
        $region24: #{deit_forward.1} parent=11 // pred_fallthru
          _
        // Predicated region
        $region25: #{deit_forward.1} parent=11 // pred_check
          %p530 = pneg %p422
        $region26: #{deit_forward.1} parent=11 // pred_check_branch
          %532 = sbr.rel (%p530) target = $region28
        $region27: #{deit_forward.1} parent=11 // pred_region
          _
        $region28: #{deit_forward.1} parent=11 // pred_fallthru
          _
        // Predicated region
        $region29: #{deit_forward.1} parent=11 // pred_check
          %p533 = pneg %p443
        $region30: #{deit_forward.1} parent=11 // pred_check_branch
          %535 = sbr.rel (%p533) target = $region32
        $region31: #{deit_forward.1} parent=11 // pred_region
          _
        $region32: #{deit_forward.1} parent=11 // pred_fallthru
          _
        // Predicated region
        $region33: #{deit_forward.1} parent=11 // pred_check
          %p536 = pneg %p464
        $region34: #{deit_forward.1} parent=11 // pred_check_branch
          %538 = sbr.rel (%p536) target = $region36
        $region35: #{deit_forward.1} parent=11 // pred_region
          _
        $region36: #{deit_forward.1} parent=11 // pred_fallthru
          _
        // Predicated region
        $region37: #{deit_forward.1} parent=11 // pred_check
          %p539 = pneg %p485
        $region38: #{deit_forward.1} parent=11 // pred_check_branch
          %541 = sbr.rel (%p539) target = $region40
        $region39: #{deit_forward.1} parent=11 // pred_region
          _
        $region40: #{deit_forward.1} parent=11 // pred_fallthru
          _
      $region12: #{deit_forward.1} parent=5 // pred_fallthru
        _
      %p542 = scmp.lt.s32.totalorder %s26, 2
      // Predicated region
      $region41: #{deit_forward.1} parent=5 // pred_check
        %p543 = pneg %p542
      $region42: #{deit_forward.1} parent=5 // pred_check_branch
        %545 = sbr.rel (%p543) target = $region44
      $region43: #{deit_forward.1} parent=5 // pred_region
        // Predicated region
        $region45: #{deit_forward.1} parent=43 // pred_check
          %p546 = pneg %p109
        $region46: #{deit_forward.1} parent=43 // pred_check_branch
          %548 = sbr.rel (%p546) target = $region48
        $region47: #{deit_forward.1} parent=43 // pred_region
          %p549 = scmp.lt.s32.totalorder %s26, 1
          %s550 = scalar_select %p549, %s26, 1
          %s551 = scalar_lea.vmem %s3, %s550
        $region48: #{deit_forward.1} parent=43 // pred_fallthru
          _
        // Predicated region
        $region49: #{deit_forward.1} parent=43 // pred_check
          %p552 = pneg %p135
        $region50: #{deit_forward.1} parent=43 // pred_check_branch
          %554 = sbr.rel (%p552) target = $region52
        $region51: #{deit_forward.1} parent=43 // pred_region
          %p555 = scmp.lt.s32.totalorder %s26, 1
          %s556 = scalar_select %p555, %s26, 1
          %s557 = scalar_lea.vmem %s4, %s556
        $region52: #{deit_forward.1} parent=43 // pred_fallthru
          _
        // Predicated region
        $region53: #{deit_forward.1} parent=43 // pred_check
          %p558 = pneg %p161
        $region54: #{deit_forward.1} parent=43 // pred_check_branch
          %560 = sbr.rel (%p558) target = $region56
        $region55: #{deit_forward.1} parent=43 // pred_region
          %p561 = scmp.lt.s32.totalorder %s26, 1
          %s562 = scalar_select %p561, %s26, 1
          %s563 = smul.addr %s562, 12
          %s564 = smul.addr %s563, 4
          %s565 = scalar_lea.vmem %s5, %s564
        $region56: #{deit_forward.1} parent=43 // pred_fallthru
          _
        // Predicated region
        $region57: #{deit_forward.1} parent=43 // pred_check
          %p566 = pneg %p187
        $region58: #{deit_forward.1} parent=43 // pred_check_branch
          %568 = sbr.rel (%p566) target = $region60
        $region59: #{deit_forward.1} parent=43 // pred_region
          %p569 = scmp.lt.s32.totalorder %s26, 1
          %s570 = scalar_select %p569, %s26, 1
          %s571 = smul.addr %s570, 3
          %s572 = scalar_lea.vmem %s6, %s571
        $region60: #{deit_forward.1} parent=43 // pred_fallthru
          _
        // Predicated region
        $region61: #{deit_forward.1} parent=43 // pred_check
          %p573 = pneg %p213
        $region62: #{deit_forward.1} parent=43 // pred_check_branch
          %575 = sbr.rel (%p573) target = $region64
        $region63: #{deit_forward.1} parent=43 // pred_region
          %p576 = scmp.lt.s32.totalorder %s26, 1
          %s577 = scalar_select %p576, %s26, 1
          %s578 = smul.addr %s577, 4
          %s579 = smul.addr %s578, 4
          %s580 = scalar_lea.vmem %s7, %s579
        $region64: #{deit_forward.1} parent=43 // pred_fallthru
          _
        // Predicated region
        $region65: #{deit_forward.1} parent=43 // pred_check
          %p581 = pneg %p239
        $region66: #{deit_forward.1} parent=43 // pred_check_branch
          %583 = sbr.rel (%p581) target = $region68
        $region67: #{deit_forward.1} parent=43 // pred_region
          %p584 = scmp.lt.s32.totalorder %s26, 1
          %s585 = scalar_select %p584, %s26, 1
          %s586 = scalar_lea.vmem %s8, %s585
        $region68: #{deit_forward.1} parent=43 // pred_fallthru
          _
        // Predicated region
        $region69: #{deit_forward.1} parent=43 // pred_check
          %p587 = pneg %p265
        $region70: #{deit_forward.1} parent=43 // pred_check_branch
          %589 = sbr.rel (%p587) target = $region72
        $region71: #{deit_forward.1} parent=43 // pred_region
          %p590 = scmp.lt.s32.totalorder %s26, 1
          %s591 = scalar_select %p590, %s26, 1
          %s592 = scalar_lea.vmem %s9, %s591
        $region72: #{deit_forward.1} parent=43 // pred_fallthru
          _
        // Predicated region
        $region73: #{deit_forward.1} parent=43 // pred_check
          %p593 = pneg %p291
        $region74: #{deit_forward.1} parent=43 // pred_check_branch
          %595 = sbr.rel (%p593) target = $region76
        $region75: #{deit_forward.1} parent=43 // pred_region
          %p596 = scmp.lt.s32.totalorder %s26, 1
          %s597 = scalar_select %p596, %s26, 1
          %s598 = scalar_lea.vmem %s10, %s597
        $region76: #{deit_forward.1} parent=43 // pred_fallthru
          _
        // Predicated region
        $region77: #{deit_forward.1} parent=43 // pred_check
          %p599 = pneg %p317
        $region78: #{deit_forward.1} parent=43 // pred_check_branch
          %601 = sbr.rel (%p599) target = $region80
        $region79: #{deit_forward.1} parent=43 // pred_region
          %p602 = scmp.lt.s32.totalorder %s26, 1
          %s603 = scalar_select %p602, %s26, 1
          %s604 = smul.addr %s603, 4
          %s605 = smul.addr %s604, 4
          %s606 = scalar_lea.vmem %s11, %s605
        $region80: #{deit_forward.1} parent=43 // pred_fallthru
          _
        // Predicated region
        $region81: #{deit_forward.1} parent=43 // pred_check
          %p607 = pneg %p343
        $region82: #{deit_forward.1} parent=43 // pred_check_branch
          %609 = sbr.rel (%p607) target = $region84
        $region83: #{deit_forward.1} parent=43 // pred_region
          %p610 = scmp.lt.s32.totalorder %s26, 1
          %s611 = scalar_select %p610, %s26, 1
          %s612 = scalar_lea.vmem %s12, %s611
        $region84: #{deit_forward.1} parent=43 // pred_fallthru
          _
        // Predicated region
        $region85: #{deit_forward.1} parent=43 // pred_check
          %p613 = pneg %p369
        $region86: #{deit_forward.1} parent=43 // pred_check_branch
          %615 = sbr.rel (%p613) target = $region88
        $region87: #{deit_forward.1} parent=43 // pred_region
          %p616 = scmp.lt.s32.totalorder %s26, 1
          %s617 = scalar_select %p616, %s26, 1
          %s618 = smul.addr %s617, 16
          %s619 = smul.addr %s618, 4
          %s620 = scalar_lea.vmem %s13, %s619
        $region88: #{deit_forward.1} parent=43 // pred_fallthru
          _
        // Predicated region
        $region89: #{deit_forward.1} parent=43 // pred_check
          %p621 = pneg %p395
        $region90: #{deit_forward.1} parent=43 // pred_check_branch
          %623 = sbr.rel (%p621) target = $region92
        $region91: #{deit_forward.1} parent=43 // pred_region
          %p624 = scmp.lt.s32.totalorder %s26, 1
          %s625 = scalar_select %p624, %s26, 1
          %s626 = scalar_lea.vmem %s14, %s625
        $region92: #{deit_forward.1} parent=43 // pred_fallthru
          _
      $region44: #{deit_forward.1} parent=5 // pred_fallthru
        _
      %p627 = scmp.le.s32.totalorder 1, %s26
      %p628 = scmp.lt.s32.totalorder %s26, 3
      %p629 = pnand %p627, %p628
      %p630 = pneg %p629
      // Predicated region
      $region93: #{deit_forward.1} parent=5 // pred_check
        _
      $region94: #{deit_forward.1} parent=5 // pred_check_branch
        %632 = sbr.rel (%p629) target = $region96
      $region95: #{deit_forward.1} parent=5 // pred_region
        %s633 = ssub.s32 %s26, 1
        %p634 = pneg %p47
        %p635 = pneg %p44
        %p636 = pneg %p68
        %p637 = pneg %p65
        %p638 = pneg %p89
        %p639 = pneg %p86
        %p640 = scmp.lt.s32.totalorder %s31, 1
        %s641 = scalar_select %p640, %s31, 1
        %s642 = scalar_lea.vmem %s3, %s641
        %p643 = pneg %p115
        %p644 = pneg %p112
        %p645 = scmp.lt.s32.totalorder %s31, 1
        %s646 = scalar_select %p645, %s31, 1
        %s647 = scalar_lea.vmem %s4, %s646
        %p648 = pneg %p141
        %p649 = pneg %p138
        %p650 = scmp.lt.s32.totalorder %s31, 1
        %s651 = scalar_select %p650, %s31, 1
        %s652 = smul.addr %s651, 12
        %s653 = smul.addr %s652, 4
        %s654 = scalar_lea.vmem %s5, %s653
        %p655 = pneg %p167
        %p656 = pneg %p164
        %p657 = scmp.lt.s32.totalorder %s31, 1
        %s658 = scalar_select %p657, %s31, 1
        %s659 = smul.addr %s658, 3
        %s660 = scalar_lea.vmem %s6, %s659
        %p661 = pneg %p193
        %p662 = pneg %p190
        %p663 = scmp.lt.s32.totalorder %s31, 1
        %s664 = scalar_select %p663, %s31, 1
        %s665 = smul.addr %s664, 4
        %s666 = smul.addr %s665, 4
        %s667 = scalar_lea.vmem %s7, %s666
        %p668 = pneg %p219
        %p669 = pneg %p216
        %p670 = scmp.lt.s32.totalorder %s31, 1
        %s671 = scalar_select %p670, %s31, 1
        %s672 = scalar_lea.vmem %s8, %s671
        %p673 = pneg %p245
        %p674 = pneg %p242
        %p675 = scmp.lt.s32.totalorder %s31, 1
        %s676 = scalar_select %p675, %s31, 1
        %s677 = scalar_lea.vmem %s9, %s676
        %p678 = pneg %p271
        %p679 = pneg %p268
        %p680 = scmp.lt.s32.totalorder %s31, 1
        %s681 = scalar_select %p680, %s31, 1
        %s682 = scalar_lea.vmem %s10, %s681
        %p683 = pneg %p297
        %p684 = pneg %p294
        %p685 = scmp.lt.s32.totalorder %s31, 1
        %s686 = scalar_select %p685, %s31, 1
        %s687 = smul.addr %s686, 4
        %s688 = smul.addr %s687, 4
        %s689 = scalar_lea.vmem %s11, %s688
        %p690 = pneg %p323
        %p691 = pneg %p320
        %p692 = scmp.lt.s32.totalorder %s31, 1
        %s693 = scalar_select %p692, %s31, 1
        %s694 = scalar_lea.vmem %s12, %s693
        %p695 = pneg %p349
        %p696 = pneg %p346
        %p697 = scmp.lt.s32.totalorder %s31, 1
        %s698 = scalar_select %p697, %s31, 1
        %s699 = smul.addr %s698, 16
        %s700 = smul.addr %s699, 4
        %s701 = scalar_lea.vmem %s13, %s700
        %p702 = pneg %p375
        %p703 = pneg %p372
        %p704 = scmp.lt.s32.totalorder %s31, 1
        %s705 = scalar_select %p704, %s31, 1
        %s706 = scalar_lea.vmem %s14, %s705
        %p707 = pneg %p401
        %p708 = pneg %p398
        %p709 = pneg %p422
        %p710 = pneg %p419
        %p711 = pneg %p443
        %p712 = pneg %p440
        %p713 = pneg %p464
        %p714 = pneg %p461
        %p715 = pneg %p485
        %p716 = pneg %p482
        %p717 = pneg %p506
        %p718 = pneg %p503
        %p719 = scmp.lt.s32.totalorder %s31, 1
        %s720 = scalar_select %p719, %s31, 1
        %s721 = scalar_lea.vmem %s3, %s720
        %p722 = scmp.lt.s32.totalorder %s31, 1
        %s723 = scalar_select %p722, %s31, 1
        %s724 = scalar_lea.vmem %s4, %s723
        %p725 = scmp.lt.s32.totalorder %s31, 1
        %s726 = scalar_select %p725, %s31, 1
        %s727 = smul.addr %s726, 12
        %s728 = smul.addr %s727, 4
        %s729 = scalar_lea.vmem %s5, %s728
        %p730 = scmp.lt.s32.totalorder %s31, 1
        %s731 = scalar_select %p730, %s31, 1
        %s732 = smul.addr %s731, 3
        %s733 = scalar_lea.vmem %s6, %s732
        %p734 = scmp.lt.s32.totalorder %s31, 1
        %s735 = scalar_select %p734, %s31, 1
        %s736 = smul.addr %s735, 4
        %s737 = smul.addr %s736, 4
        %s738 = scalar_lea.vmem %s7, %s737
        %p739 = scmp.lt.s32.totalorder %s31, 1
        %s740 = scalar_select %p739, %s31, 1
        %s741 = scalar_lea.vmem %s8, %s740
        %p742 = scmp.lt.s32.totalorder %s31, 1
        %s743 = scalar_select %p742, %s31, 1
        %s744 = scalar_lea.vmem %s9, %s743
        %p745 = scmp.lt.s32.totalorder %s31, 1
        %s746 = scalar_select %p745, %s31, 1
        %s747 = scalar_lea.vmem %s10, %s746
        %p748 = scmp.lt.s32.totalorder %s31, 1
        %s749 = scalar_select %p748, %s31, 1
        %s750 = smul.addr %s749, 4
        %s751 = smul.addr %s750, 4
        %s752 = scalar_lea.vmem %s11, %s751
        %p753 = scmp.lt.s32.totalorder %s31, 1
        %s754 = scalar_select %p753, %s31, 1
        %s755 = scalar_lea.vmem %s12, %s754
        %p756 = scmp.lt.s32.totalorder %s31, 1
        %s757 = scalar_select %p756, %s31, 1
        %s758 = smul.addr %s757, 16
        %s759 = smul.addr %s758, 4
        %s760 = scalar_lea.vmem %s13, %s759
        %p761 = scmp.lt.s32.totalorder %s31, 1
        %s762 = scalar_select %p761, %s31, 1
        %s763 = scalar_lea.vmem %s14, %s762
        %p765 = scmp.eq.s32.totalorder %s31, 0
        // Predicated region
        $region97: #{deit_forward.1} parent=95 // pred_check
          %p766 = pneg %p765
        $region98: #{deit_forward.1} parent=95 // pred_check_branch
          %768 = sbr.rel (%p766) target = $region100
        $region99: #{deit_forward.1} parent=95 // pred_region
          %v769 = vld [vmem:[%s0] sm:$0xff]
          %v770 = vld [vmem:[%s0 + $0x8] sm:$0xff]
          %v771 = vld [vmem:[%s0 + $0x10] sm:$0xff]
          %v772 = vld [vmem:[%s0 + $0x18] sm:$0x11]
          %v773 = vld [vmem:[%s0 + $0x20] sm:$0x11]
          %v774 = vld [vmem:[%s0 + $0x28] sm:$0x11]
          %v775 = vld [vmem:[%s1] sm:$0xf]
          %v776 = vld [vmem:[%s1 + $0x4] sm:$0xf]
          %v777 = vld [vmem:[%s1 + $0x8] sm:$0xf]
          %v778 = vld [vmem:[%s1 + $0xc] sm:$0xf]
          %v779 = vld [vmem:[%s1 + $0x10] sm:$0xf]
          %v780 = vld [vmem:[%s1 + $0x14] sm:$0xf]
          %v781 = vld [vmem:[%s1 + $0x18] sm:$0xf]
          %v782 = vld [vmem:[%s1 + $0x1c] sm:$0xf]
          %v783 = vld [vmem:[%s1 + $0x20] sm:$0xf]
          %v784 = vld [vmem:[%s1 + $0x24] sm:$0xf]
          %v785 = vld [vmem:[%s1 + $0x28] sm:$0xf]
          %v786 = vld [vmem:[%s1 + $0x2c] sm:$0xf]
          %v787 = vld [vmem:[%s1 + $0x30] sm:$0xf]
          %v788 = vld [vmem:[%s1 + $0x34] sm:$0xf]
          %v789 = vld [vmem:[%s1 + $0x38] sm:$0xf]
          %v790 = vld [vmem:[%s1 + $0x3c] sm:$0xf]
          %v791 = vld [vmem:[%s1 + $0x40] sm:$0xf]
          %v792 = vld [vmem:[%s1 + $0x44] sm:$0xf]
          %v793 = vld [vmem:[%s1 + $0x48] sm:$0xf]
          %v794 = vld [vmem:[%s1 + $0x4c] sm:$0xf]
          %v795 = vld [vmem:[%s1 + $0x50] sm:$0xf]
          %v796 = vld [vmem:[%s1 + $0x54] sm:$0xf]
          %v797 = vld [vmem:[%s1 + $0x58] sm:$0xf]
          %v798 = vld [vmem:[%s1 + $0x5c] sm:$0xf]
          %v799 = vld [vmem:[%s1 + $0x60] sm:$0xf]
          %v800 = vld [vmem:[%s1 + $0x64] sm:$0xf]
          %v801 = vld [vmem:[%s1 + $0x68] sm:$0xf]
          %v802 = vld [vmem:[%s1 + $0x6c] sm:$0xf]
          %v803 = vld [vmem:[%s1 + $0x70] sm:$0xf]
          %v804 = vld [vmem:[%s1 + $0x74] sm:$0xf]
          %v805 = vld [vmem:[%s1 + $0x78] sm:$0xf]
          %v806 = vld [vmem:[%s1 + $0x7c] sm:$0xf]
          %v807 = vld [vmem:[%s1 + $0x80] sm:$0xf]
          %v808 = vld [vmem:[%s1 + $0x84] sm:$0xf]
          %v809 = vld [vmem:[%s1 + $0x88] sm:$0xf]
          %v810 = vld [vmem:[%s1 + $0x8c] sm:$0xf]
          %v811 = vld [vmem:[%s1 + $0x90] sm:$0xf]
          %v812 = vld [vmem:[%s1 + $0x94] sm:$0xf]
          %v813 = vld [vmem:[%s1 + $0x98] sm:$0xf]
          %v814 = vld [vmem:[%s1 + $0x9c] sm:$0xf]
          %v815 = vld [vmem:[%s1 + $0xa0] sm:$0xf]
          %v816 = vld [vmem:[%s1 + $0xa4] sm:$0xf]
          %v817 = vld [vmem:[%s1 + $0xa8] sm:$0xf]
          %v818 = vld [vmem:[%s1 + $0xac] sm:$0xf]
          %v819 = vld [vmem:[%s1 + $0xb0] sm:$0xf]
          %v820 = vld [vmem:[%s1 + $0xb4] sm:$0xf]
          %v821 = vld [vmem:[%s1 + $0xb8] sm:$0xf]
          %v822 = vld [vmem:[%s1 + $0xbc] sm:$0xf]
          %v823 = vld [vmem:[%s1 + $0xc0] sm:$0xf]
          %v824 = vld [vmem:[%s1 + $0xc4] sm:$0xf]
          %v825 = vld [vmem:[%s1 + $0xc8] sm:$0xf]
          %v826 = vld [vmem:[%s1 + $0xcc] sm:$0xf]
          %v827 = vld [vmem:[%s1 + $0xd0] sm:$0xf]
          %v828 = vld [vmem:[%s1 + $0xd4] sm:$0xf]
          %v829 = vld [vmem:[%s1 + $0xd8] sm:$0xf]
          %v830 = vld [vmem:[%s1 + $0xdc] sm:$0xf]
          %v831 = vld [vmem:[%s1 + $0xe0] sm:$0xf]
          %v832 = vld [vmem:[%s1 + $0xe4] sm:$0xf]
          %v833 = vld [vmem:[%s1 + $0xe8] sm:$0xf]
          %v834 = vld [vmem:[%s1 + $0xec] sm:$0xf]
          %v835 = vld [vmem:[%s1 + $0xf0] sm:$0xf]
          %v836 = vld [vmem:[%s1 + $0xf4] sm:$0xf]
          %v837 = vld [vmem:[%s1 + $0xf8] sm:$0xf]
          %v838 = vld [vmem:[%s1 + $0xfc] sm:$0xf]
          %v839 = vld [vmem:[%s1 + $0x100] sm:$0xf]
          %v840 = vld [vmem:[%s1 + $0x104] sm:$0xf]
          %v841 = vld [vmem:[%s1 + $0x108] sm:$0xf]
          %v842 = vld [vmem:[%s1 + $0x10c] sm:$0xf]
          %v843 = vld [vmem:[%s1 + $0x110] sm:$0xf]
          %v844 = vld [vmem:[%s1 + $0x114] sm:$0xf]
          %v845 = vld [vmem:[%s1 + $0x118] sm:$0xf]
          %v846 = vld [vmem:[%s1 + $0x11c] sm:$0xf]
          %v847 = vld [vmem:[%s1 + $0x120] sm:$0xf]
          %v848 = vld [vmem:[%s1 + $0x124] sm:$0xf]
          %v849 = vld [vmem:[%s1 + $0x128] sm:$0xf]
          %v850 = vld [vmem:[%s1 + $0x12c] sm:$0xf]
          %v851 = vld [vmem:[%s1 + $0x130] sm:$0xf]
          %v852 = vld [vmem:[%s1 + $0x134] sm:$0xf]
          %v853 = vld [vmem:[%s1 + $0x138] sm:$0xf]
          %v854 = vld [vmem:[%s1 + $0x13c] sm:$0xf]
          %v855 = vld [vmem:[%s1 + $0x140] sm:$0xf]
          %v856 = vld [vmem:[%s1 + $0x144] sm:$0xf]
          %v857 = vld [vmem:[%s1 + $0x148] sm:$0xf]
          %v858 = vld [vmem:[%s1 + $0x14c] sm:$0xf]
          %v859 = vld [vmem:[%s1 + $0x150] sm:$0xf]
          %v860 = vld [vmem:[%s1 + $0x154] sm:$0xf]
          %v861 = vld [vmem:[%s1 + $0x158] sm:$0xf]
          %v862 = vld [vmem:[%s1 + $0x15c] sm:$0xf]
          %v863 = vld [vmem:[%s1 + $0x160] sm:$0xf]
          %v864 = vld [vmem:[%s1 + $0x164] sm:$0xf]
          %v865 = vld [vmem:[%s1 + $0x168] sm:$0xf]
          %v866 = vld [vmem:[%s1 + $0x16c] sm:$0xf]
          %v867 = vld [vmem:[%s1 + $0x170] sm:$0xf]
          %v868 = vld [vmem:[%s1 + $0x174] sm:$0xf]
          %v869 = vld [vmem:[%s1 + $0x178] sm:$0xf]
          %v870 = vld [vmem:[%s1 + $0x17c] sm:$0xf]
          %v871 = vld [vmem:[%s2] sm:$0xff]
          %v872 = vld [vmem:[%s2 + $0x8] sm:$0x3]
          %v879 = vunpack.c.l.b16 %v769
          %v880 = vunpack.c.h.b16 %v769
          %v881 = vunpack.c.l.b16 %v770
          %v882 = vunpack.c.h.b16 %v770
          %v883 = vunpack.c.l.b16 %v771
          %v884 = vunpack.c.h.b16 %v771
          %v885 = vunpack.c.l.b16 %v772
          %v886 = vunpack.c.h.b16 %v772
          %v887 = vunpack.c.l.b16 %v773
          %v888 = vunpack.c.h.b16 %v773
          %v889 = vunpack.c.l.b16 %v774
          %v890 = vunpack.c.h.b16 %v774
          %v891 = vpack.c.b16 %v885, %v879
          %v892 = vpack.c.b16 %v886, %v880
          %v893 = vpack.c.b16 %v887, %v881
          %v894 = vpack.c.b16 %v888, %v882
          %v895 = vpack.c.b16 %v889, %v883
          %v896 = vpack.c.b16 %v890, %v884
          %v999 = vunpack.c.l.b16 %v775
          %v1000 = vunpack.c.l.b16 %v776
          %v1001 = vunpack.c.l.b16 %v777
          %v1002 = vunpack.c.l.b16 %v778
          %v1003 = vunpack.c.l.b16 %v779
          %v1004 = vunpack.c.l.b16 %v780
          %v1005 = vunpack.c.l.b16 %v781
          %v1006 = vunpack.c.l.b16 %v782
          %v1007 = vunpack.c.l.b16 %v783
          %v1008 = vunpack.c.l.b16 %v784
          %v1009 = vunpack.c.l.b16 %v785
          %v1010 = vunpack.c.l.b16 %v786
          %v1011 = vunpack.c.l.b16 %v787
          %v1012 = vunpack.c.l.b16 %v788
          %v1013 = vunpack.c.l.b16 %v789
          %v1014 = vunpack.c.l.b16 %v790
          %v1015 = vunpack.c.l.b16 %v791
          %v1016 = vunpack.c.l.b16 %v792
          %v1017 = vunpack.c.l.b16 %v793
          %v1018 = vunpack.c.l.b16 %v794
          %v1019 = vunpack.c.l.b16 %v795
          %v1020 = vunpack.c.l.b16 %v796
          %v1021 = vunpack.c.l.b16 %v797
          %v1022 = vunpack.c.l.b16 %v798
          %v1023 = vunpack.c.l.b16 %v799
          %v1024 = vunpack.c.l.b16 %v800
          %v1025 = vunpack.c.l.b16 %v801
          %v1026 = vunpack.c.l.b16 %v802
          %v1027 = vunpack.c.l.b16 %v803
          %v1028 = vunpack.c.l.b16 %v804
          %v1029 = vunpack.c.l.b16 %v805
          %v1030 = vunpack.c.l.b16 %v806
          %v1031 = vunpack.c.l.b16 %v807
          %v1032 = vunpack.c.l.b16 %v808
          %v1033 = vunpack.c.l.b16 %v809
          %v1034 = vunpack.c.l.b16 %v810
          %v1035 = vunpack.c.l.b16 %v811
          %v1036 = vunpack.c.l.b16 %v812
          %v1037 = vunpack.c.l.b16 %v813
          %v1038 = vunpack.c.l.b16 %v814
          %v1039 = vunpack.c.l.b16 %v815
          %v1040 = vunpack.c.l.b16 %v816
          %v1041 = vunpack.c.l.b16 %v817
          %v1042 = vunpack.c.l.b16 %v818
          %v1043 = vunpack.c.l.b16 %v819
          %v1044 = vunpack.c.l.b16 %v820
          %v1045 = vunpack.c.l.b16 %v821
          %v1046 = vunpack.c.l.b16 %v822
          %v1047 = vunpack.c.l.b16 %v823
          %v1048 = vunpack.c.l.b16 %v824
          %v1049 = vunpack.c.l.b16 %v825
          %v1050 = vunpack.c.l.b16 %v826
          %v1051 = vunpack.c.l.b16 %v827
          %v1052 = vunpack.c.l.b16 %v828
          %v1053 = vunpack.c.l.b16 %v829
          %v1054 = vunpack.c.l.b16 %v830
          %v1055 = vunpack.c.l.b16 %v831
          %v1056 = vunpack.c.l.b16 %v832
          %v1057 = vunpack.c.l.b16 %v833
          %v1058 = vunpack.c.l.b16 %v834
          %v1059 = vunpack.c.l.b16 %v835
          %v1060 = vunpack.c.l.b16 %v836
          %v1061 = vunpack.c.l.b16 %v837
          %v1062 = vunpack.c.l.b16 %v838
          %v1063 = vunpack.c.l.b16 %v839
          %v1064 = vunpack.c.l.b16 %v840
          %v1065 = vunpack.c.l.b16 %v841
          %v1066 = vunpack.c.l.b16 %v842
          %v1067 = vunpack.c.l.b16 %v843
          %v1068 = vunpack.c.l.b16 %v844
          %v1069 = vunpack.c.l.b16 %v845
          %v1070 = vunpack.c.l.b16 %v846
          %v1071 = vunpack.c.l.b16 %v847
          %v1072 = vunpack.c.l.b16 %v848
          %v1073 = vunpack.c.l.b16 %v849
          %v1074 = vunpack.c.l.b16 %v850
          %v1075 = vunpack.c.l.b16 %v851
          %v1076 = vunpack.c.l.b16 %v852
          %v1077 = vunpack.c.l.b16 %v853
          %v1078 = vunpack.c.l.b16 %v854
          %v1079 = vunpack.c.l.b16 %v855
          %v1080 = vunpack.c.l.b16 %v856
          %v1081 = vunpack.c.l.b16 %v857
          %v1082 = vunpack.c.l.b16 %v858
          %v1083 = vunpack.c.l.b16 %v859
          %v1084 = vunpack.c.l.b16 %v860
          %v1085 = vunpack.c.l.b16 %v861
          %v1086 = vunpack.c.l.b16 %v862
          %v1087 = vunpack.c.l.b16 %v863
          %v1088 = vunpack.c.l.b16 %v864
          %v1089 = vunpack.c.l.b16 %v865
          %v1090 = vunpack.c.l.b16 %v866
          %v1091 = vunpack.c.l.b16 %v867
          %v1092 = vunpack.c.l.b16 %v868
          %v1093 = vunpack.c.l.b16 %v869
          %v1094 = vunpack.c.l.b16 %v870
          %v1095 = vpack.c.b16 %v1000, %v999
          %v1096 = vpack.c.b16 %v1002, %v1001
          %v1097 = vpack.c.b16 %v1004, %v1003
          %v1098 = vpack.c.b16 %v1006, %v1005
          %v1099 = vpack.c.b16 %v1008, %v1007
          %v1100 = vpack.c.b16 %v1010, %v1009
          %v1101 = vpack.c.b16 %v1012, %v1011
          %v1102 = vpack.c.b16 %v1014, %v1013
          %v1103 = vpack.c.b16 %v1016, %v1015
          %v1104 = vpack.c.b16 %v1018, %v1017
          %v1105 = vpack.c.b16 %v1020, %v1019
          %v1106 = vpack.c.b16 %v1022, %v1021
          %v1107 = vpack.c.b16 %v1024, %v1023
          %v1108 = vpack.c.b16 %v1026, %v1025
          %v1109 = vpack.c.b16 %v1028, %v1027
          %v1110 = vpack.c.b16 %v1030, %v1029
          %v1111 = vpack.c.b16 %v1032, %v1031
          %v1112 = vpack.c.b16 %v1034, %v1033
          %v1113 = vpack.c.b16 %v1036, %v1035
          %v1114 = vpack.c.b16 %v1038, %v1037
          %v1115 = vpack.c.b16 %v1040, %v1039
          %v1116 = vpack.c.b16 %v1042, %v1041
          %v1117 = vpack.c.b16 %v1044, %v1043
          %v1118 = vpack.c.b16 %v1046, %v1045
          %v1119 = vpack.c.b16 %v1048, %v1047
          %v1120 = vpack.c.b16 %v1050, %v1049
          %v1121 = vpack.c.b16 %v1052, %v1051
          %v1122 = vpack.c.b16 %v1054, %v1053
          %v1123 = vpack.c.b16 %v1056, %v1055
          %v1124 = vpack.c.b16 %v1058, %v1057
          %v1125 = vpack.c.b16 %v1060, %v1059
          %v1126 = vpack.c.b16 %v1062, %v1061
          %v1127 = vpack.c.b16 %v1064, %v1063
          %v1128 = vpack.c.b16 %v1066, %v1065
          %v1129 = vpack.c.b16 %v1068, %v1067
          %v1130 = vpack.c.b16 %v1070, %v1069
          %v1131 = vpack.c.b16 %v1072, %v1071
          %v1132 = vpack.c.b16 %v1074, %v1073
          %v1133 = vpack.c.b16 %v1076, %v1075
          %v1134 = vpack.c.b16 %v1078, %v1077
          %v1135 = vpack.c.b16 %v1080, %v1079
          %v1136 = vpack.c.b16 %v1082, %v1081
          %v1137 = vpack.c.b16 %v1084, %v1083
          %v1138 = vpack.c.b16 %v1086, %v1085
          %v1139 = vpack.c.b16 %v1088, %v1087
          %v1140 = vpack.c.b16 %v1090, %v1089
          %v1141 = vpack.c.b16 %v1092, %v1091
          %v1142 = vpack.c.b16 %v1094, %v1093
          %1191 = vmatprep.subr.bf16.mxu0 0
          %1192 = vmatpush1.bf16.msra.mxu0 %v1095
          %1193 = vmatprep.subr.bf16.mxu0 0
          %1194 = vmatpush1.bf16.msra.mxu0 %v1096
          %1195 = vmatprep.subr.bf16.mxu0 0
          %1196 = vmatpush1.bf16.msra.mxu0 %v1097
          %1197 = vmatprep.subr.bf16.mxu0 0
          %1198 = vmatpush1.bf16.msra.mxu0 %v1098
          %1199 = vmatprep.subr.bf16.mxu0 0
          %1200 = vmatpush1.bf16.msra.mxu0 %v1099
          %1201 = vmatprep.subr.bf16.mxu0 0
          %1202 = vmatpush1.bf16.msra.mxu0 %v1100
          %1203 = vmatprep.subr.bf16.mxu0 0
          %1204 = vmatpush1.bf16.msra.mxu0 %v1101
          %1205 = vmatprep.subr.bf16.mxu0 0
          %1206 = vmatpush1.bf16.msra.mxu0 %v1102
          %1207 = vmatprep.subr.bf16.mxu0 0
          %1208 = vmatpush1.bf16.msra.mxu0 %v1103
          %1209 = vmatprep.subr.bf16.mxu0 0
          %1210 = vmatpush1.bf16.msra.mxu0 %v1104
          %1211 = vmatprep.subr.bf16.mxu0 0
          %1212 = vmatpush1.bf16.msra.mxu0 %v1105
          %1213 = vmatprep.subr.bf16.mxu0 0
          %1214 = vmatpush1.bf16.msra.mxu0 %v1106
          %1215 = vmatprep.subr.bf16.mxu0 0
          %1216 = vmatpush1.bf16.msra.mxu0 %v1107
          %1217 = vmatprep.subr.bf16.mxu0 0
          %1218 = vmatpush1.bf16.msra.mxu0 %v1108
          %1219 = vmatprep.subr.bf16.mxu0 0
          %1220 = vmatpush1.bf16.msra.mxu0 %v1109
          %1221 = vmatprep.subr.bf16.mxu0 0
          %1222 = vmatpush1.bf16.msra.mxu0 %v1110
          %1223 = vmatprep.mubr.bf16.mxu0 %v892
          %1224 = vmatmul.mubr.bf16.gmra.mrb[0].mxu0 %v891
          %v1225 = vpop.f32.mrb[0].mxu0
          %v1226 = vadd.f32 %v871, %v1225
          %v1227 = vpop.f32.mrb[0].mxu0
          %v1228 = vpop.f32.mrb[0].mxu0
          %v1229 = vadd.f32 %v872, %v1228
          %v1230 = vpop.f32.mrb[0].mxu0
          %1231 = vdwg.mxu0
          %1232 = vmatprep.subr.bf16.mxu0 0
          %1233 = vmatpush1.bf16.msra.mxu0 %v1111
          %1234 = vmatprep.subr.bf16.mxu0 0
          %1235 = vmatpush1.bf16.msra.mxu0 %v1112
          %1236 = vmatprep.subr.bf16.mxu0 0
          %1237 = vmatpush1.bf16.msra.mxu0 %v1113
          %1238 = vmatprep.subr.bf16.mxu0 0
          %1239 = vmatpush1.bf16.msra.mxu0 %v1114
          %1240 = vmatprep.subr.bf16.mxu0 0
          %1241 = vmatpush1.bf16.msra.mxu0 %v1115
          %1242 = vmatprep.subr.bf16.mxu0 0
          %1243 = vmatpush1.bf16.msra.mxu0 %v1116
          %1244 = vmatprep.subr.bf16.mxu0 0
          %1245 = vmatpush1.bf16.msra.mxu0 %v1117
          %1246 = vmatprep.subr.bf16.mxu0 0
          %1247 = vmatpush1.bf16.msra.mxu0 %v1118
          %1248 = vmatprep.subr.bf16.mxu0 0
          %1249 = vmatpush1.bf16.msra.mxu0 %v1119
          %1250 = vmatprep.subr.bf16.mxu0 0
          %1251 = vmatpush1.bf16.msra.mxu0 %v1120
          %1252 = vmatprep.subr.bf16.mxu0 0
          %1253 = vmatpush1.bf16.msra.mxu0 %v1121
          %1254 = vmatprep.subr.bf16.mxu0 0
          %1255 = vmatpush1.bf16.msra.mxu0 %v1122
          %1256 = vmatprep.subr.bf16.mxu0 0
          %1257 = vmatpush1.bf16.msra.mxu0 %v1123
          %1258 = vmatprep.subr.bf16.mxu0 0
          %1259 = vmatpush1.bf16.msra.mxu0 %v1124
          %1260 = vmatprep.subr.bf16.mxu0 0
          %1261 = vmatpush1.bf16.msra.mxu0 %v1125
          %1262 = vmatprep.subr.bf16.mxu0 0
          %1263 = vmatpush1.bf16.msra.mxu0 %v1126
          %1264 = vmatprep.mubr.bf16.mxu0 %v894
          %1265 = vmatmul.mubr.bf16.gmra.mrb[0].mxu0 %v893
          %v1266 = vpop.f32.mrb[0].mxu0
          %v1267 = vadd.f32 %v1226, %v1266
          %v1268 = vpop.f32.mrb[0].mxu0
          %v1269 = vpop.f32.mrb[0].mxu0
          %v1270 = vadd.f32 %v1229, %v1269
          %v1271 = vpop.f32.mrb[0].mxu0
          %1272 = vdwg.mxu0
          %1273 = vmatprep.subr.bf16.mxu0 0
          %1274 = vmatpush1.bf16.msra.mxu0 %v1127
          %1275 = vmatprep.subr.bf16.mxu0 0
          %1276 = vmatpush1.bf16.msra.mxu0 %v1128
          %1277 = vmatprep.subr.bf16.mxu0 0
          %1278 = vmatpush1.bf16.msra.mxu0 %v1129
          %1279 = vmatprep.subr.bf16.mxu0 0
          %1280 = vmatpush1.bf16.msra.mxu0 %v1130
          %1281 = vmatprep.subr.bf16.mxu0 0
          %1282 = vmatpush1.bf16.msra.mxu0 %v1131
          %1283 = vmatprep.subr.bf16.mxu0 0
          %1284 = vmatpush1.bf16.msra.mxu0 %v1132
          %1285 = vmatprep.subr.bf16.mxu0 0
          %1286 = vmatpush1.bf16.msra.mxu0 %v1133
          %1287 = vmatprep.subr.bf16.mxu0 0
          %1288 = vmatpush1.bf16.msra.mxu0 %v1134
          %1289 = vmatprep.subr.bf16.mxu0 0
          %1290 = vmatpush1.bf16.msra.mxu0 %v1135
          %1291 = vmatprep.subr.bf16.mxu0 0
          %1292 = vmatpush1.bf16.msra.mxu0 %v1136
          %1293 = vmatprep.subr.bf16.mxu0 0
          %1294 = vmatpush1.bf16.msra.mxu0 %v1137
          %1295 = vmatprep.subr.bf16.mxu0 0
          %1296 = vmatpush1.bf16.msra.mxu0 %v1138
          %1297 = vmatprep.subr.bf16.mxu0 0
          %1298 = vmatpush1.bf16.msra.mxu0 %v1139
          %1299 = vmatprep.subr.bf16.mxu0 0
          %1300 = vmatpush1.bf16.msra.mxu0 %v1140
          %1301 = vmatprep.subr.bf16.mxu0 0
          %1302 = vmatpush1.bf16.msra.mxu0 %v1141
          %1303 = vmatprep.subr.bf16.mxu0 0
          %1304 = vmatpush1.bf16.msra.mxu0 %v1142
          %1305 = vmatprep.mubr.bf16.mxu0 %v896
          %1306 = vmatmul.mubr.bf16.gmra.mrb[0].mxu0 %v895
          %v1307 = vpop.f32.mrb[0].mxu0
          %v1308 = vadd.f32 %v1267, %v1307
          %v1309 = vpop.f32.mrb[0].mxu0
          %v1310 = vpop.f32.mrb[0].mxu0
          %v1311 = vadd.f32 %v1270, %v1310
          %v1312 = vpop.f32.mrb[0].mxu0
          %1313 = vdwg.mxu0
          %vm1314 = vcmask 261120
          %1315 = vst.msk [vmem:[#allocation2] sm:$0xff] %vm1314, %v1308
          %vm1316 = vcmask 254976
          %1317 = vst.msk [vmem:[#allocation2 + $0x8] sm:$0x3] %vm1316, %v1311
        $region100: #{deit_forward.1} parent=95 // pred_fallthru
          _
        %v1318 = vld [vmem:[#allocation2] sm:$0xff]
        %v1319 = vld [vmem:[#allocation2 + $0x8] sm:$0x3]
        %v1320 = vld [vmem:[%s721] sm:$0x1]
        %v1321 = vld [vmem:[%s724] sm:$0x1]
        %vm1322 = vcmask 261120
        %v1323 = vsel %vm1322, %v1318, 0.0
        %1324 = vadd.xlane.f32.xlu0 %v1323
        %v1325 = vpop.xlane.xlu0 %1324
        %vm1326 = vcmask 254976
        %v1327 = vsel %vm1326, %v1319, 0.0
        %1328 = vadd.xlane.f32.xlu0 %v1327
        %v1329 = vpop.xlane.xlu0 %1328
        %v1330 = vrcp.pop 32.0
        %v1331 = vmul.f32 %v1325, %v1330
        %v1332 = vmul.f32 %v1329, %v1330
        %v1333 = vsub.f32 %v1318, %v1331
        %v1334 = vsub.f32 %v1319, %v1332
        %v1335 = vmul.f32 %v1333, %v1333
        %v1336 = vmul.f32 %v1334, %v1334
        %v1337 = vsel %vm1322, %v1335, 0.0
        %1338 = vadd.xlane.f32.xlu0 %v1337
        %v1339 = vpop.xlane.xlu0 %1338
        %v1340 = vsel %vm1326, %v1336, 0.0
        %1341 = vadd.xlane.f32.xlu0 %v1340
        %v1342 = vpop.xlane.xlu0 %1341
        %v1343 = vmul.f32 %v1339, %v1330
        %v1344 = vmul.f32 %v1342, %v1330
        %v1345 = vadd.f32 %v1343, 1e-06
        %v1346 = vadd.f32 %v1344, 1e-06
        %v1347 = vrsqrt.pop %v1345
        %v1348 = vrsqrt.pop %v1346
        %v1349 = vmul.f32 %v1333, %v1347
        %v1350 = vmul.f32 %v1334, %v1348
        %v1352 = vlaneseq
        %v1353 = vshrl.u32 %v1352, 7
        %v1354 = vsub.s32 0, %v1353
        %v1355 = vrot.slane %v1320, %v1354
        %v1357 = vmul.f32 %v1349, %v1355
        %v1358 = vmul.f32 %v1350, %v1355
        %v1360 = vlaneseq
        %v1361 = vshrl.u32 %v1360, 7
        %v1362 = vsub.s32 0, %v1361
        %v1363 = vrot.slane %v1321, %v1362
        %v1365 = vadd.f32 %v1357, %v1363
        %v1366 = vadd.f32 %v1358, %v1363
        %v1367 = vpack.c.bf16 %v1366, %v1365
        %v1368 = vld [vmem:[%s729] sm:$0xf]
        %v1369 = vld [vmem:[%s729 + $0x4] sm:$0xf]
        %v1370 = vld [vmem:[%s729 + $0x8] sm:$0xf]
        %v1371 = vld [vmem:[%s729 + $0xc] sm:$0xf]
        %v1372 = vld [vmem:[%s733] sm:$0x1]
        %v1374 = vlaneseq
        %v1375 = vshrl.u32 %v1374, 7
        %v1376 = vsub.s32 0, %v1375
        %v1377 = vrot.slane %v1372, %v1376
        %v1383 = vunpack.c.l.b16 %v1368
        %v1384 = vunpack.c.l.b16 %v1369
        %v1385 = vunpack.c.l.b16 %v1370
        %v1386 = vunpack.c.l.b16 %v1371
        %v1387 = vpack.c.b16 %v1384, %v1383
        %v1388 = vpack.c.b16 %v1386, %v1385
        %v1392 = vsel %vm1322, %v1367, 0
        %1394 = vmatprep.subr.bf16.mxu0 0
        %1395 = vmatpush1.bf16.msra.mxu0 %v1387
        %1396 = vmatprep.subr.bf16.mxu0 0
        %1397 = vmatpush1.bf16.msra.mxu0 %v1388
        %1398 = vmatprep.subr.bf16.mxu0 0
        %1399 = vmatpush1.bf16.msra.mxu0 0
        %1400 = vmatprep.subr.bf16.mxu0 0
        %1401 = vmatpush1.bf16.msra.mxu0 0
        %1402 = vmatprep.subr.bf16.mxu0 0
        %1403 = vmatpush1.bf16.msra.mxu0 0
        %1404 = vmatprep.subr.bf16.mxu0 0
        %1405 = vmatpush1.bf16.msra.mxu0 0
        %1406 = vmatprep.subr.bf16.mxu0 0
        %1407 = vmatpush1.bf16.msra.mxu0 0
        %1408 = vmatprep.subr.bf16.mxu0 0
        %1409 = vmatpush1.bf16.msra.mxu0 0
        %1410 = vmatprep.subr.bf16.mxu0 0
        %1411 = vmatpush1.bf16.msra.mxu0 0
        %1412 = vmatprep.subr.bf16.mxu0 0
        %1413 = vmatpush1.bf16.msra.mxu0 0
        %1414 = vmatprep.subr.bf16.mxu0 0
        %1415 = vmatpush1.bf16.msra.mxu0 0
        %1416 = vmatprep.subr.bf16.mxu0 0
        %1417 = vmatpush1.bf16.msra.mxu0 0
        %1418 = vmatprep.subr.bf16.mxu0 0
        %1419 = vmatpush1.bf16.msra.mxu0 0
        %1420 = vmatprep.subr.bf16.mxu0 0
        %1421 = vmatpush1.bf16.msra.mxu0 0
        %1422 = vmatprep.subr.bf16.mxu0 0
        %1423 = vmatpush1.bf16.msra.mxu0 0
        %1424 = vmatprep.subr.bf16.mxu0 0
        %1425 = vmatpush1.bf16.msra.mxu0 0
        %1426 = vmatprep.mubr.bf16.mxu0 0
        %1427 = vmatmul.mubr.bf16.gmra.mrb[0].mxu0 %v1392
        %v1428 = vpop.f32.mrb[0].mxu0
        %v1429 = vadd.f32 %v1377, %v1428
        %v1430 = vpop.f32.mrb[0].mxu0
        %v1431 = vpop.f32.mrb[0].mxu0
        %v1432 = vadd.f32 %v1377, %v1431
        %v1433 = vpop.f32.mrb[0].mxu0
        %1434 = vdwg.mxu0
        %s1435 = scalar_lea.vmem %s729, 16
        %v1436 = vld [vmem:[%s1435] sm:$0xf]
        %v1437 = vld [vmem:[%s1435 + $0x4] sm:$0xf]
        %v1438 = vld [vmem:[%s1435 + $0x8] sm:$0xf]
        %v1439 = vld [vmem:[%s1435 + $0xc] sm:$0xf]
        %s1440 = scalar_lea.vmem %s733, 1
        %v1441 = vld [vmem:[%s1440] sm:$0x1]
        %v1443 = vlaneseq
        %v1444 = vshrl.u32 %v1443, 7
        %v1445 = vsub.s32 0, %v1444
        %v1446 = vrot.slane %v1441, %v1445
        %v1452 = vunpack.c.l.b16 %v1436
        %v1453 = vunpack.c.l.b16 %v1437
        %v1454 = vunpack.c.l.b16 %v1438
        %v1455 = vunpack.c.l.b16 %v1439
        %v1456 = vpack.c.b16 %v1453, %v1452
        %v1457 = vpack.c.b16 %v1455, %v1454
        %1460 = vmatprep.subr.bf16.mxu0 0
        %1461 = vmatpush1.bf16.msra.mxu0 %v1456
        %1462 = vmatprep.subr.bf16.mxu0 0
        %1463 = vmatpush1.bf16.msra.mxu0 %v1457
        %1464 = vmatprep.subr.bf16.mxu0 0
        %1465 = vmatpush1.bf16.msra.mxu0 0
        %1466 = vmatprep.subr.bf16.mxu0 0
        %1467 = vmatpush1.bf16.msra.mxu0 0
        %1468 = vmatprep.subr.bf16.mxu0 0
        %1469 = vmatpush1.bf16.msra.mxu0 0
        %1470 = vmatprep.subr.bf16.mxu0 0
        %1471 = vmatpush1.bf16.msra.mxu0 0
        %1472 = vmatprep.subr.bf16.mxu0 0
        %1473 = vmatpush1.bf16.msra.mxu0 0
        %1474 = vmatprep.subr.bf16.mxu0 0
        %1475 = vmatpush1.bf16.msra.mxu0 0
        %1476 = vmatprep.subr.bf16.mxu0 0
        %1477 = vmatpush1.bf16.msra.mxu0 0
        %1478 = vmatprep.subr.bf16.mxu0 0
        %1479 = vmatpush1.bf16.msra.mxu0 0
        %1480 = vmatprep.subr.bf16.mxu0 0
        %1481 = vmatpush1.bf16.msra.mxu0 0
        %1482 = vmatprep.subr.bf16.mxu0 0
        %1483 = vmatpush1.bf16.msra.mxu0 0
        %1484 = vmatprep.subr.bf16.mxu0 0
        %1485 = vmatpush1.bf16.msra.mxu0 0
        %1486 = vmatprep.subr.bf16.mxu0 0
        %1487 = vmatpush1.bf16.msra.mxu0 0
        %1488 = vmatprep.subr.bf16.mxu0 0
        %1489 = vmatpush1.bf16.msra.mxu0 0
        %1490 = vmatprep.subr.bf16.mxu0 0
        %1491 = vmatpush1.bf16.msra.mxu0 0
        %1492 = vmatprep.mubr.bf16.mxu0 0
        %1493 = vmatmul.mubr.bf16.gmra.mrb[0].mxu0 %v1392
        %v1494 = vpop.f32.mrb[0].mxu0
        %v1495 = vadd.f32 %v1446, %v1494
        %v1496 = vpop.f32.mrb[0].mxu0
        %v1497 = vpop.f32.mrb[0].mxu0
        %v1498 = vadd.f32 %v1446, %v1497
        %v1499 = vpop.f32.mrb[0].mxu0
        %1500 = vdwg.mxu0
        %s1501 = scalar_lea.vmem %s729, 32
        %v1502 = vld [vmem:[%s1501] sm:$0xf]
        %v1503 = vld [vmem:[%s1501 + $0x4] sm:$0xf]
        %v1504 = vld [vmem:[%s1501 + $0x8] sm:$0xf]
        %v1505 = vld [vmem:[%s1501 + $0xc] sm:$0xf]
        %s1506 = scalar_lea.vmem %s733, 2
        %v1507 = vld [vmem:[%s1506] sm:$0x1]
        %v1509 = vlaneseq
        %v1510 = vshrl.u32 %v1509, 7
        %v1511 = vsub.s32 0, %v1510
        %v1512 = vrot.slane %v1507, %v1511
        %v1518 = vunpack.c.l.b16 %v1502
        %v1519 = vunpack.c.l.b16 %v1503
        %v1520 = vunpack.c.l.b16 %v1504
        %v1521 = vunpack.c.l.b16 %v1505
        %v1522 = vpack.c.b16 %v1519, %v1518
        %v1523 = vpack.c.b16 %v1521, %v1520
        %1526 = vmatprep.subr.bf16.mxu0 0
        %1527 = vmatpush1.bf16.msra.mxu0 %v1522
        %1528 = vmatprep.subr.bf16.mxu0 0
        %1529 = vmatpush1.bf16.msra.mxu0 %v1523
        %1530 = vmatprep.subr.bf16.mxu0 0
        %1531 = vmatpush1.bf16.msra.mxu0 0
        %1532 = vmatprep.subr.bf16.mxu0 0
        %1533 = vmatpush1.bf16.msra.mxu0 0
        %1534 = vmatprep.subr.bf16.mxu0 0
        %1535 = vmatpush1.bf16.msra.mxu0 0
        %1536 = vmatprep.subr.bf16.mxu0 0
        %1537 = vmatpush1.bf16.msra.mxu0 0
        %1538 = vmatprep.subr.bf16.mxu0 0
        %1539 = vmatpush1.bf16.msra.mxu0 0
        %1540 = vmatprep.subr.bf16.mxu0 0
        %1541 = vmatpush1.bf16.msra.mxu0 0
        %1542 = vmatprep.subr.bf16.mxu0 0
        %1543 = vmatpush1.bf16.msra.mxu0 0
        %1544 = vmatprep.subr.bf16.mxu0 0
        %1545 = vmatpush1.bf16.msra.mxu0 0
        %1546 = vmatprep.subr.bf16.mxu0 0
        %1547 = vmatpush1.bf16.msra.mxu0 0
        %1548 = vmatprep.subr.bf16.mxu0 0
        %1549 = vmatpush1.bf16.msra.mxu0 0
        %1550 = vmatprep.subr.bf16.mxu0 0
        %1551 = vmatpush1.bf16.msra.mxu0 0
        %1552 = vmatprep.subr.bf16.mxu0 0
        %1553 = vmatpush1.bf16.msra.mxu0 0
        %1554 = vmatprep.subr.bf16.mxu0 0
        %1555 = vmatpush1.bf16.msra.mxu0 0
        %1556 = vmatprep.subr.bf16.mxu0 0
        %1557 = vmatpush1.bf16.msra.mxu0 0
        %1558 = vmatprep.mubr.bf16.mxu0 0
        %1559 = vmatmul.mubr.bf16.gmra.mrb[0].mxu0 %v1392
        %v1560 = vpop.f32.mrb[0].mxu0
        %v1561 = vadd.f32 %v1512, %v1560
        %v1562 = vpop.f32.mrb[0].mxu0
        %v1563 = vpop.f32.mrb[0].mxu0
        %v1564 = vadd.f32 %v1512, %v1563
        %v1565 = vpop.f32.mrb[0].mxu0
        %1566 = vdwg.mxu0
        %vm1569 = vcmask 1042432
        %v1570 = vrot.slane %v1429, 5
        %v1571 = vrot.slane %v1432, 5
        %v1572 = vsel %vm1569, %v1570, %v1571
        %1574 = vrot.lane.b32.xlu0 %v1429, 120
        %v1575 = vpop.permute.xlu0 %1574
        %1577 = vrot.lane.b32.xlu0 %v1572, 120
        %v1578 = vpop.permute.xlu0 %1577
        %1580 = vrot.lane.b32.xlu0 %v1429, 112
        %v1581 = vpop.permute.xlu0 %1580
        %1583 = vrot.lane.b32.xlu0 %v1572, 112
        %v1584 = vpop.permute.xlu0 %1583
        %1586 = vrot.lane.b32.xlu0 %v1429, 104
        %v1587 = vpop.permute.xlu0 %1586
        %1589 = vrot.lane.b32.xlu0 %v1572, 104
        %v1590 = vpop.permute.xlu0 %1589
        %v1592 = vpack.c.bf16 %v1429, %v1429
        %v1593 = vpack.c.bf16 %v1572, %v1572
        %v1594 = vpack.c.bf16 %v1575, %v1575
        %v1595 = vpack.c.bf16 %v1578, %v1578
        %v1596 = vpack.c.bf16 %v1581, %v1581
        %v1597 = vpack.c.bf16 %v1584, %v1584
        %v1598 = vpack.c.bf16 %v1587, %v1587
        %v1599 = vpack.c.bf16 %v1590, %v1590
        %v1602 = vrot.slane %v1495, 5
        %v1603 = vrot.slane %v1498, 5
        %v1604 = vsel %vm1569, %v1602, %v1603
        %1606 = vrot.lane.b32.xlu0 %v1495, 120
        %v1607 = vpop.permute.xlu0 %1606
        %1609 = vrot.lane.b32.xlu0 %v1604, 120
        %v1610 = vpop.permute.xlu0 %1609
        %1612 = vrot.lane.b32.xlu0 %v1495, 112
        %v1613 = vpop.permute.xlu0 %1612
        %1615 = vrot.lane.b32.xlu0 %v1604, 112
        %v1616 = vpop.permute.xlu0 %1615
        %1618 = vrot.lane.b32.xlu0 %v1495, 104
        %v1619 = vpop.permute.xlu0 %1618
        %1621 = vrot.lane.b32.xlu0 %v1604, 104
        %v1622 = vpop.permute.xlu0 %1621
        %v1624 = vpack.c.bf16 %v1495, %v1495
        %v1625 = vpack.c.bf16 %v1604, %v1604
        %v1626 = vpack.c.bf16 %v1607, %v1607
        %v1627 = vpack.c.bf16 %v1610, %v1610
        %v1628 = vpack.c.bf16 %v1613, %v1613
        %v1629 = vpack.c.bf16 %v1616, %v1616
        %v1630 = vpack.c.bf16 %v1619, %v1619
        %v1631 = vpack.c.bf16 %v1622, %v1622
        %v1634 = vrot.slane %v1561, 5
        %v1635 = vrot.slane %v1564, 5
        %v1636 = vsel %vm1569, %v1634, %v1635
        %1638 = vrot.lane.b32.xlu0 %v1561, 120
        %v1639 = vpop.permute.xlu0 %1638
        %1641 = vrot.lane.b32.xlu0 %v1636, 120
        %v1642 = vpop.permute.xlu0 %1641
        %1644 = vrot.lane.b32.xlu0 %v1561, 112
        %v1645 = vpop.permute.xlu0 %1644
        %1647 = vrot.lane.b32.xlu0 %v1636, 112
        %v1648 = vpop.permute.xlu0 %1647
        %1650 = vrot.lane.b32.xlu0 %v1561, 104
        %v1651 = vpop.permute.xlu0 %1650
        %1653 = vrot.lane.b32.xlu0 %v1636, 104
        %v1654 = vpop.permute.xlu0 %1653
        %v1656 = vpack.c.bf16 %v1561, %v1561
        %v1657 = vpack.c.bf16 %v1636, %v1636
        %v1658 = vpack.c.bf16 %v1639, %v1639
        %v1659 = vpack.c.bf16 %v1642, %v1642
        %v1660 = vpack.c.bf16 %v1645, %v1645
        %v1661 = vpack.c.bf16 %v1648, %v1648
        %v1662 = vpack.c.bf16 %v1651, %v1651
        %v1663 = vpack.c.bf16 %v1654, %v1654
        %vm1664 = vcmask 64512
        %v1666 = vsel %vm1664, %v1592, 0
        %v1669 = vsel %vm1664, %v1624, 0
        %1671 = vmatprep.subr.bf16.mxu0 0
        %1672 = vmatpush1.bf16.xpose.msra.mxu0 %v1669
        %1673 = vmatprep.subr.bf16.mxu0 0
        %1674 = vmatpush1.bf16.xpose.msra.mxu0 0
        %1675 = vmatprep.subr.bf16.mxu0 0
        %1676 = vmatpush1.bf16.xpose.msra.mxu0 0
        %1677 = vmatprep.subr.bf16.mxu0 0
        %1678 = vmatpush1.bf16.xpose.msra.mxu0 0
        %1679 = vmatprep.subr.bf16.mxu0 0
        %1680 = vmatpush1.bf16.xpose.msra.mxu0 0
        %1681 = vmatprep.subr.bf16.mxu0 0
        %1682 = vmatpush1.bf16.xpose.msra.mxu0 0
        %1683 = vmatprep.subr.bf16.mxu0 0
        %1684 = vmatpush1.bf16.xpose.msra.mxu0 0
        %1685 = vmatprep.subr.bf16.mxu0 0
        %1686 = vmatpush1.bf16.xpose.msra.mxu0 0
        %1687 = vmatprep.subr.bf16.mxu0 0
        %1688 = vmatpush1.bf16.xpose.msra.mxu0 0
        %1689 = vmatprep.subr.bf16.mxu0 0
        %1690 = vmatpush1.bf16.xpose.msra.mxu0 0
        %1691 = vmatprep.subr.bf16.mxu0 0
        %1692 = vmatpush1.bf16.xpose.msra.mxu0 0
        %1693 = vmatprep.subr.bf16.mxu0 0
        %1694 = vmatpush1.bf16.xpose.msra.mxu0 0
        %1695 = vmatprep.subr.bf16.mxu0 0
        %1696 = vmatpush1.bf16.xpose.msra.mxu0 0
        %1697 = vmatprep.subr.bf16.mxu0 0
        %1698 = vmatpush1.bf16.xpose.msra.mxu0 0
        %1699 = vmatprep.subr.bf16.mxu0 0
        %1700 = vmatpush1.bf16.xpose.msra.mxu0 0
        %1701 = vmatprep.subr.bf16.mxu0 0
        %1702 = vmatpush1.bf16.xpose.msra.mxu0 0
        %1703 = vmatprep.mubr.bf16.mxu0 0
        %1704 = vmatmul.mubr.bf16.gmra.mrb[0].mxu0 %v1666
        %v1705 = vpop.f32.mrb[0].mxu0
        %v1706 = vadd.f32 0.0, %v1705
        %v1707 = vpop.f32.mrb[0].mxu0
        %v1708 = vpop.f32.mrb[0].mxu0
        %v1709 = vpop.f32.mrb[0].mxu0
        %1710 = vdwg.mxu0
        %v1712 = vsel %vm1664, %v1593, 0
        %v1715 = vsel %vm1664, %v1625, 0
        %1717 = vmatprep.subr.bf16.mxu0 0
        %1718 = vmatpush1.bf16.xpose.msra.mxu0 %v1715
        %1719 = vmatprep.subr.bf16.mxu0 0
        %1720 = vmatpush1.bf16.xpose.msra.mxu0 0
        %1721 = vmatprep.subr.bf16.mxu0 0
        %1722 = vmatpush1.bf16.xpose.msra.mxu0 0
        %1723 = vmatprep.subr.bf16.mxu0 0
        %1724 = vmatpush1.bf16.xpose.msra.mxu0 0
        %1725 = vmatprep.subr.bf16.mxu0 0
        %1726 = vmatpush1.bf16.xpose.msra.mxu0 0
        %1727 = vmatprep.subr.bf16.mxu0 0
        %1728 = vmatpush1.bf16.xpose.msra.mxu0 0
        %1729 = vmatprep.subr.bf16.mxu0 0
        %1730 = vmatpush1.bf16.xpose.msra.mxu0 0
        %1731 = vmatprep.subr.bf16.mxu0 0
        %1732 = vmatpush1.bf16.xpose.msra.mxu0 0
        %1733 = vmatprep.subr.bf16.mxu0 0
        %1734 = vmatpush1.bf16.xpose.msra.mxu0 0
        %1735 = vmatprep.subr.bf16.mxu0 0
        %1736 = vmatpush1.bf16.xpose.msra.mxu0 0
        %1737 = vmatprep.subr.bf16.mxu0 0
        %1738 = vmatpush1.bf16.xpose.msra.mxu0 0
        %1739 = vmatprep.subr.bf16.mxu0 0
        %1740 = vmatpush1.bf16.xpose.msra.mxu0 0
        %1741 = vmatprep.subr.bf16.mxu0 0
        %1742 = vmatpush1.bf16.xpose.msra.mxu0 0
        %1743 = vmatprep.subr.bf16.mxu0 0
        %1744 = vmatpush1.bf16.xpose.msra.mxu0 0
        %1745 = vmatprep.subr.bf16.mxu0 0
        %1746 = vmatpush1.bf16.xpose.msra.mxu0 0
        %1747 = vmatprep.subr.bf16.mxu0 0
        %1748 = vmatpush1.bf16.xpose.msra.mxu0 0
        %1749 = vmatprep.mubr.bf16.mxu0 0
        %1750 = vmatmul.mubr.bf16.gmra.mrb[0].mxu0 %v1712
        %v1751 = vpop.f32.mrb[0].mxu0
        %v1752 = vadd.f32 0.0, %v1751
        %v1753 = vpop.f32.mrb[0].mxu0
        %v1754 = vpop.f32.mrb[0].mxu0
        %v1755 = vpop.f32.mrb[0].mxu0
        %1756 = vdwg.mxu0
        %v1758 = vsel %vm1664, %v1594, 0
        %v1761 = vsel %vm1664, %v1626, 0
        %1763 = vmatprep.subr.bf16.mxu0 0
        %1764 = vmatpush1.bf16.xpose.msra.mxu0 %v1761
        %1765 = vmatprep.subr.bf16.mxu0 0
        %1766 = vmatpush1.bf16.xpose.msra.mxu0 0
        %1767 = vmatprep.subr.bf16.mxu0 0
        %1768 = vmatpush1.bf16.xpose.msra.mxu0 0
        %1769 = vmatprep.subr.bf16.mxu0 0
        %1770 = vmatpush1.bf16.xpose.msra.mxu0 0
        %1771 = vmatprep.subr.bf16.mxu0 0
        %1772 = vmatpush1.bf16.xpose.msra.mxu0 0
        %1773 = vmatprep.subr.bf16.mxu0 0
        %1774 = vmatpush1.bf16.xpose.msra.mxu0 0
        %1775 = vmatprep.subr.bf16.mxu0 0
        %1776 = vmatpush1.bf16.xpose.msra.mxu0 0
        %1777 = vmatprep.subr.bf16.mxu0 0
        %1778 = vmatpush1.bf16.xpose.msra.mxu0 0
        %1779 = vmatprep.subr.bf16.mxu0 0
        %1780 = vmatpush1.bf16.xpose.msra.mxu0 0
        %1781 = vmatprep.subr.bf16.mxu0 0
        %1782 = vmatpush1.bf16.xpose.msra.mxu0 0
        %1783 = vmatprep.subr.bf16.mxu0 0
        %1784 = vmatpush1.bf16.xpose.msra.mxu0 0
        %1785 = vmatprep.subr.bf16.mxu0 0
        %1786 = vmatpush1.bf16.xpose.msra.mxu0 0
        %1787 = vmatprep.subr.bf16.mxu0 0
        %1788 = vmatpush1.bf16.xpose.msra.mxu0 0
        %1789 = vmatprep.subr.bf16.mxu0 0
        %1790 = vmatpush1.bf16.xpose.msra.mxu0 0
        %1791 = vmatprep.subr.bf16.mxu0 0
        %1792 = vmatpush1.bf16.xpose.msra.mxu0 0
        %1793 = vmatprep.subr.bf16.mxu0 0
        %1794 = vmatpush1.bf16.xpose.msra.mxu0 0
        %1795 = vmatprep.mubr.bf16.mxu0 0
        %1796 = vmatmul.mubr.bf16.gmra.mrb[0].mxu0 %v1758
        %v1797 = vpop.f32.mrb[0].mxu0
        %v1798 = vadd.f32 0.0, %v1797
        %v1799 = vpop.f32.mrb[0].mxu0
        %v1800 = vpop.f32.mrb[0].mxu0
        %v1801 = vpop.f32.mrb[0].mxu0
        %1802 = vdwg.mxu0
        %v1804 = vsel %vm1664, %v1595, 0
        %v1807 = vsel %vm1664, %v1627, 0
        %1809 = vmatprep.subr.bf16.mxu0 0
        %1810 = vmatpush1.bf16.xpose.msra.mxu0 %v1807
        %1811 = vmatprep.subr.bf16.mxu0 0
        %1812 = vmatpush1.bf16.xpose.msra.mxu0 0
        %1813 = vmatprep.subr.bf16.mxu0 0
        %1814 = vmatpush1.bf16.xpose.msra.mxu0 0
        %1815 = vmatprep.subr.bf16.mxu0 0
        %1816 = vmatpush1.bf16.xpose.msra.mxu0 0
        %1817 = vmatprep.subr.bf16.mxu0 0
        %1818 = vmatpush1.bf16.xpose.msra.mxu0 0
        %1819 = vmatprep.subr.bf16.mxu0 0
        %1820 = vmatpush1.bf16.xpose.msra.mxu0 0
        %1821 = vmatprep.subr.bf16.mxu0 0
        %1822 = vmatpush1.bf16.xpose.msra.mxu0 0
        %1823 = vmatprep.subr.bf16.mxu0 0
        %1824 = vmatpush1.bf16.xpose.msra.mxu0 0
        %1825 = vmatprep.subr.bf16.mxu0 0
        %1826 = vmatpush1.bf16.xpose.msra.mxu0 0
        %1827 = vmatprep.subr.bf16.mxu0 0
        %1828 = vmatpush1.bf16.xpose.msra.mxu0 0
        %1829 = vmatprep.subr.bf16.mxu0 0
        %1830 = vmatpush1.bf16.xpose.msra.mxu0 0
        %1831 = vmatprep.subr.bf16.mxu0 0
        %1832 = vmatpush1.bf16.xpose.msra.mxu0 0
        %1833 = vmatprep.subr.bf16.mxu0 0
        %1834 = vmatpush1.bf16.xpose.msra.mxu0 0
        %1835 = vmatprep.subr.bf16.mxu0 0
        %1836 = vmatpush1.bf16.xpose.msra.mxu0 0
        %1837 = vmatprep.subr.bf16.mxu0 0
        %1838 = vmatpush1.bf16.xpose.msra.mxu0 0
        %1839 = vmatprep.subr.bf16.mxu0 0
        %1840 = vmatpush1.bf16.xpose.msra.mxu0 0
        %1841 = vmatprep.mubr.bf16.mxu0 0
        %1842 = vmatmul.mubr.bf16.gmra.mrb[0].mxu0 %v1804
        %v1843 = vpop.f32.mrb[0].mxu0
        %v1844 = vadd.f32 0.0, %v1843
        %v1845 = vpop.f32.mrb[0].mxu0
        %v1846 = vpop.f32.mrb[0].mxu0
        %v1847 = vpop.f32.mrb[0].mxu0
        %1848 = vdwg.mxu0
        %v1850 = vsel %vm1664, %v1596, 0
        %v1853 = vsel %vm1664, %v1628, 0
        %1855 = vmatprep.subr.bf16.mxu0 0
        %1856 = vmatpush1.bf16.xpose.msra.mxu0 %v1853
        %1857 = vmatprep.subr.bf16.mxu0 0
        %1858 = vmatpush1.bf16.xpose.msra.mxu0 0
        %1859 = vmatprep.subr.bf16.mxu0 0
        %1860 = vmatpush1.bf16.xpose.msra.mxu0 0
        %1861 = vmatprep.subr.bf16.mxu0 0
        %1862 = vmatpush1.bf16.xpose.msra.mxu0 0
        %1863 = vmatprep.subr.bf16.mxu0 0
        %1864 = vmatpush1.bf16.xpose.msra.mxu0 0
        %1865 = vmatprep.subr.bf16.mxu0 0
        %1866 = vmatpush1.bf16.xpose.msra.mxu0 0
        %1867 = vmatprep.subr.bf16.mxu0 0
        %1868 = vmatpush1.bf16.xpose.msra.mxu0 0
        %1869 = vmatprep.subr.bf16.mxu0 0
        %1870 = vmatpush1.bf16.xpose.msra.mxu0 0
        %1871 = vmatprep.subr.bf16.mxu0 0
        %1872 = vmatpush1.bf16.xpose.msra.mxu0 0
        %1873 = vmatprep.subr.bf16.mxu0 0
        %1874 = vmatpush1.bf16.xpose.msra.mxu0 0
        %1875 = vmatprep.subr.bf16.mxu0 0
        %1876 = vmatpush1.bf16.xpose.msra.mxu0 0
        %1877 = vmatprep.subr.bf16.mxu0 0
        %1878 = vmatpush1.bf16.xpose.msra.mxu0 0
        %1879 = vmatprep.subr.bf16.mxu0 0
        %1880 = vmatpush1.bf16.xpose.msra.mxu0 0
        %1881 = vmatprep.subr.bf16.mxu0 0
        %1882 = vmatpush1.bf16.xpose.msra.mxu0 0
        %1883 = vmatprep.subr.bf16.mxu0 0
        %1884 = vmatpush1.bf16.xpose.msra.mxu0 0
        %1885 = vmatprep.subr.bf16.mxu0 0
        %1886 = vmatpush1.bf16.xpose.msra.mxu0 0
        %1887 = vmatprep.mubr.bf16.mxu0 0
        %1888 = vmatmul.mubr.bf16.gmra.mrb[0].mxu0 %v1850
        %v1889 = vpop.f32.mrb[0].mxu0
        %v1890 = vadd.f32 0.0, %v1889
        %v1891 = vpop.f32.mrb[0].mxu0
        %v1892 = vpop.f32.mrb[0].mxu0
        %v1893 = vpop.f32.mrb[0].mxu0
        %1894 = vdwg.mxu0
        %v1896 = vsel %vm1664, %v1597, 0
        %v1899 = vsel %vm1664, %v1629, 0
        %1901 = vmatprep.subr.bf16.mxu0 0
        %1902 = vmatpush1.bf16.xpose.msra.mxu0 %v1899
        %1903 = vmatprep.subr.bf16.mxu0 0
        %1904 = vmatpush1.bf16.xpose.msra.mxu0 0
        %1905 = vmatprep.subr.bf16.mxu0 0
        %1906 = vmatpush1.bf16.xpose.msra.mxu0 0
        %1907 = vmatprep.subr.bf16.mxu0 0
        %1908 = vmatpush1.bf16.xpose.msra.mxu0 0
        %1909 = vmatprep.subr.bf16.mxu0 0
        %1910 = vmatpush1.bf16.xpose.msra.mxu0 0
        %1911 = vmatprep.subr.bf16.mxu0 0
        %1912 = vmatpush1.bf16.xpose.msra.mxu0 0
        %1913 = vmatprep.subr.bf16.mxu0 0
        %1914 = vmatpush1.bf16.xpose.msra.mxu0 0
        %1915 = vmatprep.subr.bf16.mxu0 0
        %1916 = vmatpush1.bf16.xpose.msra.mxu0 0
        %1917 = vmatprep.subr.bf16.mxu0 0
        %1918 = vmatpush1.bf16.xpose.msra.mxu0 0
        %1919 = vmatprep.subr.bf16.mxu0 0
        %1920 = vmatpush1.bf16.xpose.msra.mxu0 0
        %1921 = vmatprep.subr.bf16.mxu0 0
        %1922 = vmatpush1.bf16.xpose.msra.mxu0 0
        %1923 = vmatprep.subr.bf16.mxu0 0
        %1924 = vmatpush1.bf16.xpose.msra.mxu0 0
        %1925 = vmatprep.subr.bf16.mxu0 0
        %1926 = vmatpush1.bf16.xpose.msra.mxu0 0
        %1927 = vmatprep.subr.bf16.mxu0 0
        %1928 = vmatpush1.bf16.xpose.msra.mxu0 0
        %1929 = vmatprep.subr.bf16.mxu0 0
        %1930 = vmatpush1.bf16.xpose.msra.mxu0 0
        %1931 = vmatprep.subr.bf16.mxu0 0
        %1932 = vmatpush1.bf16.xpose.msra.mxu0 0
        %1933 = vmatprep.mubr.bf16.mxu0 0
        %1934 = vmatmul.mubr.bf16.gmra.mrb[0].mxu0 %v1896
        %v1935 = vpop.f32.mrb[0].mxu0
        %v1936 = vadd.f32 0.0, %v1935
        %v1937 = vpop.f32.mrb[0].mxu0
        %v1938 = vpop.f32.mrb[0].mxu0
        %v1939 = vpop.f32.mrb[0].mxu0
        %1940 = vdwg.mxu0
        %v1942 = vsel %vm1664, %v1598, 0
        %v1945 = vsel %vm1664, %v1630, 0
        %1947 = vmatprep.subr.bf16.mxu0 0
        %1948 = vmatpush1.bf16.xpose.msra.mxu0 %v1945
        %1949 = vmatprep.subr.bf16.mxu0 0
        %1950 = vmatpush1.bf16.xpose.msra.mxu0 0
        %1951 = vmatprep.subr.bf16.mxu0 0
        %1952 = vmatpush1.bf16.xpose.msra.mxu0 0
        %1953 = vmatprep.subr.bf16.mxu0 0
        %1954 = vmatpush1.bf16.xpose.msra.mxu0 0
        %1955 = vmatprep.subr.bf16.mxu0 0
        %1956 = vmatpush1.bf16.xpose.msra.mxu0 0
        %1957 = vmatprep.subr.bf16.mxu0 0
        %1958 = vmatpush1.bf16.xpose.msra.mxu0 0
        %1959 = vmatprep.subr.bf16.mxu0 0
        %1960 = vmatpush1.bf16.xpose.msra.mxu0 0
        %1961 = vmatprep.subr.bf16.mxu0 0
        %1962 = vmatpush1.bf16.xpose.msra.mxu0 0
        %1963 = vmatprep.subr.bf16.mxu0 0
        %1964 = vmatpush1.bf16.xpose.msra.mxu0 0
        %1965 = vmatprep.subr.bf16.mxu0 0
        %1966 = vmatpush1.bf16.xpose.msra.mxu0 0
        %1967 = vmatprep.subr.bf16.mxu0 0
        %1968 = vmatpush1.bf16.xpose.msra.mxu0 0
        %1969 = vmatprep.subr.bf16.mxu0 0
        %1970 = vmatpush1.bf16.xpose.msra.mxu0 0
        %1971 = vmatprep.subr.bf16.mxu0 0
        %1972 = vmatpush1.bf16.xpose.msra.mxu0 0
        %1973 = vmatprep.subr.bf16.mxu0 0
        %1974 = vmatpush1.bf16.xpose.msra.mxu0 0
        %1975 = vmatprep.subr.bf16.mxu0 0
        %1976 = vmatpush1.bf16.xpose.msra.mxu0 0
        %1977 = vmatprep.subr.bf16.mxu0 0
        %1978 = vmatpush1.bf16.xpose.msra.mxu0 0
        %1979 = vmatprep.mubr.bf16.mxu0 0
        %1980 = vmatmul.mubr.bf16.gmra.mrb[0].mxu0 %v1942
        %v1981 = vpop.f32.mrb[0].mxu0
        %v1982 = vadd.f32 0.0, %v1981
        %v1983 = vpop.f32.mrb[0].mxu0
        %v1984 = vpop.f32.mrb[0].mxu0
        %v1985 = vpop.f32.mrb[0].mxu0
        %1986 = vdwg.mxu0
        %v1988 = vsel %vm1664, %v1599, 0
        %v1991 = vsel %vm1664, %v1631, 0
        %1993 = vmatprep.subr.bf16.mxu0 0
        %1994 = vmatpush1.bf16.xpose.msra.mxu0 %v1991
        %1995 = vmatprep.subr.bf16.mxu0 0
        %1996 = vmatpush1.bf16.xpose.msra.mxu0 0
        %1997 = vmatprep.subr.bf16.mxu0 0
        %1998 = vmatpush1.bf16.xpose.msra.mxu0 0
        %1999 = vmatprep.subr.bf16.mxu0 0
        %2000 = vmatpush1.bf16.xpose.msra.mxu0 0
        %2001 = vmatprep.subr.bf16.mxu0 0
        %2002 = vmatpush1.bf16.xpose.msra.mxu0 0
        %2003 = vmatprep.subr.bf16.mxu0 0
        %2004 = vmatpush1.bf16.xpose.msra.mxu0 0
        %2005 = vmatprep.subr.bf16.mxu0 0
        %2006 = vmatpush1.bf16.xpose.msra.mxu0 0
        %2007 = vmatprep.subr.bf16.mxu0 0
        %2008 = vmatpush1.bf16.xpose.msra.mxu0 0
        %2009 = vmatprep.subr.bf16.mxu0 0
        %2010 = vmatpush1.bf16.xpose.msra.mxu0 0
        %2011 = vmatprep.subr.bf16.mxu0 0
        %2012 = vmatpush1.bf16.xpose.msra.mxu0 0
        %2013 = vmatprep.subr.bf16.mxu0 0
        %2014 = vmatpush1.bf16.xpose.msra.mxu0 0
        %2015 = vmatprep.subr.bf16.mxu0 0
        %2016 = vmatpush1.bf16.xpose.msra.mxu0 0
        %2017 = vmatprep.subr.bf16.mxu0 0
        %2018 = vmatpush1.bf16.xpose.msra.mxu0 0
        %2019 = vmatprep.subr.bf16.mxu0 0
        %2020 = vmatpush1.bf16.xpose.msra.mxu0 0
        %2021 = vmatprep.subr.bf16.mxu0 0
        %2022 = vmatpush1.bf16.xpose.msra.mxu0 0
        %2023 = vmatprep.subr.bf16.mxu0 0
        %2024 = vmatpush1.bf16.xpose.msra.mxu0 0
        %2025 = vmatprep.mubr.bf16.mxu0 0
        %2026 = vmatmul.mubr.bf16.gmra.mrb[0].mxu0 %v1988
        %v2027 = vpop.f32.mrb[0].mxu0
        %v2028 = vadd.f32 0.0, %v2027
        %v2029 = vpop.f32.mrb[0].mxu0
        %v2030 = vpop.f32.mrb[0].mxu0
        %v2031 = vpop.f32.mrb[0].mxu0
        %2032 = vdwg.mxu0
        %vm2033 = vcmask 36864
        %v2034 = vsel %vm2033, %v1706, -inf
        %2035 = vmax.xlane.f32.xlu0 %v2034
        %v2036 = vpop.xlane.xlu0 %2035
        %v2037 = vsel %vm2033, %v1752, -inf
        %2038 = vmax.xlane.f32.xlu0 %v2037
        %v2039 = vpop.xlane.xlu0 %2038
        %v2040 = vsel %vm2033, %v1798, -inf
        %2041 = vmax.xlane.f32.xlu0 %v2040
        %v2042 = vpop.xlane.xlu0 %2041
        %v2043 = vsel %vm2033, %v1844, -inf
        %2044 = vmax.xlane.f32.xlu0 %v2043
        %v2045 = vpop.xlane.xlu0 %2044
        %v2046 = vsel %vm2033, %v1890, -inf
        %2047 = vmax.xlane.f32.xlu0 %v2046
        %v2048 = vpop.xlane.xlu0 %2047
        %v2049 = vsel %vm2033, %v1936, -inf
        %2050 = vmax.xlane.f32.xlu0 %v2049
        %v2051 = vpop.xlane.xlu0 %2050
        %v2052 = vsel %vm2033, %v1982, -inf
        %2053 = vmax.xlane.f32.xlu0 %v2052
        %v2054 = vpop.xlane.xlu0 %2053
        %v2055 = vsel %vm2033, %v2028, -inf
        %2056 = vmax.xlane.f32.xlu0 %v2055
        %v2057 = vpop.xlane.xlu0 %2056
        %v2058 = vsub.f32 %v1706, %v2036
        %v2059 = vsub.f32 %v1752, %v2039
        %v2060 = vsub.f32 %v1798, %v2042
        %v2061 = vsub.f32 %v1844, %v2045
        %v2062 = vsub.f32 %v1890, %v2048
        %v2063 = vsub.f32 %v1936, %v2051
        %v2064 = vsub.f32 %v1982, %v2054
        %v2065 = vsub.f32 %v2028, %v2057
        %v2066 = vmul.f32 %v2058, 1.442695
        %v2067 = vpow.pop %v2066
        %v2068 = vmul.f32 %v2059, 1.442695
        %v2069 = vpow.pop %v2068
        %v2070 = vmul.f32 %v2060, 1.442695
        %v2071 = vpow.pop %v2070
        %v2072 = vmul.f32 %v2061, 1.442695
        %v2073 = vpow.pop %v2072
        %v2074 = vmul.f32 %v2062, 1.442695
        %v2075 = vpow.pop %v2074
        %v2076 = vmul.f32 %v2063, 1.442695
        %v2077 = vpow.pop %v2076
        %v2078 = vmul.f32 %v2064, 1.442695
        %v2079 = vpow.pop %v2078
        %v2080 = vmul.f32 %v2065, 1.442695
        %v2081 = vpow.pop %v2080
        %v2082 = vsel %vm2033, %v2067, 0.0
        %2083 = vadd.xlane.f32.xlu0 %v2082
        %v2084 = vpop.xlane.xlu0 %2083
        %v2085 = vsel %vm2033, %v2069, 0.0
        %2086 = vadd.xlane.f32.xlu0 %v2085
        %v2087 = vpop.xlane.xlu0 %2086
        %v2088 = vsel %vm2033, %v2071, 0.0
        %2089 = vadd.xlane.f32.xlu0 %v2088
        %v2090 = vpop.xlane.xlu0 %2089
        %v2091 = vsel %vm2033, %v2073, 0.0
        %2092 = vadd.xlane.f32.xlu0 %v2091
        %v2093 = vpop.xlane.xlu0 %2092
        %v2094 = vsel %vm2033, %v2075, 0.0
        %2095 = vadd.xlane.f32.xlu0 %v2094
        %v2096 = vpop.xlane.xlu0 %2095
        %v2097 = vsel %vm2033, %v2077, 0.0
        %2098 = vadd.xlane.f32.xlu0 %v2097
        %v2099 = vpop.xlane.xlu0 %2098
        %v2100 = vsel %vm2033, %v2079, 0.0
        %2101 = vadd.xlane.f32.xlu0 %v2100
        %v2102 = vpop.xlane.xlu0 %2101
        %v2103 = vsel %vm2033, %v2081, 0.0
        %2104 = vadd.xlane.f32.xlu0 %v2103
        %v2105 = vpop.xlane.xlu0 %2104
        %v2106 = vrcp.pop %v2084
        %v2107 = vrcp.pop %v2087
        %v2108 = vrcp.pop %v2090
        %v2109 = vrcp.pop %v2093
        %v2110 = vrcp.pop %v2096
        %v2111 = vrcp.pop %v2099
        %v2112 = vrcp.pop %v2102
        %v2113 = vrcp.pop %v2105
        %v2114 = vmul.f32 %v2067, %v2106
        %v2115 = vmul.f32 %v2069, %v2107
        %v2116 = vmul.f32 %v2071, %v2108
        %v2117 = vmul.f32 %v2073, %v2109
        %v2118 = vmul.f32 %v2075, %v2110
        %v2119 = vmul.f32 %v2077, %v2111
        %v2120 = vmul.f32 %v2079, %v2112
        %v2121 = vmul.f32 %v2081, %v2113
        %v2122 = vpack.c.bf16 %v2114, %v2114
        %v2123 = vpack.c.bf16 %v2115, %v2115
        %v2124 = vpack.c.bf16 %v2116, %v2116
        %v2125 = vpack.c.bf16 %v2117, %v2117
        %v2126 = vpack.c.bf16 %v2118, %v2118
        %v2127 = vpack.c.bf16 %v2119, %v2119
        %v2128 = vpack.c.bf16 %v2120, %v2120
        %v2129 = vpack.c.bf16 %v2121, %v2121
        %vm2130 = vcmask 39936
        %v2132 = vsel %vm2130, %v2122, 0
        %vm2134 = vcmask 1041408
        %v2135 = vsel %vm2134, 4294967295, 65535
        %v2136 = vsel %vm1569, %v2135, 0
        %v2138 = vand.u32 %v1656, %v2136
        %2140 = vmatprep.subr.bf16.mxu0 0
        %2141 = vmatpush1.bf16.msra.mxu0 %v2138
        %2142 = vmatprep.subr.bf16.mxu0 0
        %2143 = vmatpush1.bf16.msra.mxu0 0
        %2144 = vmatprep.subr.bf16.mxu0 0
        %2145 = vmatpush1.bf16.msra.mxu0 0
        %2146 = vmatprep.subr.bf16.mxu0 0
        %2147 = vmatpush1.bf16.msra.mxu0 0
        %2148 = vmatprep.subr.bf16.mxu0 0
        %2149 = vmatpush1.bf16.msra.mxu0 0
        %2150 = vmatprep.subr.bf16.mxu0 0
        %2151 = vmatpush1.bf16.msra.mxu0 0
        %2152 = vmatprep.subr.bf16.mxu0 0
        %2153 = vmatpush1.bf16.msra.mxu0 0
        %2154 = vmatprep.subr.bf16.mxu0 0
        %2155 = vmatpush1.bf16.msra.mxu0 0
        %2156 = vmatprep.subr.bf16.mxu0 0
        %2157 = vmatpush1.bf16.msra.mxu0 0
        %2158 = vmatprep.subr.bf16.mxu0 0
        %2159 = vmatpush1.bf16.msra.mxu0 0
        %2160 = vmatprep.subr.bf16.mxu0 0
        %2161 = vmatpush1.bf16.msra.mxu0 0
        %2162 = vmatprep.subr.bf16.mxu0 0
        %2163 = vmatpush1.bf16.msra.mxu0 0
        %2164 = vmatprep.subr.bf16.mxu0 0
        %2165 = vmatpush1.bf16.msra.mxu0 0
        %2166 = vmatprep.subr.bf16.mxu0 0
        %2167 = vmatpush1.bf16.msra.mxu0 0
        %2168 = vmatprep.subr.bf16.mxu0 0
        %2169 = vmatpush1.bf16.msra.mxu0 0
        %2170 = vmatprep.subr.bf16.mxu0 0
        %2171 = vmatpush1.bf16.msra.mxu0 0
        %2172 = vmatprep.mubr.bf16.mxu0 0
        %2173 = vmatmul.mubr.bf16.gmra.mrb[0].mxu0 %v2132
        %v2174 = vpop.f32.mrb[0].mxu0
        %v2175 = vadd.f32 0.0, %v2174
        %v2176 = vpop.f32.mrb[0].mxu0
        %v2177 = vpop.f32.mrb[0].mxu0
        %v2178 = vpop.f32.mrb[0].mxu0
        %2179 = vdwg.mxu0
        %v2181 = vsel %vm2130, %v2123, 0
        %v2184 = vand.u32 %v1657, %v2136
        %2186 = vmatprep.subr.bf16.mxu0 0
        %2187 = vmatpush1.bf16.msra.mxu0 %v2184
        %2188 = vmatprep.subr.bf16.mxu0 0
        %2189 = vmatpush1.bf16.msra.mxu0 0
        %2190 = vmatprep.subr.bf16.mxu0 0
        %2191 = vmatpush1.bf16.msra.mxu0 0
        %2192 = vmatprep.subr.bf16.mxu0 0
        %2193 = vmatpush1.bf16.msra.mxu0 0
        %2194 = vmatprep.subr.bf16.mxu0 0
        %2195 = vmatpush1.bf16.msra.mxu0 0
        %2196 = vmatprep.subr.bf16.mxu0 0
        %2197 = vmatpush1.bf16.msra.mxu0 0
        %2198 = vmatprep.subr.bf16.mxu0 0
        %2199 = vmatpush1.bf16.msra.mxu0 0
        %2200 = vmatprep.subr.bf16.mxu0 0
        %2201 = vmatpush1.bf16.msra.mxu0 0
        %2202 = vmatprep.subr.bf16.mxu0 0
        %2203 = vmatpush1.bf16.msra.mxu0 0
        %2204 = vmatprep.subr.bf16.mxu0 0
        %2205 = vmatpush1.bf16.msra.mxu0 0
        %2206 = vmatprep.subr.bf16.mxu0 0
        %2207 = vmatpush1.bf16.msra.mxu0 0
        %2208 = vmatprep.subr.bf16.mxu0 0
        %2209 = vmatpush1.bf16.msra.mxu0 0
        %2210 = vmatprep.subr.bf16.mxu0 0
        %2211 = vmatpush1.bf16.msra.mxu0 0
        %2212 = vmatprep.subr.bf16.mxu0 0
        %2213 = vmatpush1.bf16.msra.mxu0 0
        %2214 = vmatprep.subr.bf16.mxu0 0
        %2215 = vmatpush1.bf16.msra.mxu0 0
        %2216 = vmatprep.subr.bf16.mxu0 0
        %2217 = vmatpush1.bf16.msra.mxu0 0
        %2218 = vmatprep.mubr.bf16.mxu0 0
        %2219 = vmatmul.mubr.bf16.gmra.mrb[0].mxu0 %v2181
        %v2220 = vpop.f32.mrb[0].mxu0
        %v2221 = vadd.f32 0.0, %v2220
        %v2222 = vpop.f32.mrb[0].mxu0
        %v2223 = vpop.f32.mrb[0].mxu0
        %v2224 = vpop.f32.mrb[0].mxu0
        %2225 = vdwg.mxu0
        %v2227 = vsel %vm2130, %v2124, 0
        %v2230 = vand.u32 %v1658, %v2136
        %2232 = vmatprep.subr.bf16.mxu0 0
        %2233 = vmatpush1.bf16.msra.mxu0 %v2230
        %2234 = vmatprep.subr.bf16.mxu0 0
        %2235 = vmatpush1.bf16.msra.mxu0 0
        %2236 = vmatprep.subr.bf16.mxu0 0
        %2237 = vmatpush1.bf16.msra.mxu0 0
        %2238 = vmatprep.subr.bf16.mxu0 0
        %2239 = vmatpush1.bf16.msra.mxu0 0
        %2240 = vmatprep.subr.bf16.mxu0 0
        %2241 = vmatpush1.bf16.msra.mxu0 0
        %2242 = vmatprep.subr.bf16.mxu0 0
        %2243 = vmatpush1.bf16.msra.mxu0 0
        %2244 = vmatprep.subr.bf16.mxu0 0
        %2245 = vmatpush1.bf16.msra.mxu0 0
        %2246 = vmatprep.subr.bf16.mxu0 0
        %2247 = vmatpush1.bf16.msra.mxu0 0
        %2248 = vmatprep.subr.bf16.mxu0 0
        %2249 = vmatpush1.bf16.msra.mxu0 0
        %2250 = vmatprep.subr.bf16.mxu0 0
        %2251 = vmatpush1.bf16.msra.mxu0 0
        %2252 = vmatprep.subr.bf16.mxu0 0
        %2253 = vmatpush1.bf16.msra.mxu0 0
        %2254 = vmatprep.subr.bf16.mxu0 0
        %2255 = vmatpush1.bf16.msra.mxu0 0
        %2256 = vmatprep.subr.bf16.mxu0 0
        %2257 = vmatpush1.bf16.msra.mxu0 0
        %2258 = vmatprep.subr.bf16.mxu0 0
        %2259 = vmatpush1.bf16.msra.mxu0 0
        %2260 = vmatprep.subr.bf16.mxu0 0
        %2261 = vmatpush1.bf16.msra.mxu0 0
        %2262 = vmatprep.subr.bf16.mxu0 0
        %2263 = vmatpush1.bf16.msra.mxu0 0
        %2264 = vmatprep.mubr.bf16.mxu0 0
        %2265 = vmatmul.mubr.bf16.gmra.mrb[0].mxu0 %v2227
        %v2266 = vpop.f32.mrb[0].mxu0
        %v2267 = vadd.f32 0.0, %v2266
        %v2268 = vpop.f32.mrb[0].mxu0
        %v2269 = vpop.f32.mrb[0].mxu0
        %v2270 = vpop.f32.mrb[0].mxu0
        %2271 = vdwg.mxu0
        %v2273 = vsel %vm2130, %v2125, 0
        %v2276 = vand.u32 %v1659, %v2136
        %2278 = vmatprep.subr.bf16.mxu0 0
        %2279 = vmatpush1.bf16.msra.mxu0 %v2276
        %2280 = vmatprep.subr.bf16.mxu0 0
        %2281 = vmatpush1.bf16.msra.mxu0 0
        %2282 = vmatprep.subr.bf16.mxu0 0
        %2283 = vmatpush1.bf16.msra.mxu0 0
        %2284 = vmatprep.subr.bf16.mxu0 0
        %2285 = vmatpush1.bf16.msra.mxu0 0
        %2286 = vmatprep.subr.bf16.mxu0 0
        %2287 = vmatpush1.bf16.msra.mxu0 0
        %2288 = vmatprep.subr.bf16.mxu0 0
        %2289 = vmatpush1.bf16.msra.mxu0 0
        %2290 = vmatprep.subr.bf16.mxu0 0
        %2291 = vmatpush1.bf16.msra.mxu0 0
        %2292 = vmatprep.subr.bf16.mxu0 0
        %2293 = vmatpush1.bf16.msra.mxu0 0
        %2294 = vmatprep.subr.bf16.mxu0 0
        %2295 = vmatpush1.bf16.msra.mxu0 0
        %2296 = vmatprep.subr.bf16.mxu0 0
        %2297 = vmatpush1.bf16.msra.mxu0 0
        %2298 = vmatprep.subr.bf16.mxu0 0
        %2299 = vmatpush1.bf16.msra.mxu0 0
        %2300 = vmatprep.subr.bf16.mxu0 0
        %2301 = vmatpush1.bf16.msra.mxu0 0
        %2302 = vmatprep.subr.bf16.mxu0 0
        %2303 = vmatpush1.bf16.msra.mxu0 0
        %2304 = vmatprep.subr.bf16.mxu0 0
        %2305 = vmatpush1.bf16.msra.mxu0 0
        %2306 = vmatprep.subr.bf16.mxu0 0
        %2307 = vmatpush1.bf16.msra.mxu0 0
        %2308 = vmatprep.subr.bf16.mxu0 0
        %2309 = vmatpush1.bf16.msra.mxu0 0
        %2310 = vmatprep.mubr.bf16.mxu0 0
        %2311 = vmatmul.mubr.bf16.gmra.mrb[0].mxu0 %v2273
        %v2312 = vpop.f32.mrb[0].mxu0
        %v2313 = vadd.f32 0.0, %v2312
        %v2314 = vpop.f32.mrb[0].mxu0
        %v2315 = vpop.f32.mrb[0].mxu0
        %v2316 = vpop.f32.mrb[0].mxu0
        %2317 = vdwg.mxu0
        %v2319 = vsel %vm2130, %v2126, 0
        %v2322 = vand.u32 %v1660, %v2136
        %2324 = vmatprep.subr.bf16.mxu0 0
        %2325 = vmatpush1.bf16.msra.mxu0 %v2322
        %2326 = vmatprep.subr.bf16.mxu0 0
        %2327 = vmatpush1.bf16.msra.mxu0 0
        %2328 = vmatprep.subr.bf16.mxu0 0
        %2329 = vmatpush1.bf16.msra.mxu0 0
        %2330 = vmatprep.subr.bf16.mxu0 0
        %2331 = vmatpush1.bf16.msra.mxu0 0
        %2332 = vmatprep.subr.bf16.mxu0 0
        %2333 = vmatpush1.bf16.msra.mxu0 0
        %2334 = vmatprep.subr.bf16.mxu0 0
        %2335 = vmatpush1.bf16.msra.mxu0 0
        %2336 = vmatprep.subr.bf16.mxu0 0
        %2337 = vmatpush1.bf16.msra.mxu0 0
        %2338 = vmatprep.subr.bf16.mxu0 0
        %2339 = vmatpush1.bf16.msra.mxu0 0
        %2340 = vmatprep.subr.bf16.mxu0 0
        %2341 = vmatpush1.bf16.msra.mxu0 0
        %2342 = vmatprep.subr.bf16.mxu0 0
        %2343 = vmatpush1.bf16.msra.mxu0 0
        %2344 = vmatprep.subr.bf16.mxu0 0
        %2345 = vmatpush1.bf16.msra.mxu0 0
        %2346 = vmatprep.subr.bf16.mxu0 0
        %2347 = vmatpush1.bf16.msra.mxu0 0
        %2348 = vmatprep.subr.bf16.mxu0 0
        %2349 = vmatpush1.bf16.msra.mxu0 0
        %2350 = vmatprep.subr.bf16.mxu0 0
        %2351 = vmatpush1.bf16.msra.mxu0 0
        %2352 = vmatprep.subr.bf16.mxu0 0
        %2353 = vmatpush1.bf16.msra.mxu0 0
        %2354 = vmatprep.subr.bf16.mxu0 0
        %2355 = vmatpush1.bf16.msra.mxu0 0
        %2356 = vmatprep.mubr.bf16.mxu0 0
        %2357 = vmatmul.mubr.bf16.gmra.mrb[0].mxu0 %v2319
        %v2358 = vpop.f32.mrb[0].mxu0
        %v2359 = vadd.f32 0.0, %v2358
        %v2360 = vpop.f32.mrb[0].mxu0
        %v2361 = vpop.f32.mrb[0].mxu0
        %v2362 = vpop.f32.mrb[0].mxu0
        %2363 = vdwg.mxu0
        %v2365 = vsel %vm2130, %v2127, 0
        %v2368 = vand.u32 %v1661, %v2136
        %2370 = vmatprep.subr.bf16.mxu0 0
        %2371 = vmatpush1.bf16.msra.mxu0 %v2368
        %2372 = vmatprep.subr.bf16.mxu0 0
        %2373 = vmatpush1.bf16.msra.mxu0 0
        %2374 = vmatprep.subr.bf16.mxu0 0
        %2375 = vmatpush1.bf16.msra.mxu0 0
        %2376 = vmatprep.subr.bf16.mxu0 0
        %2377 = vmatpush1.bf16.msra.mxu0 0
        %2378 = vmatprep.subr.bf16.mxu0 0
        %2379 = vmatpush1.bf16.msra.mxu0 0
        %2380 = vmatprep.subr.bf16.mxu0 0
        %2381 = vmatpush1.bf16.msra.mxu0 0
        %2382 = vmatprep.subr.bf16.mxu0 0
        %2383 = vmatpush1.bf16.msra.mxu0 0
        %2384 = vmatprep.subr.bf16.mxu0 0
        %2385 = vmatpush1.bf16.msra.mxu0 0
        %2386 = vmatprep.subr.bf16.mxu0 0
        %2387 = vmatpush1.bf16.msra.mxu0 0
        %2388 = vmatprep.subr.bf16.mxu0 0
        %2389 = vmatpush1.bf16.msra.mxu0 0
        %2390 = vmatprep.subr.bf16.mxu0 0
        %2391 = vmatpush1.bf16.msra.mxu0 0
        %2392 = vmatprep.subr.bf16.mxu0 0
        %2393 = vmatpush1.bf16.msra.mxu0 0
        %2394 = vmatprep.subr.bf16.mxu0 0
        %2395 = vmatpush1.bf16.msra.mxu0 0
        %2396 = vmatprep.subr.bf16.mxu0 0
        %2397 = vmatpush1.bf16.msra.mxu0 0
        %2398 = vmatprep.subr.bf16.mxu0 0
        %2399 = vmatpush1.bf16.msra.mxu0 0
        %2400 = vmatprep.subr.bf16.mxu0 0
        %2401 = vmatpush1.bf16.msra.mxu0 0
        %2402 = vmatprep.mubr.bf16.mxu0 0
        %2403 = vmatmul.mubr.bf16.gmra.mrb[0].mxu0 %v2365
        %v2404 = vpop.f32.mrb[0].mxu0
        %v2405 = vadd.f32 0.0, %v2404
        %v2406 = vpop.f32.mrb[0].mxu0
        %v2407 = vpop.f32.mrb[0].mxu0
        %v2408 = vpop.f32.mrb[0].mxu0
        %2409 = vdwg.mxu0
        %v2411 = vsel %vm2130, %v2128, 0
        %v2414 = vand.u32 %v1662, %v2136
        %2416 = vmatprep.subr.bf16.mxu0 0
        %2417 = vmatpush1.bf16.msra.mxu0 %v2414
        %2418 = vmatprep.subr.bf16.mxu0 0
        %2419 = vmatpush1.bf16.msra.mxu0 0
        %2420 = vmatprep.subr.bf16.mxu0 0
        %2421 = vmatpush1.bf16.msra.mxu0 0
        %2422 = vmatprep.subr.bf16.mxu0 0
        %2423 = vmatpush1.bf16.msra.mxu0 0
        %2424 = vmatprep.subr.bf16.mxu0 0
        %2425 = vmatpush1.bf16.msra.mxu0 0
        %2426 = vmatprep.subr.bf16.mxu0 0
        %2427 = vmatpush1.bf16.msra.mxu0 0
        %2428 = vmatprep.subr.bf16.mxu0 0
        %2429 = vmatpush1.bf16.msra.mxu0 0
        %2430 = vmatprep.subr.bf16.mxu0 0
        %2431 = vmatpush1.bf16.msra.mxu0 0
        %2432 = vmatprep.subr.bf16.mxu0 0
        %2433 = vmatpush1.bf16.msra.mxu0 0
        %2434 = vmatprep.subr.bf16.mxu0 0
        %2435 = vmatpush1.bf16.msra.mxu0 0
        %2436 = vmatprep.subr.bf16.mxu0 0
        %2437 = vmatpush1.bf16.msra.mxu0 0
        %2438 = vmatprep.subr.bf16.mxu0 0
        %2439 = vmatpush1.bf16.msra.mxu0 0
        %2440 = vmatprep.subr.bf16.mxu0 0
        %2441 = vmatpush1.bf16.msra.mxu0 0
        %2442 = vmatprep.subr.bf16.mxu0 0
        %2443 = vmatpush1.bf16.msra.mxu0 0
        %2444 = vmatprep.subr.bf16.mxu0 0
        %2445 = vmatpush1.bf16.msra.mxu0 0
        %2446 = vmatprep.subr.bf16.mxu0 0
        %2447 = vmatpush1.bf16.msra.mxu0 0
        %2448 = vmatprep.mubr.bf16.mxu0 0
        %2449 = vmatmul.mubr.bf16.gmra.mrb[0].mxu0 %v2411
        %v2450 = vpop.f32.mrb[0].mxu0
        %v2451 = vadd.f32 0.0, %v2450
        %v2452 = vpop.f32.mrb[0].mxu0
        %v2453 = vpop.f32.mrb[0].mxu0
        %v2454 = vpop.f32.mrb[0].mxu0
        %2455 = vdwg.mxu0
        %v2457 = vsel %vm2130, %v2129, 0
        %v2460 = vand.u32 %v1663, %v2136
        %2462 = vmatprep.subr.bf16.mxu0 0
        %2463 = vmatpush1.bf16.msra.mxu0 %v2460
        %2464 = vmatprep.subr.bf16.mxu0 0
        %2465 = vmatpush1.bf16.msra.mxu0 0
        %2466 = vmatprep.subr.bf16.mxu0 0
        %2467 = vmatpush1.bf16.msra.mxu0 0
        %2468 = vmatprep.subr.bf16.mxu0 0
        %2469 = vmatpush1.bf16.msra.mxu0 0
        %2470 = vmatprep.subr.bf16.mxu0 0
        %2471 = vmatpush1.bf16.msra.mxu0 0
        %2472 = vmatprep.subr.bf16.mxu0 0
        %2473 = vmatpush1.bf16.msra.mxu0 0
        %2474 = vmatprep.subr.bf16.mxu0 0
        %2475 = vmatpush1.bf16.msra.mxu0 0
        %2476 = vmatprep.subr.bf16.mxu0 0
        %2477 = vmatpush1.bf16.msra.mxu0 0
        %2478 = vmatprep.subr.bf16.mxu0 0
        %2479 = vmatpush1.bf16.msra.mxu0 0
        %2480 = vmatprep.subr.bf16.mxu0 0
        %2481 = vmatpush1.bf16.msra.mxu0 0
        %2482 = vmatprep.subr.bf16.mxu0 0
        %2483 = vmatpush1.bf16.msra.mxu0 0
        %2484 = vmatprep.subr.bf16.mxu0 0
        %2485 = vmatpush1.bf16.msra.mxu0 0
        %2486 = vmatprep.subr.bf16.mxu0 0
        %2487 = vmatpush1.bf16.msra.mxu0 0
        %2488 = vmatprep.subr.bf16.mxu0 0
        %2489 = vmatpush1.bf16.msra.mxu0 0
        %2490 = vmatprep.subr.bf16.mxu0 0
        %2491 = vmatpush1.bf16.msra.mxu0 0
        %2492 = vmatprep.subr.bf16.mxu0 0
        %2493 = vmatpush1.bf16.msra.mxu0 0
        %2494 = vmatprep.mubr.bf16.mxu0 0
        %2495 = vmatmul.mubr.bf16.gmra.mrb[0].mxu0 %v2457
        %v2496 = vpop.f32.mrb[0].mxu0
        %v2497 = vadd.f32 0.0, %v2496
        %v2498 = vpop.f32.mrb[0].mxu0
        %v2499 = vpop.f32.mrb[0].mxu0
        %v2500 = vpop.f32.mrb[0].mxu0
        %2501 = vdwg.mxu0
        %2503 = vrot.lane.b32.xlu0 %v2267, 8
        %v2504 = vpop.permute.xlu0 %2503
        %2507 = vrot.lane.b32.xlu0 %v2359, 16
        %v2508 = vpop.permute.xlu0 %2507
        %2511 = vrot.lane.b32.xlu0 %v2451, 24
        %v2512 = vpop.permute.xlu0 %2511
        %v2514 = vsel %vm1664, %v2175, %v2504
        %vm2515 = vcmask 130048
        %v2516 = vsel %vm2515, %v2514, %v2508
        %vm2517 = vcmask 195584
        %v2518 = vsel %vm2517, %v2516, %v2512
        %2520 = vrot.lane.b32.xlu0 %v2313, 8
        %v2521 = vpop.permute.xlu0 %2520
        %2524 = vrot.lane.b32.xlu0 %v2405, 16
        %v2525 = vpop.permute.xlu0 %2524
        %2528 = vrot.lane.b32.xlu0 %v2497, 24
        %v2529 = vpop.permute.xlu0 %2528
        %v2531 = vsel %vm1664, %v2221, %v2521
        %v2532 = vsel %vm2515, %v2531, %v2525
        %v2533 = vsel %vm2517, %v2532, %v2529
        %v2535 = vrot.slane %v2533, 3
        %vm2537 = vcmask 1044480
        %v2538 = vsel %vm2537, %v2518, %v2535
        %v2539 = vpack.c.bf16 %v2535, %v2538
        %v2540 = vld [vmem:[%s738] sm:$0xf]
        %v2541 = vld [vmem:[%s738 + $0x4] sm:$0xf]
        %v2542 = vld [vmem:[%s738 + $0x8] sm:$0xf]
        %v2543 = vld [vmem:[%s738 + $0xc] sm:$0xf]
        %v2548 = vunpack.c.l.b16 %v2540
        %v2549 = vunpack.c.l.b16 %v2541
        %v2550 = vunpack.c.l.b16 %v2542
        %v2551 = vunpack.c.l.b16 %v2543
        %v2552 = vpack.c.b16 %v2549, %v2548
        %v2553 = vpack.c.b16 %v2551, %v2550
        %v2557 = vsel %vm1322, %v2539, 0
        %2559 = vmatprep.subr.bf16.mxu0 0
        %2560 = vmatpush1.bf16.msra.mxu0 %v2552
        %2561 = vmatprep.subr.bf16.mxu0 0
        %2562 = vmatpush1.bf16.msra.mxu0 %v2553
        %2563 = vmatprep.subr.bf16.mxu0 0
        %2564 = vmatpush1.bf16.msra.mxu0 0
        %2565 = vmatprep.subr.bf16.mxu0 0
        %2566 = vmatpush1.bf16.msra.mxu0 0
        %2567 = vmatprep.subr.bf16.mxu0 0
        %2568 = vmatpush1.bf16.msra.mxu0 0
        %2569 = vmatprep.subr.bf16.mxu0 0
        %2570 = vmatpush1.bf16.msra.mxu0 0
        %2571 = vmatprep.subr.bf16.mxu0 0
        %2572 = vmatpush1.bf16.msra.mxu0 0
        %2573 = vmatprep.subr.bf16.mxu0 0
        %2574 = vmatpush1.bf16.msra.mxu0 0
        %2575 = vmatprep.subr.bf16.mxu0 0
        %2576 = vmatpush1.bf16.msra.mxu0 0
        %2577 = vmatprep.subr.bf16.mxu0 0
        %2578 = vmatpush1.bf16.msra.mxu0 0
        %2579 = vmatprep.subr.bf16.mxu0 0
        %2580 = vmatpush1.bf16.msra.mxu0 0
        %2581 = vmatprep.subr.bf16.mxu0 0
        %2582 = vmatpush1.bf16.msra.mxu0 0
        %2583 = vmatprep.subr.bf16.mxu0 0
        %2584 = vmatpush1.bf16.msra.mxu0 0
        %2585 = vmatprep.subr.bf16.mxu0 0
        %2586 = vmatpush1.bf16.msra.mxu0 0
        %2587 = vmatprep.subr.bf16.mxu0 0
        %2588 = vmatpush1.bf16.msra.mxu0 0
        %2589 = vmatprep.subr.bf16.mxu0 0
        %2590 = vmatpush1.bf16.msra.mxu0 0
        %2591 = vmatprep.mubr.bf16.mxu0 0
        %2592 = vmatmul.mubr.bf16.gmra.mrb[0].mxu0 %v2557
        %v2593 = vpop.f32.mrb[0].mxu0
        %v2594 = vadd.f32 0.0, %v2593
        %v2595 = vpop.f32.mrb[0].mxu0
        %v2596 = vpop.f32.mrb[0].mxu0
        %v2597 = vadd.f32 0.0, %v2596
        %v2598 = vpop.f32.mrb[0].mxu0
        %2599 = vdwg.mxu0
        %v2600 = vadd.f32 %v1318, %v2594
        %v2601 = vadd.f32 %v1319, %v2597
        %v2602 = vld [vmem:[%s741] sm:$0x1]
        %v2604 = vlaneseq
        %v2605 = vshrl.u32 %v2604, 7
        %v2606 = vsub.s32 0, %v2605
        %v2607 = vrot.slane %v2602, %v2606
        %v2609 = vadd.f32 %v2600, %v2607
        %v2610 = vadd.f32 %v2601, %v2607
        %v2611 = vld [vmem:[%s744] sm:$0x1]
        %v2612 = vld [vmem:[%s747] sm:$0x1]
        %v2613 = vsel %vm1322, %v2609, 0.0
        %2614 = vadd.xlane.f32.xlu0 %v2613
        %v2615 = vpop.xlane.xlu0 %2614
        %v2616 = vsel %vm1326, %v2610, 0.0
        %2617 = vadd.xlane.f32.xlu0 %v2616
        %v2618 = vpop.xlane.xlu0 %2617
        %v2619 = vmul.f32 %v2615, %v1330
        %v2620 = vmul.f32 %v2618, %v1330
        %v2621 = vsub.f32 %v2609, %v2619
        %v2622 = vsub.f32 %v2610, %v2620
        %v2623 = vmul.f32 %v2621, %v2621
        %v2624 = vmul.f32 %v2622, %v2622
        %v2625 = vsel %vm1322, %v2623, 0.0
        %2626 = vadd.xlane.f32.xlu0 %v2625
        %v2627 = vpop.xlane.xlu0 %2626
        %v2628 = vsel %vm1326, %v2624, 0.0
        %2629 = vadd.xlane.f32.xlu0 %v2628
        %v2630 = vpop.xlane.xlu0 %2629
        %v2631 = vmul.f32 %v2627, %v1330
        %v2632 = vmul.f32 %v2630, %v1330
        %v2633 = vadd.f32 %v2631, 1e-06
        %v2634 = vadd.f32 %v2632, 1e-06
        %v2635 = vrsqrt.pop %v2633
        %v2636 = vrsqrt.pop %v2634
        %v2637 = vmul.f32 %v2621, %v2635
        %v2638 = vmul.f32 %v2622, %v2636
        %v2640 = vlaneseq
        %v2641 = vshrl.u32 %v2640, 7
        %v2642 = vsub.s32 0, %v2641
        %v2643 = vrot.slane %v2611, %v2642
        %v2645 = vmul.f32 %v2637, %v2643
        %v2646 = vmul.f32 %v2638, %v2643
        %v2648 = vlaneseq
        %v2649 = vshrl.u32 %v2648, 7
        %v2650 = vsub.s32 0, %v2649
        %v2651 = vrot.slane %v2612, %v2650
        %v2653 = vadd.f32 %v2645, %v2651
        %v2654 = vadd.f32 %v2646, %v2651
        %v2655 = vpack.c.bf16 %v2654, %v2653
        %v2656 = vld [vmem:[%s752] sm:$0xf]
        %v2657 = vld [vmem:[%s752 + $0x4] sm:$0xf]
        %v2658 = vld [vmem:[%s752 + $0x8] sm:$0xf]
        %v2659 = vld [vmem:[%s752 + $0xc] sm:$0xf]
        %v2660 = vld [vmem:[%s755] sm:$0x1]
        %v2662 = vlaneseq
        %v2663 = vshrl.u32 %v2662, 7
        %v2664 = vsub.s32 0, %v2663
        %v2665 = vrot.slane %v2660, %v2664
        %v2671 = vunpack.c.l.b16 %v2656
        %v2672 = vunpack.c.l.b16 %v2657
        %v2673 = vunpack.c.l.b16 %v2658
        %v2674 = vunpack.c.l.b16 %v2659
        %v2675 = vpack.c.b16 %v2672, %v2671
        %v2676 = vpack.c.b16 %v2674, %v2673
        %v2680 = vsel %vm1322, %v2655, 0
        %2682 = vmatprep.subr.bf16.mxu0 0
        %2683 = vmatpush1.bf16.msra.mxu0 %v2675
        %2684 = vmatprep.subr.bf16.mxu0 0
        %2685 = vmatpush1.bf16.msra.mxu0 %v2676
        %2686 = vmatprep.subr.bf16.mxu0 0
        %2687 = vmatpush1.bf16.msra.mxu0 0
        %2688 = vmatprep.subr.bf16.mxu0 0
        %2689 = vmatpush1.bf16.msra.mxu0 0
        %2690 = vmatprep.subr.bf16.mxu0 0
        %2691 = vmatpush1.bf16.msra.mxu0 0
        %2692 = vmatprep.subr.bf16.mxu0 0
        %2693 = vmatpush1.bf16.msra.mxu0 0
        %2694 = vmatprep.subr.bf16.mxu0 0
        %2695 = vmatpush1.bf16.msra.mxu0 0
        %2696 = vmatprep.subr.bf16.mxu0 0
        %2697 = vmatpush1.bf16.msra.mxu0 0
        %2698 = vmatprep.subr.bf16.mxu0 0
        %2699 = vmatpush1.bf16.msra.mxu0 0
        %2700 = vmatprep.subr.bf16.mxu0 0
        %2701 = vmatpush1.bf16.msra.mxu0 0
        %2702 = vmatprep.subr.bf16.mxu0 0
        %2703 = vmatpush1.bf16.msra.mxu0 0
        %2704 = vmatprep.subr.bf16.mxu0 0
        %2705 = vmatpush1.bf16.msra.mxu0 0
        %2706 = vmatprep.subr.bf16.mxu0 0
        %2707 = vmatpush1.bf16.msra.mxu0 0
        %2708 = vmatprep.subr.bf16.mxu0 0
        %2709 = vmatpush1.bf16.msra.mxu0 0
        %2710 = vmatprep.subr.bf16.mxu0 0
        %2711 = vmatpush1.bf16.msra.mxu0 0
        %2712 = vmatprep.subr.bf16.mxu0 0
        %2713 = vmatpush1.bf16.msra.mxu0 0
        %2714 = vmatprep.mubr.bf16.mxu0 0
        %2715 = vmatmul.mubr.bf16.gmra.mrb[0].mxu0 %v2680
        %v2716 = vpop.f32.mrb[0].mxu0
        %v2717 = vadd.f32 %v2665, %v2716
        %v2718 = vpop.f32.mrb[0].mxu0
        %v2719 = vpop.f32.mrb[0].mxu0
        %v2720 = vadd.f32 %v2665, %v2719
        %v2721 = vpop.f32.mrb[0].mxu0
        %2722 = vdwg.mxu0
        %v2723 = vmul.f32 %v2717, %v2717
        %v2724 = vmul.f32 %v2720, %v2720
        %v2725 = vmul.f32 %v2717, %v2723
        %v2726 = vmul.f32 %v2720, %v2724
        %v2727 = vmul.f32 %v2725, 0.044715
        %v2728 = vmul.f32 %v2726, 0.044715
        %v2729 = vadd.f32 %v2717, %v2727
        %v2730 = vadd.f32 %v2720, %v2728
        %v2731 = vmul.f32 %v2729, 0.7978846
        %v2732 = vmul.f32 %v2730, 0.7978846
        %v2733 = vtanh.pop %v2731
        %v2734 = vtanh.pop %v2732
        %v2735 = vadd.f32 %v2733, 1.0
        %v2736 = vadd.f32 %v2734, 1.0
        %v2737 = vmul.f32 %v2735, 0.5
        %v2738 = vmul.f32 %v2736, 0.5
        %v2739 = vmul.f32 %v2717, %v2737
        %v2740 = vmul.f32 %v2720, %v2738
        %v2741 = vpack.c.bf16 %v2740, %v2739
        %v2742 = vld [vmem:[%s760] sm:$0xf]
        %v2743 = vld [vmem:[%s760 + $0x4] sm:$0xf]
        %v2744 = vld [vmem:[%s760 + $0x8] sm:$0xf]
        %v2745 = vld [vmem:[%s760 + $0xc] sm:$0xf]
        %v2746 = vld [vmem:[%s760 + $0x10] sm:$0xf]
        %v2747 = vld [vmem:[%s760 + $0x14] sm:$0xf]
        %v2748 = vld [vmem:[%s760 + $0x18] sm:$0xf]
        %v2749 = vld [vmem:[%s760 + $0x1c] sm:$0xf]
        %v2750 = vld [vmem:[%s760 + $0x20] sm:$0xf]
        %v2751 = vld [vmem:[%s760 + $0x24] sm:$0xf]
        %v2752 = vld [vmem:[%s760 + $0x28] sm:$0xf]
        %v2753 = vld [vmem:[%s760 + $0x2c] sm:$0xf]
        %v2754 = vld [vmem:[%s760 + $0x30] sm:$0xf]
        %v2755 = vld [vmem:[%s760 + $0x34] sm:$0xf]
        %v2756 = vld [vmem:[%s760 + $0x38] sm:$0xf]
        %v2757 = vld [vmem:[%s760 + $0x3c] sm:$0xf]
        %v2774 = vunpack.c.l.b16 %v2742
        %v2775 = vunpack.c.l.b16 %v2743
        %v2776 = vunpack.c.l.b16 %v2744
        %v2777 = vunpack.c.l.b16 %v2745
        %v2778 = vunpack.c.l.b16 %v2746
        %v2779 = vunpack.c.l.b16 %v2747
        %v2780 = vunpack.c.l.b16 %v2748
        %v2781 = vunpack.c.l.b16 %v2749
        %v2782 = vunpack.c.l.b16 %v2750
        %v2783 = vunpack.c.l.b16 %v2751
        %v2784 = vunpack.c.l.b16 %v2752
        %v2785 = vunpack.c.l.b16 %v2753
        %v2786 = vunpack.c.l.b16 %v2754
        %v2787 = vunpack.c.l.b16 %v2755
        %v2788 = vunpack.c.l.b16 %v2756
        %v2789 = vunpack.c.l.b16 %v2757
        %v2790 = vpack.c.b16 %v2775, %v2774
        %v2791 = vpack.c.b16 %v2777, %v2776
        %v2792 = vpack.c.b16 %v2779, %v2778
        %v2793 = vpack.c.b16 %v2781, %v2780
        %v2794 = vpack.c.b16 %v2783, %v2782
        %v2795 = vpack.c.b16 %v2785, %v2784
        %v2796 = vpack.c.b16 %v2787, %v2786
        %v2797 = vpack.c.b16 %v2789, %v2788
        %2806 = vmatprep.subr.bf16.mxu0 0
        %2807 = vmatpush1.bf16.msra.mxu0 %v2790
        %2808 = vmatprep.subr.bf16.mxu0 0
        %2809 = vmatpush1.bf16.msra.mxu0 %v2791
        %2810 = vmatprep.subr.bf16.mxu0 0
        %2811 = vmatpush1.bf16.msra.mxu0 %v2792
        %2812 = vmatprep.subr.bf16.mxu0 0
        %2813 = vmatpush1.bf16.msra.mxu0 %v2793
        %2814 = vmatprep.subr.bf16.mxu0 0
        %2815 = vmatpush1.bf16.msra.mxu0 %v2794
        %2816 = vmatprep.subr.bf16.mxu0 0
        %2817 = vmatpush1.bf16.msra.mxu0 %v2795
        %2818 = vmatprep.subr.bf16.mxu0 0
        %2819 = vmatpush1.bf16.msra.mxu0 %v2796
        %2820 = vmatprep.subr.bf16.mxu0 0
        %2821 = vmatpush1.bf16.msra.mxu0 %v2797
        %2822 = vmatprep.subr.bf16.mxu0 0
        %2823 = vmatpush1.bf16.msra.mxu0 0
        %2824 = vmatprep.subr.bf16.mxu0 0
        %2825 = vmatpush1.bf16.msra.mxu0 0
        %2826 = vmatprep.subr.bf16.mxu0 0
        %2827 = vmatpush1.bf16.msra.mxu0 0
        %2828 = vmatprep.subr.bf16.mxu0 0
        %2829 = vmatpush1.bf16.msra.mxu0 0
        %2830 = vmatprep.subr.bf16.mxu0 0
        %2831 = vmatpush1.bf16.msra.mxu0 0
        %2832 = vmatprep.subr.bf16.mxu0 0
        %2833 = vmatpush1.bf16.msra.mxu0 0
        %2834 = vmatprep.subr.bf16.mxu0 0
        %2835 = vmatpush1.bf16.msra.mxu0 0
        %2836 = vmatprep.subr.bf16.mxu0 0
        %2837 = vmatpush1.bf16.msra.mxu0 0
        %2838 = vmatprep.mubr.bf16.mxu0 0
        %2839 = vmatmul.mubr.bf16.gmra.mrb[0].mxu0 %v2741
        %v2840 = vpop.f32.mrb[0].mxu0
        %v2841 = vadd.f32 0.0, %v2840
        %v2842 = vpop.f32.mrb[0].mxu0
        %v2843 = vpop.f32.mrb[0].mxu0
        %v2844 = vadd.f32 0.0, %v2843
        %v2845 = vpop.f32.mrb[0].mxu0
        %2846 = vdwg.mxu0
        %v2847 = vadd.f32 %v2609, %v2841
        %v2848 = vadd.f32 %v2610, %v2844
        %v2849 = vld [vmem:[%s763] sm:$0x1]
        %v2851 = vlaneseq
        %v2852 = vshrl.u32 %v2851, 7
        %v2853 = vsub.s32 0, %v2852
        %v2854 = vrot.slane %v2849, %v2853
        %v2856 = vadd.f32 %v2847, %v2854
        %v2857 = vadd.f32 %v2848, %v2854
        %2858 = vst.msk [vmem:[#allocation2] sm:$0xff] %vm1322, %v2856
        %2859 = vst.msk [vmem:[#allocation2 + $0x8] sm:$0x3] %vm1326, %v2857
        %p2860 = scmp.eq.s32.totalorder %s31, 1
        // Predicated region
        $region101: #{deit_forward.1} parent=95 // pred_check
          %p2861 = pneg %p2860
        $region102: #{deit_forward.1} parent=95 // pred_check_branch
          %2863 = sbr.rel (%p2861) target = $region104
        $region103: #{deit_forward.1} parent=95 // pred_region
          %v2865 = vrot.slane %v2856, 4
          %vm2867 = vcmask 1040384
          %v2868 = vsel %vm2867, %v2856, %v2865
          %v2869 = vld [vmem:[%s15] sm:$0x1]
          %v2870 = vld [vmem:[%s16] sm:$0x1]
          %v2871 = vsel %vm1326, %v2868, 0.0
          %2872 = vadd.xlane.f32.xlu0 %v2871
          %v2873 = vpop.xlane.xlu0 %2872
          %v2874 = vmul.f32 %v2873, %v1330
          %v2875 = vsub.f32 %v2868, %v2874
          %v2876 = vmul.f32 %v2875, %v2875
          %v2877 = vsel %vm1326, %v2876, 0.0
          %2878 = vadd.xlane.f32.xlu0 %v2877
          %v2879 = vpop.xlane.xlu0 %2878
          %v2880 = vmul.f32 %v2879, %v1330
          %v2881 = vadd.f32 %v2880, 1e-06
          %v2882 = vrsqrt.pop %v2881
          %v2883 = vmul.f32 %v2875, %v2882
          %v2885 = vlaneseq
          %v2886 = vshrl.u32 %v2885, 7
          %v2887 = vsub.s32 0, %v2886
          %v2888 = vrot.slane %v2869, %v2887
          %v2890 = vmul.f32 %v2883, %v2888
          %v2892 = vlaneseq
          %v2893 = vshrl.u32 %v2892, 7
          %v2894 = vsub.s32 0, %v2893
          %v2895 = vrot.slane %v2870, %v2894
          %v2897 = vadd.f32 %v2890, %v2895
          %v2898 = vpack.c.bf16 %v2897, %v2897
          %v2899 = vld [vmem:[%s17] sm:$0xf]
          %v2900 = vld [vmem:[%s17 + $0x4] sm:$0xf]
          %v2901 = vld [vmem:[%s17 + $0x8] sm:$0xf]
          %v2902 = vld [vmem:[%s17 + $0xc] sm:$0xf]
          %v2903 = vld [vmem:[%s18] sm:$0x1]
          %v2905 = vlaneseq
          %v2906 = vshrl.u32 %v2905, 7
          %v2907 = vsub.s32 0, %v2906
          %v2908 = vrot.slane %v2903, %v2907
          %v2914 = vunpack.c.l.b16 %v2899
          %v2915 = vunpack.c.l.b16 %v2900
          %v2916 = vunpack.c.l.b16 %v2901
          %v2917 = vunpack.c.l.b16 %v2902
          %v2918 = vpack.c.b16 %v2915, %v2914
          %v2919 = vpack.c.b16 %v2917, %v2916
          %v2923 = vsel %vm1322, %v2898, 0
          %2925 = vmatprep.subr.bf16.mxu0 0
          %2926 = vmatpush1.bf16.msra.mxu0 %v2918
          %2927 = vmatprep.subr.bf16.mxu0 0
          %2928 = vmatpush1.bf16.msra.mxu0 %v2919
          %2929 = vmatprep.subr.bf16.mxu0 0
          %2930 = vmatpush1.bf16.msra.mxu0 0
          %2931 = vmatprep.subr.bf16.mxu0 0
          %2932 = vmatpush1.bf16.msra.mxu0 0
          %2933 = vmatprep.subr.bf16.mxu0 0
          %2934 = vmatpush1.bf16.msra.mxu0 0
          %2935 = vmatprep.subr.bf16.mxu0 0
          %2936 = vmatpush1.bf16.msra.mxu0 0
          %2937 = vmatprep.subr.bf16.mxu0 0
          %2938 = vmatpush1.bf16.msra.mxu0 0
          %2939 = vmatprep.subr.bf16.mxu0 0
          %2940 = vmatpush1.bf16.msra.mxu0 0
          %2941 = vmatprep.subr.bf16.mxu0 0
          %2942 = vmatpush1.bf16.msra.mxu0 0
          %2943 = vmatprep.subr.bf16.mxu0 0
          %2944 = vmatpush1.bf16.msra.mxu0 0
          %2945 = vmatprep.subr.bf16.mxu0 0
          %2946 = vmatpush1.bf16.msra.mxu0 0
          %2947 = vmatprep.subr.bf16.mxu0 0
          %2948 = vmatpush1.bf16.msra.mxu0 0
          %2949 = vmatprep.subr.bf16.mxu0 0
          %2950 = vmatpush1.bf16.msra.mxu0 0
          %2951 = vmatprep.subr.bf16.mxu0 0
          %2952 = vmatpush1.bf16.msra.mxu0 0
          %2953 = vmatprep.subr.bf16.mxu0 0
          %2954 = vmatpush1.bf16.msra.mxu0 0
          %2955 = vmatprep.subr.bf16.mxu0 0
          %2956 = vmatpush1.bf16.msra.mxu0 0
          %2957 = vmatprep.mubr.bf16.mxu0 0
          %2958 = vmatmul.mubr.bf16.gmra.mrb[0].mxu0 %v2923
          %v2959 = vpop.f32.mrb[0].mxu0
          %v2960 = vadd.f32 %v2908, %v2959
          %v2961 = vpop.f32.mrb[0].mxu0
          %v2962 = vpop.f32.mrb[0].mxu0
          %v2963 = vpop.f32.mrb[0].mxu0
          %2964 = vdwg.mxu0
          %2965 = vst [vmem:[#allocation3] sm:$0x3] %v2960
        $region104: #{deit_forward.1} parent=95 // pred_fallthru
          _
        // Predicated region
        $region105: #{deit_forward.1} parent=95 // pred_check
          %p2966 = pneg %p503
        $region106: #{deit_forward.1} parent=95 // pred_check_branch
          %2968 = sbr.rel (%p2966) target = $region108
        $region107: #{deit_forward.1} parent=95 // pred_region
          %s2970 = ssub.s32 32, 32
          %2971 = vsyncadd [#allocation4], %s2970
          %s2973 = sshll.u32 [#allocation3], 4
          %s2974 = int_to_ptr.vmem [resolvable:$true] %s2973
          %2976 = dma.vmem_to_hbm [thread:$0]  %s2974, 32, %s19, [#allocation4]
        $region108: #{deit_forward.1} parent=95 // pred_fallthru
          _
        // Predicated region
        $region109: #{deit_forward.1} parent=95 // pred_check
          %p2977 = pneg %p503
        $region110: #{deit_forward.1} parent=95 // pred_check_branch
          %2979 = sbr.rel (%p2977) target = $region112
        $region111: #{deit_forward.1} parent=95 // pred_region
          %2980 = dma.done [#allocation4], 32
        $region112: #{deit_forward.1} parent=95 // pred_fallthru
          _
      $region96: #{deit_forward.1} parent=5 // pred_fallthru
        _
      %p2981 = scmp.le.s32.totalorder 2, %s26
      // Predicated region
      $region113: #{deit_forward.1} parent=5 // pred_check
        %p2982 = pneg %p2981
      $region114: #{deit_forward.1} parent=5 // pred_check_branch
        %2984 = sbr.rel (%p2982) target = $region116
      $region115: #{deit_forward.1} parent=5 // pred_region
        %s2985 = ssub.s32 %s26, 2
      $region116: #{deit_forward.1} parent=5 // pred_fallthru
        _
    $region6: #{deit_forward.1} parent=1 // loop_footer
      %s30 = sadd.s32 1, %s26
    $region7: #{deit_forward.1} parent=1 // loop_footer_branch
      %25 = sbr.rel target = $region3
    $region8: #{deit_forward.1} parent=1 // loop_exit
      _
    %2986 = vsyncpa [#allocation4], 1
    %s2987 = scalar_lea.sflag [#allocation4], 1
    %2988 = vsyncpa %s2987, 1

</llo_original>
